<compile_context>
chip_gen: v5e
topology: v5e:2x2
jax: 0.10.0
libtpu: 0.0.40
codegen_flags: <defaults>
</compile_context>

<pallas_src>
import functools

import jax
import jax.numpy as jnp
from jax import lax
from jax.experimental import pallas as pl
from jax.experimental.pallas import tpu as pltpu


_PARAMS = pltpu.CompilerParams(dimension_semantics=("parallel",))


# --------------------------------------------------------------------------------------
# Kernels
# --------------------------------------------------------------------------------------
def _block_kernel(*args, units, H, W, do_maxpool, skip_mode):
    # Ref layout (all for one batch element):
    #   x_ref                     (1, H, W, Cin0)        original input (pre-ReLU)
    #   per unit: dw (9, cin), pw (cin, cout), scale (1, cout), bias (1, cout)
    #   if skip_mode == "conv":   skip_w (Cin0, Cout), skip_scale (1, Cout), skip_bias
    #   o_ref                     (1, H, W, Cout)
    nu = len(units)
    x_ref = args[0]
    unit_refs = [args[1 + 4 * i: 1 + 4 * (i + 1)] for i in range(nu)]
    pos = 1 + 4 * nu
    if skip_mode == "conv":
        skip_w_ref, skip_sc_ref, skip_b_ref = args[pos:pos + 3]
        pos += 3
    o_ref = args[pos]

    x0 = x_ref[0].astype(jnp.float32)                       # (H, W, Cin0)
    x = x0

    for (cin, cout, apply_relu), (dw_ref, pw_ref, sc_ref, b_ref) in zip(units, unit_refs):
        if apply_relu:
            x = jnp.maximum(x, 0.0)
        # Zero-pad spatially in-kernel (concat of 1-wide slabs; zero-pad commutes w/ ReLU).
        zr = jnp.zeros((1, W, cin), jnp.float32)
        xp = jnp.concatenate([zr, x, zr], axis=0)           # (H+2, W,   cin)
        zc = jnp.zeros((H + 2, 1, cin), jnp.float32)
        xp = jnp.concatenate([zc, xp, zc], axis=1)          # (H+2, W+2, cin)

        dw = dw_ref[...].astype(jnp.float32)                # (9, cin)
        acc = None
        for dh in range(3):
            for dwi in range(3):
                k = 3 * dh + dwi
                tap = xp[dh:dh + H, dwi:dwi + W, :] * dw[k:k + 1, :]
                acc = tap if acc is None else acc + tap     # (H, W, cin)

        y = jnp.dot(acc.reshape(H * W, cin),
                    pw_ref[...].astype(jnp.float32),
                    preferred_element_type=jnp.float32)     # (H*W, cout)  MXU
        y = y * sc_ref[...] + b_ref[...]                    # folded BN
        x = y.reshape(H, W, cout)

    if do_maxpool:
        # Full-resolution 3x3 / stride-1 / pad-1 max (separable); the stride subsample is
        # a cheap XLA slice in the wrapper so every in-kernel access stays static.
        c = x.shape[-1]
        nh = jnp.full((1, W, c), -jnp.inf, jnp.float32)
        x = jnp.maximum(x, jnp.maximum(jnp.concatenate([x[1:], nh], axis=0),
                                       jnp.concatenate([nh, x[:-1]], axis=0)))
        nw = jnp.full((H, 1, c), -jnp.inf, jnp.float32)
        x = jnp.maximum(x, jnp.maximum(jnp.concatenate([x[:, 1:], nw], axis=1),
                                       jnp.concatenate([nw, x[:, :-1]], axis=1)))

    if skip_mode == "identity":
        x = x + x0
    elif skip_mode == "conv":
        sk = jnp.dot(x0.reshape(H * W, x0.shape[-1]),
                     skip_w_ref[...].astype(jnp.float32),
                     preferred_element_type=jnp.float32)    # (H*W, Cout)
        sk = sk * skip_sc_ref[...] + skip_b_ref[...]
        x = x + sk.reshape(H, W, x.shape[-1])

    o_ref[0] = x.astype(o_ref.dtype)


def _conv_skip_add_kernel(main_ref, inp_ref, w_ref, scale_ref, bias_ref, o_ref):
    # main_ref: (1, Ho, Wo, Cout)  stride-subsampled rep-branch output
    # inp_ref:  (1, Ho, Wo, Cin)   original input, already stride-subsampled
    _, Ho, Wo, Cin = inp_ref.shape
    x = inp_ref[0].astype(jnp.float32).reshape(Ho * Wo, Cin)
    y = jnp.dot(x, w_ref[...].astype(jnp.float32),
                preferred_element_type=jnp.float32)          # (Ho*Wo, Cout)
    y = y * scale_ref[...] + bias_ref[...]
    out = main_ref[0].astype(jnp.float32) + y.reshape(Ho, Wo, y.shape[-1])
    o_ref[0] = out.astype(o_ref.dtype)


# --------------------------------------------------------------------------------------
# pallas_call wrappers (grid over batch, "parallel" for v7x dual-TC)
# --------------------------------------------------------------------------------------
def _fused_block(x, units, unit_params, skip_params, *, do_maxpool, skip_mode):
    B, H, W, Cin0 = x.shape
    Cout = units[-1][1]

    inputs = [x]
    in_specs = [pl.BlockSpec((1, H, W, Cin0), lambda b: (b, 0, 0, 0))]
    for (cin, cout, _), (dw_k, pw_k, sc, bi) in zip(units, unit_params):
        inputs += [dw_k, pw_k, sc, bi]
        in_specs += [
            pl.BlockSpec((9, cin), lambda b: (0, 0)),
            pl.BlockSpec((cin, cout), lambda b: (0, 0)),
            pl.BlockSpec((1, cout), lambda b: (0, 0)),
            pl.BlockSpec((1, cout), lambda b: (0, 0)),
        ]
    if skip_mode == "conv":
        w_k, sc, bi = skip_params
        inputs += [w_k, sc, bi]
        in_specs += [
            pl.BlockSpec((Cin0, Cout), lambda b: (0, 0)),
            pl.BlockSpec((1, Cout), lambda b: (0, 0)),
            pl.BlockSpec((1, Cout), lambda b: (0, 0)),
        ]

    kern = functools.partial(_block_kernel, units=tuple(units), H=H, W=W,
                             do_maxpool=do_maxpool, skip_mode=skip_mode)
    return pl.pallas_call(
        kern,
        out_shape=jax.ShapeDtypeStruct((B, H, W, Cout), x.dtype),
        grid=(B,),
        in_specs=in_specs,
        out_specs=pl.BlockSpec((1, H, W, Cout), lambda b: (b, 0, 0, 0)),
        compiler_params=_PARAMS,
    )(*inputs)


def _conv_skip_add(main, inp_sub, w_skip, scale, bias):
    B, Ho, Wo, Cout = main.shape
    Cin = inp_sub.shape[-1]
    return pl.pallas_call(
        _conv_skip_add_kernel,
        out_shape=jax.ShapeDtypeStruct((B, Ho, Wo, Cout), main.dtype),
        grid=(B,),
        in_specs=[
            pl.BlockSpec((1, Ho, Wo, Cout), lambda b: (b, 0, 0, 0)),
            pl.BlockSpec((1, Ho, Wo, Cin), lambda b: (b, 0, 0, 0)),
            pl.BlockSpec((Cin, Cout), lambda b: (0, 0)),
            pl.BlockSpec((1, Cout), lambda b: (0, 0)),
            pl.BlockSpec((1, Cout), lambda b: (0, 0)),
        ],
        out_specs=pl.BlockSpec((1, Ho, Wo, Cout), lambda b: (b, 0, 0, 0)),
        compiler_params=_PARAMS,
    )(main, inp_sub, w_skip, scale, bias)


def _fold_bn(gamma, beta, mean, var, eps=1e-5):
    scale = gamma / jnp.sqrt(var + eps)
    bias = beta - mean * scale
    return scale.reshape(1, -1), bias.reshape(1, -1)


# --------------------------------------------------------------------------------------
# The Block module (parameters in PyTorch layouts; forward in Pallas; lax reference)
# --------------------------------------------------------------------------------------
class BlockPallas:
    def __init__(self, key, in_filters, out_filters, reps, strides=1,
                 start_with_relu=True, grow_first=True):
        assert reps >= 1
        self.in_filters = in_filters
        self.out_filters = out_filters
        self.strides = strides

        # Mirror the PyTorch `rep` Sequential as a list of (cin, cout, apply_relu) units.
        units = []
        if grow_first:
            units.append([in_filters, out_filters, True])
            filters = out_filters
        else:
            filters = in_filters
        for _ in range(reps - 1):
            units.append([filters, filters, True])
        if not grow_first:
            units.append([in_filters, out_filters, True])
        if not start_with_relu:
            units[0][2] = False
        self.units = [tuple(u) for u in units]

        self.use_conv_skip = (out_filters != in_filters) or (strides != 1)

        # Parameters in PyTorch layouts; BatchNorm uses (deterministic) running stats.
        self.params = {"units": []}
        for (cin, cout, _) in self.units:
            key, kd, kp, kg, kb, km, kv = jax.random.split(key, 7)
            self.params["units"].append({
                "dw": 0.2 * jax.random.normal(kd, (cin, 1, 3, 3), jnp.float32),
                "pw": 0.1 * jax.random.normal(kp, (cout, cin, 1, 1), jnp.float32),
                "gamma": 1.0 + 0.1 * jax.random.normal(kg, (cout,), jnp.float32),
                "beta": 0.1 * jax.random.normal(kb, (cout,), jnp.float32),
                "mean": 0.1 * jax.random.normal(km, (cout,), jnp.float32),
                "var": jax.random.uniform(kv, (cout,), jnp.float32, 0.5, 1.5),
            })
        if self.use_conv_skip:
            key, kw, kg, kb, km, kv = jax.random.split(key, 6)
            self.params["skip"] = {
                "w": 0.1 * jax.random.normal(kw, (out_filters, in_filters, 1, 1), jnp.float32),
                "gamma": 1.0 + 0.1 * jax.random.normal(kg, (out_filters,), jnp.float32),
                "beta": 0.1 * jax.random.normal(kb, (out_filters,), jnp.float32),
                "mean": 0.1 * jax.random.normal(km, (out_filters,), jnp.float32),
                "var": jax.random.uniform(kv, (out_filters,), jnp.float32, 0.5, 1.5),
            }

        # Kernel-layout weights (channels-last, BN folded) precomputed once.
        self.fast_units = []
        for (cin, cout, _), p in zip(self.units, self.params["units"]):
            dw_k = jnp.transpose(p["dw"][:, 0], (1, 2, 0)).reshape(9, cin)   # (9, cin)
            pw_k = jnp.transpose(p["pw"][:, :, 0, 0], (1, 0))                # (cin, cout)
            scale, bias = _fold_bn(p["gamma"], p["beta"], p["mean"], p["var"])
            self.fast_units.append((dw_k, pw_k, scale, bias))
        self.fast_skip = None
        if self.use_conv_skip:
            p = self.params["skip"]
            w_k = jnp.transpose(p["w"][:, :, 0, 0], (1, 0))                  # (cin, cout)
            scale, bias = _fold_bn(p["gamma"], p["beta"], p["mean"], p["var"])
            self.fast_skip = (w_k, scale, bias)

    # ------------------------- Pallas forward (NCHW in / NCHW out) ---------------------
    def __call__(self, x_nchw):
        s = self.strides
        inp = jnp.transpose(x_nchw, (0, 2, 3, 1))            # single NCHW -> NHWC
        do_maxpool = s != 1
        if do_maxpool:
            skip_mode = "none"                               # skip handled post-subsample
        else:
            skip_mode = "conv" if self.use_conv_skip else "identity"

        y = _fused_block(inp, self.units, self.fast_units,
                         self.fast_skip if skip_mode == "conv" else None,
                         do_maxpool=do_maxpool, skip_mode=skip_mode)

        if do_maxpool:
            y = y[:, ::s, ::s, :]                            # stride subsample (XLA slice)
            w_k, scale, bias = self.fast_skip                # stride != 1 => conv skip
            y = _conv_skip_add(y, inp[:, ::s, ::s, :], w_k, scale, bias)

        return jnp.transpose(y, (0, 3, 1, 2))                # NHWC -> NCHW

    # ------------------------- pure-JAX (lax) reference, NCHW --------------------------
    def reference(self, x_nchw):
        eps = 1e-5
        hp = lax.Precision.HIGHEST

        def bn(x, p):
            g = p["gamma"][None, :, None, None]
            b = p["beta"][None, :, None, None]
            m = p["mean"][None, :, None, None]
            v = p["var"][None, :, None, None]
            return (x - m) / jnp.sqrt(v + eps) * g + b

        x = x_nchw
        for (cin, cout, apply_relu), p in zip(self.units, self.params["units"]):
            if apply_relu:
                x = jnp.maximum(x, 0.0)
            x = lax.conv_general_dilated(
                x, p["dw"], window_strides=(1, 1), padding=((1, 1), (1, 1)),
                dimension_numbers=("NCHW", "OIHW", "NCHW"),
                feature_group_count=cin, precision=hp)
            x = lax.conv_general_dilated(
                x, p["pw"], window_strides=(1, 1), padding=((0, 0), (0, 0)),
                dimension_numbers=("NCHW", "OIHW", "NCHW"), precision=hp)
            x = bn(x, p)
        if self.strides != 1:
            x = lax.reduce_window(
                x, -jnp.inf, lax.max, window_dimensions=(1, 1, 3, 3),
                window_strides=(1, 1, self.strides, self.strides),
                padding=((0, 0), (0, 0), (1, 1), (1, 1)))
        if self.use_conv_skip:
            p = self.params["skip"]
            skip = lax.conv_general_dilated(
                x_nchw, p["w"], window_strides=(self.strides, self.strides),
                padding=((0, 0), (0, 0)),
                dimension_numbers=("NCHW", "OIHW", "NCHW"), precision=hp)
            skip = bn(skip, p)
        else:
            skip = x_nchw
        return x + skip


# --------------------------------------------------------------------------------------
if __name__ == "__main__":
    key = jax.random.PRNGKey(0)
    k1, k2, k3, kx1, kx2, kx3 = jax.random.split(key, 6)
    B, H, W = 2, 16, 16

    # Config 1: channel growth + stride 2 -> fused rep+maxpool kernel, then conv-skip+add.
    blk1 = BlockPallas(k1, in_filters=64, out_filters=128, reps=2, strides=2,
                       start_with_relu=True, grow_first=True)
    x1 = jax.random.normal(kx1, (B, 64, H, W), jnp.float32)
    y1 = jax.block_until_ready(blk1(x1))
    r1 = blk1.reference(x1)
    assert y1.shape == (B, 128, 8, 8), y1.shape
    assert jnp.allclose(y1, r1, atol=1e-3, rtol=1e-3), \
        f"config1 mismatch, max abs err {float(jnp.max(jnp.abs(y1 - r1)))}"

    # Config 2: identity skip, no leading ReLU, grow_first=False, stride 1 (one kernel).
    blk2 = BlockPallas(k2, in_filters=64, out_filters=64, reps=2, strides=1,
                       start_with_relu=False, grow_first=False)
    x2 = jax.random.normal(kx2, (B, 64, H, W), jnp.float32)
    y2 = jax.block_until_ready(blk2(x2))
    r2 = blk2.reference(x2)
    assert y2.shape == (B, 64, H, W), y2.shape
    assert jnp.allclose(y2, r2, atol=1e-3, rtol=1e-3), \
        f"config2 mismatch, max abs err {float(jnp.max(jnp.abs(y2 - r2)))}"

    # Config 3: channel growth, stride 1 -> fused conv-skip + add inside the one kernel.
    blk3 = BlockPallas(k3, in_filters=32, out_filters=64, reps=1, strides=1,
                       start_with_relu=True, grow_first=True)
    x3 = jax.random.normal(kx3, (B, 32, H, W), jnp.float32)
    y3 = jax.block_until_ready(blk3(x3))
    r3 = blk3.reference(x3)
    assert y3.shape == (B, 64, H, W), y3.shape
    assert jnp.allclose(y3, r3, atol=1e-3, rtol=1e-3), \
        f"config3 mismatch, max abs err {float(jnp.max(jnp.abs(y3 - r3)))}"

    print("KERNEL_OK")
</pallas_src>

<mosaic_0001>
module attributes {stable_mosaic.version = 11 : i64} {
  func.func @_block_kernel(%arg0: i32, %arg1: memref<1x16x16x64xf32, #tpu.memory_space<vmem>>, %arg2: memref<9x64xf32, #tpu.memory_space<vmem>>, %arg3: memref<64x128xf32, #tpu.memory_space<vmem>>, %arg4: memref<1x128xf32, #tpu.memory_space<vmem>>, %arg5: memref<1x128xf32, #tpu.memory_space<vmem>>, %arg6: memref<9x128xf32, #tpu.memory_space<vmem>>, %arg7: memref<128x128xf32, #tpu.memory_space<vmem>>, %arg8: memref<1x128xf32, #tpu.memory_space<vmem>>, %arg9: memref<1x128xf32, #tpu.memory_space<vmem>>, %arg10: memref<1x16x16x128xf32, #tpu.memory_space<vmem>>) attributes {dimension_semantics = [#tpu.dimension_semantics<parallel>], iteration_bounds = array<i64: 2>, scalar_prefetch = 0 : i64, scratch_operands = 0 : i64, tpu.core_type = #tpu.core_type<tc>, window_params = [{transform_indices = @transform_0, window_bounds = array<i64: 1, 16, 16, 64>}, {pipeline_mode = #tpu.pipeline_mode<synchronous>, transform_indices = @transform_1, window_bounds = array<i64: 9, 64>}, {pipeline_mode = #tpu.pipeline_mode<synchronous>, transform_indices = @transform_2, window_bounds = array<i64: 64, 128>}, {pipeline_mode = #tpu.pipeline_mode<synchronous>, transform_indices = @transform_3, window_bounds = array<i64: 1, 128>}, {pipeline_mode = #tpu.pipeline_mode<synchronous>, transform_indices = @transform_4, window_bounds = array<i64: 1, 128>}, {pipeline_mode = #tpu.pipeline_mode<synchronous>, transform_indices = @transform_5, window_bounds = array<i64: 9, 128>}, {pipeline_mode = #tpu.pipeline_mode<synchronous>, transform_indices = @transform_6, window_bounds = array<i64: 128, 128>}, {pipeline_mode = #tpu.pipeline_mode<synchronous>, transform_indices = @transform_7, window_bounds = array<i64: 1, 128>}, {pipeline_mode = #tpu.pipeline_mode<synchronous>, transform_indices = @transform_8, window_bounds = array<i64: 1, 128>}, {transform_indices = @transform_9, window_bounds = array<i64: 1, 16, 16, 128>}]} {
    %c0 = arith.constant 0 : index
    %c0_0 = arith.constant 0 : index
    %c0_1 = arith.constant 0 : index
    %c0_2 = arith.constant 0 : index
    %0 = vector.load %arg1[%c0, %c0_0, %c0_1, %c0_2] : memref<1x16x16x64xf32, #tpu.memory_space<vmem>>, vector<1x16x16x64xf32>
    %1 = vector.shape_cast %0 : vector<1x16x16x64xf32> to vector<16x16x64xf32>
    %cst = arith.constant 0.000000e+00 : f32
    %2 = vector.broadcast %cst : f32 to vector<16x16x64xf32>
    %3 = arith.maximumf %1, %2 : vector<16x16x64xf32>
    %cst_3 = arith.constant 0.000000e+00 : f32
    %4 = vector.broadcast %cst_3 : f32 to vector<1x16x64xf32>
    %5 = tpu.concatenate %4, %3, %4 in 0 : vector<1x16x64xf32>, vector<16x16x64xf32>, vector<1x16x64xf32> -> vector<18x16x64xf32>
    %cst_4 = arith.constant 0.000000e+00 : f32
    %6 = vector.broadcast %cst_4 : f32 to vector<18x1x64xf32>
    %7 = tpu.concatenate %6, %5, %6 in 1 : vector<18x1x64xf32>, vector<18x16x64xf32>, vector<18x1x64xf32> -> vector<18x18x64xf32>
    %c0_5 = arith.constant 0 : index
    %c0_6 = arith.constant 0 : index
    %8 = vector.load %arg2[%c0_5, %c0_6] : memref<9x64xf32, #tpu.memory_space<vmem>>, vector<9x64xf32>
    %9 = vector.extract_strided_slice %7 {offsets = [0, 0, 0], sizes = [16, 16, 64], strides = [1, 1, 1]} : vector<18x18x64xf32> to vector<16x16x64xf32>
    %10 = vector.extract_strided_slice %8 {offsets = [0, 0], sizes = [1, 64], strides = [1, 1]} : vector<9x64xf32> to vector<1x64xf32>
    %11 = vector.shape_cast %10 : vector<1x64xf32> to vector<1x1x64xf32>
    %12 = vector.broadcast %11 : vector<1x1x64xf32> to vector<16x16x64xf32>
    %13 = arith.mulf %9, %12 : vector<16x16x64xf32>
    %14 = vector.extract_strided_slice %7 {offsets = [0, 1, 0], sizes = [16, 16, 64], strides = [1, 1, 1]} : vector<18x18x64xf32> to vector<16x16x64xf32>
    %15 = vector.extract_strided_slice %8 {offsets = [1, 0], sizes = [1, 64], strides = [1, 1]} : vector<9x64xf32> to vector<1x64xf32>
    %16 = vector.shape_cast %15 : vector<1x64xf32> to vector<1x1x64xf32>
    %17 = vector.broadcast %16 : vector<1x1x64xf32> to vector<16x16x64xf32>
    %18 = arith.mulf %14, %17 : vector<16x16x64xf32>
    %19 = arith.addf %13, %18 : vector<16x16x64xf32>
    %20 = vector.extract_strided_slice %7 {offsets = [0, 2, 0], sizes = [16, 16, 64], strides = [1, 1, 1]} : vector<18x18x64xf32> to vector<16x16x64xf32>
    %21 = vector.extract_strided_slice %8 {offsets = [2, 0], sizes = [1, 64], strides = [1, 1]} : vector<9x64xf32> to vector<1x64xf32>
    %22 = vector.shape_cast %21 : vector<1x64xf32> to vector<1x1x64xf32>
    %23 = vector.broadcast %22 : vector<1x1x64xf32> to vector<16x16x64xf32>
    %24 = arith.mulf %20, %23 : vector<16x16x64xf32>
    %25 = arith.addf %19, %24 : vector<16x16x64xf32>
    %26 = vector.extract_strided_slice %7 {offsets = [1, 0, 0], sizes = [16, 16, 64], strides = [1, 1, 1]} : vector<18x18x64xf32> to vector<16x16x64xf32>
    %27 = vector.extract_strided_slice %8 {offsets = [3, 0], sizes = [1, 64], strides = [1, 1]} : vector<9x64xf32> to vector<1x64xf32>
    %28 = vector.shape_cast %27 : vector<1x64xf32> to vector<1x1x64xf32>
    %29 = vector.broadcast %28 : vector<1x1x64xf32> to vector<16x16x64xf32>
    %30 = arith.mulf %26, %29 : vector<16x16x64xf32>
    %31 = arith.addf %25, %30 : vector<16x16x64xf32>
    %32 = vector.extract_strided_slice %7 {offsets = [1, 1, 0], sizes = [16, 16, 64], strides = [1, 1, 1]} : vector<18x18x64xf32> to vector<16x16x64xf32>
    %33 = vector.extract_strided_slice %8 {offsets = [4, 0], sizes = [1, 64], strides = [1, 1]} : vector<9x64xf32> to vector<1x64xf32>
    %34 = vector.shape_cast %33 : vector<1x64xf32> to vector<1x1x64xf32>
    %35 = vector.broadcast %34 : vector<1x1x64xf32> to vector<16x16x64xf32>
    %36 = arith.mulf %32, %35 : vector<16x16x64xf32>
    %37 = arith.addf %31, %36 : vector<16x16x64xf32>
    %38 = vector.extract_strided_slice %7 {offsets = [1, 2, 0], sizes = [16, 16, 64], strides = [1, 1, 1]} : vector<18x18x64xf32> to vector<16x16x64xf32>
    %39 = vector.extract_strided_slice %8 {offsets = [5, 0], sizes = [1, 64], strides = [1, 1]} : vector<9x64xf32> to vector<1x64xf32>
    %40 = vector.shape_cast %39 : vector<1x64xf32> to vector<1x1x64xf32>
    %41 = vector.broadcast %40 : vector<1x1x64xf32> to vector<16x16x64xf32>
    %42 = arith.mulf %38, %41 : vector<16x16x64xf32>
    %43 = arith.addf %37, %42 : vector<16x16x64xf32>
    %44 = vector.extract_strided_slice %7 {offsets = [2, 0, 0], sizes = [16, 16, 64], strides = [1, 1, 1]} : vector<18x18x64xf32> to vector<16x16x64xf32>
    %45 = vector.extract_strided_slice %8 {offsets = [6, 0], sizes = [1, 64], strides = [1, 1]} : vector<9x64xf32> to vector<1x64xf32>
    %46 = vector.shape_cast %45 : vector<1x64xf32> to vector<1x1x64xf32>
    %47 = vector.broadcast %46 : vector<1x1x64xf32> to vector<16x16x64xf32>
    %48 = arith.mulf %44, %47 : vector<16x16x64xf32>
    %49 = arith.addf %43, %48 : vector<16x16x64xf32>
    %50 = vector.extract_strided_slice %7 {offsets = [2, 1, 0], sizes = [16, 16, 64], strides = [1, 1, 1]} : vector<18x18x64xf32> to vector<16x16x64xf32>
    %51 = vector.extract_strided_slice %8 {offsets = [7, 0], sizes = [1, 64], strides = [1, 1]} : vector<9x64xf32> to vector<1x64xf32>
    %52 = vector.shape_cast %51 : vector<1x64xf32> to vector<1x1x64xf32>
    %53 = vector.broadcast %52 : vector<1x1x64xf32> to vector<16x16x64xf32>
    %54 = arith.mulf %50, %53 : vector<16x16x64xf32>
    %55 = arith.addf %49, %54 : vector<16x16x64xf32>
    %56 = vector.extract_strided_slice %7 {offsets = [2, 2, 0], sizes = [16, 16, 64], strides = [1, 1, 1]} : vector<18x18x64xf32> to vector<16x16x64xf32>
    %57 = vector.extract_strided_slice %8 {offsets = [8, 0], sizes = [1, 64], strides = [1, 1]} : vector<9x64xf32> to vector<1x64xf32>
    %58 = vector.shape_cast %57 : vector<1x64xf32> to vector<1x1x64xf32>
    %59 = vector.broadcast %58 : vector<1x1x64xf32> to vector<16x16x64xf32>
    %60 = arith.mulf %56, %59 : vector<16x16x64xf32>
    %61 = arith.addf %55, %60 : vector<16x16x64xf32>
    %62 = vector.shape_cast %61 : vector<16x16x64xf32> to vector<256x64xf32>
    %c0_7 = arith.constant 0 : index
    %c0_8 = arith.constant 0 : index
    %63 = vector.load %arg3[%c0_7, %c0_8] : memref<64x128xf32, #tpu.memory_space<vmem>>, vector<64x128xf32>
    %cst_9 = arith.constant dense<0.000000e+00> : vector<256x128xf32>
    %64 = tpu.matmul %62, %63, %cst_9 {dimension_numbers = #tpu.dot_dimension_numbers<[1], [0], [0], [1], [0, 0, 1, 1], [], []>} : vector<256x64xf32>, vector<64x128xf32>, vector<256x128xf32> -> vector<256x128xf32>
    %c0_10 = arith.constant 0 : index
    %c0_11 = arith.constant 0 : index
    %65 = vector.load %arg4[%c0_10, %c0_11] : memref<1x128xf32, #tpu.memory_space<vmem>>, vector<1x128xf32>
    %66 = vector.broadcast %65 : vector<1x128xf32> to vector<256x128xf32>
    %67 = arith.mulf %64, %66 : vector<256x128xf32>
    %c0_12 = arith.constant 0 : index
    %c0_13 = arith.constant 0 : index
    %68 = vector.load %arg5[%c0_12, %c0_13] : memref<1x128xf32, #tpu.memory_space<vmem>>, vector<1x128xf32>
    %69 = vector.broadcast %68 : vector<1x128xf32> to vector<256x128xf32>
    %70 = arith.addf %67, %69 : vector<256x128xf32>
    %71 = vector.shape_cast %70 : vector<256x128xf32> to vector<16x16x128xf32>
    %cst_14 = arith.constant 0.000000e+00 : f32
    %72 = vector.broadcast %cst_14 : f32 to vector<16x16x128xf32>
    %73 = arith.maximumf %71, %72 : vector<16x16x128xf32>
    %cst_15 = arith.constant 0.000000e+00 : f32
    %74 = vector.broadcast %cst_15 : f32 to vector<1x16x128xf32>
    %75 = tpu.concatenate %74, %73, %74 in 0 : vector<1x16x128xf32>, vector<16x16x128xf32>, vector<1x16x128xf32> -> vector<18x16x128xf32>
    %cst_16 = arith.constant 0.000000e+00 : f32
    %76 = vector.broadcast %cst_16 : f32 to vector<18x1x128xf32>
    %77 = tpu.concatenate %76, %75, %76 in 1 : vector<18x1x128xf32>, vector<18x16x128xf32>, vector<18x1x128xf32> -> vector<18x18x128xf32>
    %c0_17 = arith.constant 0 : index
    %c0_18 = arith.constant 0 : index
    %78 = vector.load %arg6[%c0_17, %c0_18] : memref<9x128xf32, #tpu.memory_space<vmem>>, vector<9x128xf32>
    %79 = vector.extract_strided_slice %77 {offsets = [0, 0, 0], sizes = [16, 16, 128], strides = [1, 1, 1]} : vector<18x18x128xf32> to vector<16x16x128xf32>
    %80 = vector.extract_strided_slice %78 {offsets = [0, 0], sizes = [1, 128], strides = [1, 1]} : vector<9x128xf32> to vector<1x128xf32>
    %81 = vector.shape_cast %80 : vector<1x128xf32> to vector<1x1x128xf32>
    %82 = vector.broadcast %81 : vector<1x1x128xf32> to vector<16x16x128xf32>
    %83 = arith.mulf %79, %82 : vector<16x16x128xf32>
    %84 = vector.extract_strided_slice %77 {offsets = [0, 1, 0], sizes = [16, 16, 128], strides = [1, 1, 1]} : vector<18x18x128xf32> to vector<16x16x128xf32>
    %85 = vector.extract_strided_slice %78 {offsets = [1, 0], sizes = [1, 128], strides = [1, 1]} : vector<9x128xf32> to vector<1x128xf32>
    %86 = vector.shape_cast %85 : vector<1x128xf32> to vector<1x1x128xf32>
    %87 = vector.broadcast %86 : vector<1x1x128xf32> to vector<16x16x128xf32>
    %88 = arith.mulf %84, %87 : vector<16x16x128xf32>
    %89 = arith.addf %83, %88 : vector<16x16x128xf32>
    %90 = vector.extract_strided_slice %77 {offsets = [0, 2, 0], sizes = [16, 16, 128], strides = [1, 1, 1]} : vector<18x18x128xf32> to vector<16x16x128xf32>
    %91 = vector.extract_strided_slice %78 {offsets = [2, 0], sizes = [1, 128], strides = [1, 1]} : vector<9x128xf32> to vector<1x128xf32>
    %92 = vector.shape_cast %91 : vector<1x128xf32> to vector<1x1x128xf32>
    %93 = vector.broadcast %92 : vector<1x1x128xf32> to vector<16x16x128xf32>
    %94 = arith.mulf %90, %93 : vector<16x16x128xf32>
    %95 = arith.addf %89, %94 : vector<16x16x128xf32>
    %96 = vector.extract_strided_slice %77 {offsets = [1, 0, 0], sizes = [16, 16, 128], strides = [1, 1, 1]} : vector<18x18x128xf32> to vector<16x16x128xf32>
    %97 = vector.extract_strided_slice %78 {offsets = [3, 0], sizes = [1, 128], strides = [1, 1]} : vector<9x128xf32> to vector<1x128xf32>
    %98 = vector.shape_cast %97 : vector<1x128xf32> to vector<1x1x128xf32>
    %99 = vector.broadcast %98 : vector<1x1x128xf32> to vector<16x16x128xf32>
    %100 = arith.mulf %96, %99 : vector<16x16x128xf32>
    %101 = arith.addf %95, %100 : vector<16x16x128xf32>
    %102 = vector.extract_strided_slice %77 {offsets = [1, 1, 0], sizes = [16, 16, 128], strides = [1, 1, 1]} : vector<18x18x128xf32> to vector<16x16x128xf32>
    %103 = vector.extract_strided_slice %78 {offsets = [4, 0], sizes = [1, 128], strides = [1, 1]} : vector<9x128xf32> to vector<1x128xf32>
    %104 = vector.shape_cast %103 : vector<1x128xf32> to vector<1x1x128xf32>
    %105 = vector.broadcast %104 : vector<1x1x128xf32> to vector<16x16x128xf32>
    %106 = arith.mulf %102, %105 : vector<16x16x128xf32>
    %107 = arith.addf %101, %106 : vector<16x16x128xf32>
    %108 = vector.extract_strided_slice %77 {offsets = [1, 2, 0], sizes = [16, 16, 128], strides = [1, 1, 1]} : vector<18x18x128xf32> to vector<16x16x128xf32>
    %109 = vector.extract_strided_slice %78 {offsets = [5, 0], sizes = [1, 128], strides = [1, 1]} : vector<9x128xf32> to vector<1x128xf32>
    %110 = vector.shape_cast %109 : vector<1x128xf32> to vector<1x1x128xf32>
    %111 = vector.broadcast %110 : vector<1x1x128xf32> to vector<16x16x128xf32>
    %112 = arith.mulf %108, %111 : vector<16x16x128xf32>
    %113 = arith.addf %107, %112 : vector<16x16x128xf32>
    %114 = vector.extract_strided_slice %77 {offsets = [2, 0, 0], sizes = [16, 16, 128], strides = [1, 1, 1]} : vector<18x18x128xf32> to vector<16x16x128xf32>
    %115 = vector.extract_strided_slice %78 {offsets = [6, 0], sizes = [1, 128], strides = [1, 1]} : vector<9x128xf32> to vector<1x128xf32>
    %116 = vector.shape_cast %115 : vector<1x128xf32> to vector<1x1x128xf32>
    %117 = vector.broadcast %116 : vector<1x1x128xf32> to vector<16x16x128xf32>
    %118 = arith.mulf %114, %117 : vector<16x16x128xf32>
    %119 = arith.addf %113, %118 : vector<16x16x128xf32>
    %120 = vector.extract_strided_slice %77 {offsets = [2, 1, 0], sizes = [16, 16, 128], strides = [1, 1, 1]} : vector<18x18x128xf32> to vector<16x16x128xf32>
    %121 = vector.extract_strided_slice %78 {offsets = [7, 0], sizes = [1, 128], strides = [1, 1]} : vector<9x128xf32> to vector<1x128xf32>
    %122 = vector.shape_cast %121 : vector<1x128xf32> to vector<1x1x128xf32>
    %123 = vector.broadcast %122 : vector<1x1x128xf32> to vector<16x16x128xf32>
    %124 = arith.mulf %120, %123 : vector<16x16x128xf32>
    %125 = arith.addf %119, %124 : vector<16x16x128xf32>
    %126 = vector.extract_strided_slice %77 {offsets = [2, 2, 0], sizes = [16, 16, 128], strides = [1, 1, 1]} : vector<18x18x128xf32> to vector<16x16x128xf32>
    %127 = vector.extract_strided_slice %78 {offsets = [8, 0], sizes = [1, 128], strides = [1, 1]} : vector<9x128xf32> to vector<1x128xf32>
    %128 = vector.shape_cast %127 : vector<1x128xf32> to vector<1x1x128xf32>
    %129 = vector.broadcast %128 : vector<1x1x128xf32> to vector<16x16x128xf32>
    %130 = arith.mulf %126, %129 : vector<16x16x128xf32>
    %131 = arith.addf %125, %130 : vector<16x16x128xf32>
    %132 = vector.shape_cast %131 : vector<16x16x128xf32> to vector<256x128xf32>
    %c0_19 = arith.constant 0 : index
    %c0_20 = arith.constant 0 : index
    %133 = vector.load %arg7[%c0_19, %c0_20] : memref<128x128xf32, #tpu.memory_space<vmem>>, vector<128x128xf32>
    %cst_21 = arith.constant dense<0.000000e+00> : vector<256x128xf32>
    %134 = tpu.matmul %132, %133, %cst_21 {dimension_numbers = #tpu.dot_dimension_numbers<[1], [0], [0], [1], [0, 0, 1, 1], [], []>} : vector<256x128xf32>, vector<128x128xf32>, vector<256x128xf32> -> vector<256x128xf32>
    %c0_22 = arith.constant 0 : index
    %c0_23 = arith.constant 0 : index
    %135 = vector.load %arg8[%c0_22, %c0_23] : memref<1x128xf32, #tpu.memory_space<vmem>>, vector<1x128xf32>
    %136 = vector.broadcast %135 : vector<1x128xf32> to vector<256x128xf32>
    %137 = arith.mulf %134, %136 : vector<256x128xf32>
    %c0_24 = arith.constant 0 : index
    %c0_25 = arith.constant 0 : index
    %138 = vector.load %arg9[%c0_24, %c0_25] : memref<1x128xf32, #tpu.memory_space<vmem>>, vector<1x128xf32>
    %139 = vector.broadcast %138 : vector<1x128xf32> to vector<256x128xf32>
    %140 = arith.addf %137, %139 : vector<256x128xf32>
    %141 = vector.shape_cast %140 : vector<256x128xf32> to vector<16x16x128xf32>
    %cst_26 = arith.constant 0xFF800000 : f32
    %142 = vector.broadcast %cst_26 : f32 to vector<1x16x128xf32>
    %143 = vector.extract_strided_slice %141 {offsets = [1, 0, 0], sizes = [15, 16, 128], strides = [1, 1, 1]} : vector<16x16x128xf32> to vector<15x16x128xf32>
    %144 = tpu.concatenate %143, %142 in 0 : vector<15x16x128xf32>, vector<1x16x128xf32> -> vector<16x16x128xf32>
    %145 = vector.extract_strided_slice %141 {offsets = [0, 0, 0], sizes = [15, 16, 128], strides = [1, 1, 1]} : vector<16x16x128xf32> to vector<15x16x128xf32>
    %146 = tpu.concatenate %142, %145 in 0 : vector<1x16x128xf32>, vector<15x16x128xf32> -> vector<16x16x128xf32>
    %147 = arith.maximumf %144, %146 : vector<16x16x128xf32>
    %148 = arith.maximumf %141, %147 : vector<16x16x128xf32>
    %cst_27 = arith.constant 0xFF800000 : f32
    %149 = vector.broadcast %cst_27 : f32 to vector<16x1x128xf32>
    %150 = vector.extract_strided_slice %148 {offsets = [0, 1, 0], sizes = [16, 15, 128], strides = [1, 1, 1]} : vector<16x16x128xf32> to vector<16x15x128xf32>
    %151 = tpu.concatenate %150, %149 in 1 : vector<16x15x128xf32>, vector<16x1x128xf32> -> vector<16x16x128xf32>
    %152 = vector.extract_strided_slice %148 {offsets = [0, 0, 0], sizes = [16, 15, 128], strides = [1, 1, 1]} : vector<16x16x128xf32> to vector<16x15x128xf32>
    %153 = tpu.concatenate %149, %152 in 1 : vector<16x1x128xf32>, vector<16x15x128xf32> -> vector<16x16x128xf32>
    %154 = arith.maximumf %151, %153 : vector<16x16x128xf32>
    %155 = arith.maximumf %148, %154 : vector<16x16x128xf32>
    %c0_28 = arith.constant 0 : index
    %c0_29 = arith.constant 0 : index
    %c0_30 = arith.constant 0 : index
    %c0_31 = arith.constant 0 : index
    %156 = vector.load %arg10[%c0_28, %c0_29, %c0_30, %c0_31] : memref<1x16x16x128xf32, #tpu.memory_space<vmem>>, vector<1x16x16x128xf32>
    %157 = vector.shape_cast %156 : vector<1x16x16x128xf32> to vector<16x16x128xf32>
    %158 = vector.shape_cast %155 : vector<16x16x128xf32> to vector<1x16x16x128xf32>
    tpu.vector_store %arg10[%c0_28, %c0_29, %c0_30, %c0_31], %158 {strides = array<i32>} : memref<1x16x16x128xf32, #tpu.memory_space<vmem>>, vector<1x16x16x128xf32>,
    return
  }
  func.func @transform_0(%arg0: i32) -> (i32, i32, i32, i32) {
    %c0_i32 = arith.constant 0 : i32
    %c0_i32_0 = arith.constant 0 : i32
    %c0_i32_1 = arith.constant 0 : i32
    %c0_i32_2 = arith.constant 0 : i32
    return %arg0, %c0_i32, %c0_i32_0, %c0_i32_1 : i32, i32, i32, i32
  }
  func.func @transform_1(%arg0: i32) -> (i32, i32) {
    %c0_i32 = arith.constant 0 : i32
    %c0_i32_0 = arith.constant 0 : i32
    %c0_i32_1 = arith.constant 0 : i32
    return %c0_i32, %c0_i32_0 : i32, i32
  }
  func.func @transform_2(%arg0: i32) -> (i32, i32) {
    %c0_i32 = arith.constant 0 : i32
    %c0_i32_0 = arith.constant 0 : i32
    %c0_i32_1 = arith.constant 0 : i32
    return %c0_i32, %c0_i32_0 : i32, i32
  }
  func.func @transform_3(%arg0: i32) -> (i32, i32) {
    %c0_i32 = arith.constant 0 : i32
    %c0_i32_0 = arith.constant 0 : i32
    %c0_i32_1 = arith.constant 0 : i32
    return %c0_i32, %c0_i32_0 : i32, i32
  }
  func.func @transform_4(%arg0: i32) -> (i32, i32) {
    %c0_i32 = arith.constant 0 : i32
    %c0_i32_0 = arith.constant 0 : i32
    %c0_i32_1 = arith.constant 0 : i32
    return %c0_i32, %c0_i32_0 : i32, i32
  }
  func.func @transform_5(%arg0: i32) -> (i32, i32) {
    %c0_i32 = arith.constant 0 : i32
    %c0_i32_0 = arith.constant 0 : i32
    %c0_i32_1 = arith.constant 0 : i32
    return %c0_i32, %c0_i32_0 : i32, i32
  }
  func.func @transform_6(%arg0: i32) -> (i32, i32) {
    %c0_i32 = arith.constant 0 : i32
    %c0_i32_0 = arith.constant 0 : i32
    %c0_i32_1 = arith.constant 0 : i32
    return %c0_i32, %c0_i32_0 : i32, i32
  }
  func.func @transform_7(%arg0: i32) -> (i32, i32) {
    %c0_i32 = arith.constant 0 : i32
    %c0_i32_0 = arith.constant 0 : i32
    %c0_i32_1 = arith.constant 0 : i32
    return %c0_i32, %c0_i32_0 : i32, i32
  }
  func.func @transform_8(%arg0: i32) -> (i32, i32) {
    %c0_i32 = arith.constant 0 : i32
    %c0_i32_0 = arith.constant 0 : i32
    %c0_i32_1 = arith.constant 0 : i32
    return %c0_i32, %c0_i32_0 : i32, i32
  }
  func.func @transform_9(%arg0: i32) -> (i32, i32, i32, i32) {
    %c0_i32 = arith.constant 0 : i32
    %c0_i32_0 = arith.constant 0 : i32
    %c0_i32_1 = arith.constant 0 : i32
    %c0_i32_2 = arith.constant 0 : i32
    return %arg0, %c0_i32, %c0_i32_0, %c0_i32_1 : i32, i32, i32, i32
  }
}

</mosaic_0001>

<llo_original>
// kernel: tpu_custom_call.1
$region0: #{tpu_custom_call.1}
  #allocation0 [shape = 'u32[]', space=smem, size = 0x4, offset = 0x4, fixed_abs, tag = 'smem constant byte address 0x4 - core index']
  #allocation1 [shape = 'u32[72,128]{1,0:T(1,128)}', space=vmem, size = 0x9000, scoped, tag = 'internal scratch']
  %s0 = inlined_call_operand.hbm [shape: f32[2,16,16,64], index: 0, kind: input, shape index: {}]
  %s1 = inlined_call_operand.hbm [shape: f32[9,64], index: 1, kind: input, shape index: {}]
  %s2 = inlined_call_operand.hbm [shape: f32[64,128], index: 2, kind: input, shape index: {}]
  %s3 = inlined_call_operand.vmem [shape: f32[1,128], index: 3, kind: input, shape index: {}]
  %s4 = inlined_call_operand.vmem [shape: f32[1,128], index: 4, kind: input, shape index: {}]
  %s5 = inlined_call_operand.hbm [shape: f32[9,128], index: 5, kind: input, shape index: {}]
  %s6 = inlined_call_operand.hbm [shape: f32[128,128], index: 6, kind: input, shape index: {}]
  %s7 = inlined_call_operand.vmem [shape: f32[1,128], index: 7, kind: input, shape index: {}]
  %s8 = inlined_call_operand.vmem [shape: f32[1,128], index: 8, kind: input, shape index: {}]
  %s9 = inlined_call_operand.hbm [shape: f32[2,16,16,128], index: 9, kind: output, shape index: {}]
  %s10 = sld [smem:[#allocation0]]
  $region89: #{tpu_custom_call.1} parent=0
    _
  %s12 = ssub.s32 1, %s10
  %s13 = scalar_select 0, %s12, %s10
  $region1: #{tpu_custom_call.1} parent=0
    #allocation2 [shape = 'u8[262144]{0}', space=vmem, size = 0x40000, scoped, tag = 'input window, operand 0']
    #allocation3 [shape = 's32[2]{0}', space=sflag, size = 0x8, scoped, tag = 'scoped memory for tpu_custom_call.1']
    #allocation4 [shape = 's32[2]{0}', space=sflag, size = 0x8, scoped, tag = 'scoped memory for tpu_custom_call.1']
    #allocation5 [shape = 'u8[8192]{0}', space=vmem, size = 0x2000, scoped, tag = 'input window, operand 1, single buffered']
    #allocation6 [shape = 's32[1]{0}', space=sflag, size = 0x4, scoped, tag = 'scoped memory for tpu_custom_call.1']
    #allocation7 [shape = 'u8[32768]{0}', space=vmem, size = 0x8000, scoped, tag = 'input window, operand 2, single buffered']
    #allocation8 [shape = 'u8[8192]{0}', space=vmem, size = 0x2000, scoped, tag = 'input window, operand 5, single buffered']
    #allocation9 [shape = 's32[1]{0}', space=sflag, size = 0x4, scoped, tag = 'scoped memory for tpu_custom_call.1']
    #allocation10 [shape = 'u8[65536]{0}', space=vmem, size = 0x10000, scoped, tag = 'input window, operand 6, single buffered']
    #allocation11 [shape = 'u8[262144]{0}', space=vmem, size = 0x40000, scoped, tag = 'output window, operand 0']
    %14 = vsyncpa [#allocation3], 0
    %s15 = scalar_lea.sflag [#allocation3], 1
    %16 = vsyncpa %s15, 0
    %17 = vsyncpa [#allocation6], 0
    %18 = vsyncpa [#allocation9], 0
    %19 = vsyncpa [#allocation4], 0
    %s20 = scalar_lea.sflag [#allocation4], 1
    %21 = vsyncpa %s20, 0
    loop: start=0, step=1, limit=4
    $region2: #{tpu_custom_call.1} parent=1 // loop_pre_header
      _
    $region3: #{tpu_custom_call.1} parent=1 // loop_header
      %s23 = sphi 0, %s27
      %p24 = scmp.ge.s32.totalorder %s23, 4
      %s33 = sphi 0, %s35
      %s36 = sphi 0, %s33
      %s37 = sphi 0, %s36
      %s53 = sphi 0, %s37
      %s57 = sphi 0, %s57
      %s59 = sphi 0, %s57
      %s60 = sphi 0, %s59
      %s74 = sphi 0, %s60
      %s78 = sphi 0, %s78
      %s80 = sphi 0, %s78
      %s81 = sphi 0, %s80
      %s95 = sphi 0, %s81
      %s99 = sphi 0, %s99
      %s101 = sphi 0, %s99
      %s102 = sphi 0, %s101
      %s116 = sphi 0, %s102
      %s120 = sphi 0, %s120
      %s122 = sphi 0, %s120
      %s123 = sphi 0, %s122
      %s137 = sphi 0, %s123
      %s141 = sphi 0, %s141
      %s143 = sphi 0, %s141
      %s144 = sphi 0, %s143
      %s158 = sphi 0, %s144
      %s162 = sphi 0, %s162
      %s164 = sphi 0, %s162
      %s165 = sphi 0, %s164
      %s179 = sphi 0, %s165
      %s183 = sphi 0, %s183
      %s185 = sphi 0, %s183
      %s186 = sphi 0, %s185
      %s200 = sphi 0, %s186
      %s204 = sphi 0, %s204
      %s206 = sphi 0, %s204
      %s207 = sphi 0, %s206
      %s221 = sphi 0, %s207
      %s227 = sphi 0, %s229
      %s230 = sphi 0, %s227
      %s231 = sphi 0, %s230
      %s247 = sphi 0, %s231
    $region4: #{tpu_custom_call.1} parent=1 // loop_header_branch
      %26 = sbr.rel (%p24) target = $region8
    $region5: #{tpu_custom_call.1} parent=1 // loop_body
      %s28 = ssub.s32 %s23, 1
      %s29 = ssub.s32 %s23, 2
      %s30 = sadd.s32 %s23, 1
      %s31 = ssub.s32 %s23, %s30
      %p32 = scmp.eq.s32.totalorder %s31, 0
      %s34 = sadd.s32 %s33, 1
      %s35 = scalar_select %p32, %s33, %s34
      %p38 = pneg %p32
      %p39 = scmp.eq.s32.totalorder %s23, 1
      %p40 = por %p38, %p39
      %p41 = scmp.ne.s32.totalorder %s33, %s36
      %p42 = scmp.eq.s32.totalorder %s23, 0
      %p43 = por %p41, %p42
      %p44 = scmp.ne.s32.totalorder %s33, %s36
      %p45 = scmp.eq.s32.totalorder %s28, 1
      %p46 = por %p44, %p45
      %p47 = scmp.ne.s32.totalorder %s36, %s37
      %p48 = scmp.eq.s32.totalorder %s28, 0
      %p49 = por %p47, %p48
      %p50 = scmp.ne.s32.totalorder %s36, %s37
      %p51 = scmp.eq.s32.totalorder %s29, 1
      %p52 = por %p50, %p51
      %p54 = scmp.ne.s32.totalorder %s37, %s53
      %p55 = scmp.eq.s32.totalorder %s29, 0
      %p56 = por %p54, %p55
      %s58 = sadd.s32 %s57, 1
      %p61 = scmp.eq.s32.totalorder %s23, 1
      %p62 = scmp.ne.s32.totalorder %s57, %s59
      %p63 = scmp.eq.s32.totalorder %s23, 0
      %p64 = por %p62, %p63
      %p65 = scmp.ne.s32.totalorder %s57, %s59
      %p66 = scmp.eq.s32.totalorder %s28, 1
      %p67 = por %p65, %p66
      %p68 = scmp.ne.s32.totalorder %s59, %s60
      %p69 = scmp.eq.s32.totalorder %s28, 0
      %p70 = por %p68, %p69
      %p71 = scmp.ne.s32.totalorder %s59, %s60
      %p72 = scmp.eq.s32.totalorder %s29, 1
      %p73 = por %p71, %p72
      %p75 = scmp.ne.s32.totalorder %s60, %s74
      %p76 = scmp.eq.s32.totalorder %s29, 0
      %p77 = por %p75, %p76
      %s79 = sadd.s32 %s78, 1
      %p82 = scmp.eq.s32.totalorder %s23, 1
      %p83 = scmp.ne.s32.totalorder %s78, %s80
      %p84 = scmp.eq.s32.totalorder %s23, 0
      %p85 = por %p83, %p84
      %p86 = scmp.ne.s32.totalorder %s78, %s80
      %p87 = scmp.eq.s32.totalorder %s28, 1
      %p88 = por %p86, %p87
      %p89 = scmp.ne.s32.totalorder %s80, %s81
      %p90 = scmp.eq.s32.totalorder %s28, 0
      %p91 = por %p89, %p90
      %p92 = scmp.ne.s32.totalorder %s80, %s81
      %p93 = scmp.eq.s32.totalorder %s29, 1
      %p94 = por %p92, %p93
      %p96 = scmp.ne.s32.totalorder %s81, %s95
      %p97 = scmp.eq.s32.totalorder %s29, 0
      %p98 = por %p96, %p97
      %s100 = sadd.s32 %s99, 1
      %p103 = scmp.eq.s32.totalorder %s23, 1
      %p104 = scmp.ne.s32.totalorder %s99, %s101
      %p105 = scmp.eq.s32.totalorder %s23, 0
      %p106 = por %p104, %p105
      %p107 = scmp.ne.s32.totalorder %s99, %s101
      %p108 = scmp.eq.s32.totalorder %s28, 1
      %p109 = por %p107, %p108
      %p110 = scmp.ne.s32.totalorder %s101, %s102
      %p111 = scmp.eq.s32.totalorder %s28, 0
      %p112 = por %p110, %p111
      %p113 = scmp.ne.s32.totalorder %s101, %s102
      %p114 = scmp.eq.s32.totalorder %s29, 1
      %p115 = por %p113, %p114
      %p117 = scmp.ne.s32.totalorder %s102, %s116
      %p118 = scmp.eq.s32.totalorder %s29, 0
      %p119 = por %p117, %p118
      %s121 = sadd.s32 %s120, 1
      %p124 = scmp.eq.s32.totalorder %s23, 1
      %p125 = scmp.ne.s32.totalorder %s120, %s122
      %p126 = scmp.eq.s32.totalorder %s23, 0
      %p127 = por %p125, %p126
      %p128 = scmp.ne.s32.totalorder %s120, %s122
      %p129 = scmp.eq.s32.totalorder %s28, 1
      %p130 = por %p128, %p129
      %p131 = scmp.ne.s32.totalorder %s122, %s123
      %p132 = scmp.eq.s32.totalorder %s28, 0
      %p133 = por %p131, %p132
      %p134 = scmp.ne.s32.totalorder %s122, %s123
      %p135 = scmp.eq.s32.totalorder %s29, 1
      %p136 = por %p134, %p135
      %p138 = scmp.ne.s32.totalorder %s123, %s137
      %p139 = scmp.eq.s32.totalorder %s29, 0
      %p140 = por %p138, %p139
      %s142 = sadd.s32 %s141, 1
      %p145 = scmp.eq.s32.totalorder %s23, 1
      %p146 = scmp.ne.s32.totalorder %s141, %s143
      %p147 = scmp.eq.s32.totalorder %s23, 0
      %p148 = por %p146, %p147
      %p149 = scmp.ne.s32.totalorder %s141, %s143
      %p150 = scmp.eq.s32.totalorder %s28, 1
      %p151 = por %p149, %p150
      %p152 = scmp.ne.s32.totalorder %s143, %s144
      %p153 = scmp.eq.s32.totalorder %s28, 0
      %p154 = por %p152, %p153
      %p155 = scmp.ne.s32.totalorder %s143, %s144
      %p156 = scmp.eq.s32.totalorder %s29, 1
      %p157 = por %p155, %p156
      %p159 = scmp.ne.s32.totalorder %s144, %s158
      %p160 = scmp.eq.s32.totalorder %s29, 0
      %p161 = por %p159, %p160
      %s163 = sadd.s32 %s162, 1
      %p166 = scmp.eq.s32.totalorder %s23, 1
      %p167 = scmp.ne.s32.totalorder %s162, %s164
      %p168 = scmp.eq.s32.totalorder %s23, 0
      %p169 = por %p167, %p168
      %p170 = scmp.ne.s32.totalorder %s162, %s164
      %p171 = scmp.eq.s32.totalorder %s28, 1
      %p172 = por %p170, %p171
      %p173 = scmp.ne.s32.totalorder %s164, %s165
      %p174 = scmp.eq.s32.totalorder %s28, 0
      %p175 = por %p173, %p174
      %p176 = scmp.ne.s32.totalorder %s164, %s165
      %p177 = scmp.eq.s32.totalorder %s29, 1
      %p178 = por %p176, %p177
      %p180 = scmp.ne.s32.totalorder %s165, %s179
      %p181 = scmp.eq.s32.totalorder %s29, 0
      %p182 = por %p180, %p181
      %s184 = sadd.s32 %s183, 1
      %p187 = scmp.eq.s32.totalorder %s23, 1
      %p188 = scmp.ne.s32.totalorder %s183, %s185
      %p189 = scmp.eq.s32.totalorder %s23, 0
      %p190 = por %p188, %p189
      %p191 = scmp.ne.s32.totalorder %s183, %s185
      %p192 = scmp.eq.s32.totalorder %s28, 1
      %p193 = por %p191, %p192
      %p194 = scmp.ne.s32.totalorder %s185, %s186
      %p195 = scmp.eq.s32.totalorder %s28, 0
      %p196 = por %p194, %p195
      %p197 = scmp.ne.s32.totalorder %s185, %s186
      %p198 = scmp.eq.s32.totalorder %s29, 1
      %p199 = por %p197, %p198
      %p201 = scmp.ne.s32.totalorder %s186, %s200
      %p202 = scmp.eq.s32.totalorder %s29, 0
      %p203 = por %p201, %p202
      %s205 = sadd.s32 %s204, 1
      %p208 = scmp.eq.s32.totalorder %s23, 1
      %p209 = scmp.ne.s32.totalorder %s204, %s206
      %p210 = scmp.eq.s32.totalorder %s23, 0
      %p211 = por %p209, %p210
      %p212 = scmp.ne.s32.totalorder %s204, %s206
      %p213 = scmp.eq.s32.totalorder %s28, 1
      %p214 = por %p212, %p213
      %p215 = scmp.ne.s32.totalorder %s206, %s207
      %p216 = scmp.eq.s32.totalorder %s28, 0
      %p217 = por %p215, %p216
      %p218 = scmp.ne.s32.totalorder %s206, %s207
      %p219 = scmp.eq.s32.totalorder %s29, 1
      %p220 = por %p218, %p219
      %p222 = scmp.ne.s32.totalorder %s207, %s221
      %p223 = scmp.eq.s32.totalorder %s29, 0
      %p224 = por %p222, %p223
      %s225 = ssub.s32 %s23, %s30
      %p226 = scmp.eq.s32.totalorder %s225, 0
      %s228 = sadd.s32 %s227, 1
      %s229 = scalar_select %p226, %s227, %s228
      %p232 = pneg %p226
      %p233 = scmp.eq.s32.totalorder %s23, 1
      %p234 = por %p232, %p233
      %p235 = scmp.ne.s32.totalorder %s227, %s230
      %p236 = scmp.eq.s32.totalorder %s23, 0
      %p237 = por %p235, %p236
      %p238 = scmp.ne.s32.totalorder %s227, %s230
      %p239 = scmp.eq.s32.totalorder %s28, 1
      %p240 = por %p238, %p239
      %p241 = scmp.ne.s32.totalorder %s230, %s231
      %p242 = scmp.eq.s32.totalorder %s28, 0
      %p243 = por %p241, %p242
      %p244 = scmp.ne.s32.totalorder %s230, %s231
      %p245 = scmp.eq.s32.totalorder %s29, 1
      %p246 = por %p244, %p245
      %p248 = scmp.ne.s32.totalorder %s231, %s247
      %p249 = scmp.eq.s32.totalorder %s29, 0
      %p250 = por %p248, %p249
      %p251 = scmp.le.s32.totalorder 1, %s23
      %p252 = scmp.lt.s32.totalorder %s23, 3
      %p253 = pnand %p251, %p252
      %p254 = pneg %p253
      // Predicated region
      $region9: #{tpu_custom_call.1} parent=5 // pred_check
        _
      $region10: #{tpu_custom_call.1} parent=5 // pred_check_branch
        %256 = sbr.rel (%p253) target = $region12
      $region11: #{tpu_custom_call.1} parent=5 // pred_region
        %s257 = ssub.s32 %s23, 1
        // Predicated region
        $region13: #{tpu_custom_call.1} parent=11 // pred_check
          %p258 = pneg %p70
        $region14: #{tpu_custom_call.1} parent=11 // pred_check_branch
          %260 = sbr.rel (%p258) target = $region16
        $region15: #{tpu_custom_call.1} parent=11 // pred_region
          %262 = vsyncadd [#allocation6], 0
          %s263 = sshll.u32 %s1, 4
          %s264 = int_to_ptr.hbm [resolvable:$true] %s263
          %s265 = sshll.u32 [#allocation5], 4
          %s266 = int_to_ptr.vmem [resolvable:$true] %s265
          %271 = dma.hbm_to_vmem [thread:$0]  %s264, 256, %s266, [#allocation6], 128, 128, 8
        $region16: #{tpu_custom_call.1} parent=11 // pred_fallthru
          _
        // Predicated region
        $region17: #{tpu_custom_call.1} parent=11 // pred_check
          %p272 = pneg %p91
        $region18: #{tpu_custom_call.1} parent=11 // pred_check_branch
          %274 = sbr.rel (%p272) target = $region20
        $region19: #{tpu_custom_call.1} parent=11 // pred_region
          %276 = vsyncadd [#allocation6], 0
          %s277 = sshll.u32 %s2, 4
          %s278 = int_to_ptr.hbm [resolvable:$true] %s277
          %s279 = sshll.u32 [#allocation7], 4
          %s280 = int_to_ptr.vmem [resolvable:$true] %s279
          %285 = dma.hbm_to_vmem [thread:$0]  %s278, 1024, %s280, [#allocation6], 128, 128, 8
        $region20: #{tpu_custom_call.1} parent=11 // pred_fallthru
          _
        // Predicated region
        $region21: #{tpu_custom_call.1} parent=11 // pred_check
          %p286 = pneg %p112
        $region22: #{tpu_custom_call.1} parent=11 // pred_check_branch
          %288 = sbr.rel (%p286) target = $region24
        $region23: #{tpu_custom_call.1} parent=11 // pred_region
          _
        $region24: #{tpu_custom_call.1} parent=11 // pred_fallthru
          _
        // Predicated region
        $region25: #{tpu_custom_call.1} parent=11 // pred_check
          %p289 = pneg %p133
        $region26: #{tpu_custom_call.1} parent=11 // pred_check_branch
          %291 = sbr.rel (%p289) target = $region28
        $region27: #{tpu_custom_call.1} parent=11 // pred_region
          _
        $region28: #{tpu_custom_call.1} parent=11 // pred_fallthru
          _
        // Predicated region
        $region29: #{tpu_custom_call.1} parent=11 // pred_check
          %p292 = pneg %p154
        $region30: #{tpu_custom_call.1} parent=11 // pred_check_branch
          %294 = sbr.rel (%p292) target = $region32
        $region31: #{tpu_custom_call.1} parent=11 // pred_region
          %296 = vsyncadd [#allocation9], 0
          %s297 = sshll.u32 %s5, 4
          %s298 = int_to_ptr.hbm [resolvable:$true] %s297
          %s299 = sshll.u32 [#allocation8], 4
          %s300 = int_to_ptr.vmem [resolvable:$true] %s299
          %305 = dma.hbm_to_vmem [thread:$0]  %s298, 256, %s300, [#allocation9], 128, 128, 8
        $region32: #{tpu_custom_call.1} parent=11 // pred_fallthru
          _
        // Predicated region
        $region33: #{tpu_custom_call.1} parent=11 // pred_check
          %p306 = pneg %p175
        $region34: #{tpu_custom_call.1} parent=11 // pred_check_branch
          %308 = sbr.rel (%p306) target = $region36
        $region35: #{tpu_custom_call.1} parent=11 // pred_region
          %310 = vsyncadd [#allocation9], 0
          %s311 = sshll.u32 %s6, 4
          %s312 = int_to_ptr.hbm [resolvable:$true] %s311
          %s313 = sshll.u32 [#allocation10], 4
          %s314 = int_to_ptr.vmem [resolvable:$true] %s313
          %319 = dma.hbm_to_vmem [thread:$0]  %s312, 2048, %s314, [#allocation9], 128, 128, 8
        $region36: #{tpu_custom_call.1} parent=11 // pred_fallthru
          _
        // Predicated region
        $region37: #{tpu_custom_call.1} parent=11 // pred_check
          %p320 = pneg %p196
        $region38: #{tpu_custom_call.1} parent=11 // pred_check_branch
          %322 = sbr.rel (%p320) target = $region40
        $region39: #{tpu_custom_call.1} parent=11 // pred_region
          _
        $region40: #{tpu_custom_call.1} parent=11 // pred_fallthru
          _
        // Predicated region
        $region41: #{tpu_custom_call.1} parent=11 // pred_check
          %p323 = pneg %p217
        $region42: #{tpu_custom_call.1} parent=11 // pred_check_branch
          %325 = sbr.rel (%p323) target = $region44
        $region43: #{tpu_custom_call.1} parent=11 // pred_region
          _
        $region44: #{tpu_custom_call.1} parent=11 // pred_fallthru
          _
      $region12: #{tpu_custom_call.1} parent=5 // pred_fallthru
        _
      %p326 = scmp.lt.s32.totalorder %s23, 2
      // Predicated region
      $region45: #{tpu_custom_call.1} parent=5 // pred_check
        %p327 = pneg %p326
      $region46: #{tpu_custom_call.1} parent=5 // pred_check_branch
        %329 = sbr.rel (%p327) target = $region48
      $region47: #{tpu_custom_call.1} parent=5 // pred_region
        // Predicated region
        $region49: #{tpu_custom_call.1} parent=47 // pred_check
          %p330 = pneg %p43
        $region50: #{tpu_custom_call.1} parent=47 // pred_check_branch
          %332 = sbr.rel (%p330) target = $region52
        $region51: #{tpu_custom_call.1} parent=47 // pred_region
          %s333 = sand.u32 %s33, 1
          %s334 = scalar_lea.sflag [#allocation3], %s333
          %s335 = sand.u32 %s33, 1
          %s336 = smul.addr %s335, 256
          %s337 = scalar_lea.vmem [#allocation2], %s336
          %339 = vsyncadd %s334, 0
          %s340 = smul.addr %s23, 32
          %s341 = smul.addr %s340, 8
          %s342 = scalar_lea.hbm %s0, %s341
          %s343 = sshll.u32 %s342, 4
          %s344 = int_to_ptr.hbm [resolvable:$true] %s343
          %s345 = sshll.u32 %s337, 4
          %s346 = int_to_ptr.vmem [resolvable:$true] %s345
          %351 = dma.hbm_to_vmem [thread:$0]  %s344, 4096, %s346, %s334, 128, 128, 8
        $region52: #{tpu_custom_call.1} parent=47 // pred_fallthru
          _
      $region48: #{tpu_custom_call.1} parent=5 // pred_fallthru
        _
      %p352 = scmp.le.s32.totalorder 1, %s23
      %p353 = scmp.lt.s32.totalorder %s23, 3
      %p354 = pnand %p352, %p353
      %p355 = pneg %p354
      // Predicated region
      $region53: #{tpu_custom_call.1} parent=5 // pred_check
        _
      $region54: #{tpu_custom_call.1} parent=5 // pred_check_branch
        %357 = sbr.rel (%p354) target = $region56
      $region55: #{tpu_custom_call.1} parent=5 // pred_region
        %s358 = ssub.s32 %s23, 1
        %s359 = sand.u32 %s36, 1
        %s360 = scalar_lea.sflag [#allocation3], %s359
        %s361 = sand.u32 %s36, 1
        %s362 = smul.addr %s361, 256
        %s363 = scalar_lea.vmem [#allocation2], %s362
        // Predicated region
        $region57: #{tpu_custom_call.1} parent=55 // pred_check
          %p364 = pneg %p49
        $region58: #{tpu_custom_call.1} parent=55 // pred_check_branch
          %366 = sbr.rel (%p364) target = $region60
        $region59: #{tpu_custom_call.1} parent=55 // pred_region
          %368 = dma.done %s360, 4096
        $region60: #{tpu_custom_call.1} parent=55 // pred_fallthru
          _
        // Predicated region
        $region61: #{tpu_custom_call.1} parent=55 // pred_check
          %p369 = pneg %p70
        $region62: #{tpu_custom_call.1} parent=55 // pred_check_branch
          %371 = sbr.rel (%p369) target = $region64
        $region63: #{tpu_custom_call.1} parent=55 // pred_region
          %373 = dma.done [#allocation6], 256
        $region64: #{tpu_custom_call.1} parent=55 // pred_fallthru
          _
        // Predicated region
        $region65: #{tpu_custom_call.1} parent=55 // pred_check
          %p374 = pneg %p91
        $region66: #{tpu_custom_call.1} parent=55 // pred_check_branch
          %376 = sbr.rel (%p374) target = $region68
        $region67: #{tpu_custom_call.1} parent=55 // pred_region
          %378 = dma.done [#allocation6], 1024
        $region68: #{tpu_custom_call.1} parent=55 // pred_fallthru
          _
        // Predicated region
        $region69: #{tpu_custom_call.1} parent=55 // pred_check
          %p379 = pneg %p154
        $region70: #{tpu_custom_call.1} parent=55 // pred_check_branch
          %381 = sbr.rel (%p379) target = $region72
        $region71: #{tpu_custom_call.1} parent=55 // pred_region
          %383 = dma.done [#allocation9], 256
        $region72: #{tpu_custom_call.1} parent=55 // pred_fallthru
          _
        // Predicated region
        $region73: #{tpu_custom_call.1} parent=55 // pred_check
          %p384 = pneg %p175
        $region74: #{tpu_custom_call.1} parent=55 // pred_check_branch
          %386 = sbr.rel (%p384) target = $region76
        $region75: #{tpu_custom_call.1} parent=55 // pred_region
          %388 = dma.done [#allocation9], 2048
        $region76: #{tpu_custom_call.1} parent=55 // pred_fallthru
          _
        %s389 = sand.u32 %s36, 1
        %s390 = scalar_lea.sflag [#allocation3], %s389
        %s391 = sand.u32 %s36, 1
        %s392 = smul.addr %s391, 256
        %s393 = scalar_lea.vmem [#allocation2], %s392
        %p394 = pneg %p49
        %p395 = pneg %p46
        %p396 = pneg %p70
        %p397 = pneg %p67
        %p398 = pneg %p91
        %p399 = pneg %p88
        %p400 = pneg %p112
        %p401 = pneg %p109
        %p402 = pneg %p133
        %p403 = pneg %p130
        %p404 = pneg %p154
        %p405 = pneg %p151
        %p406 = pneg %p175
        %p407 = pneg %p172
        %p408 = pneg %p196
        %p409 = pneg %p193
        %p410 = pneg %p217
        %p411 = pneg %p214
        %p412 = pneg %p243
        %p413 = pneg %p240
        %s414 = sand.u32 %s230, 1
        %s415 = scalar_lea.sflag [#allocation4], %s414
        %s416 = sand.u32 %s230, 1
        %s417 = smul.addr %s416, 256
        %s418 = scalar_lea.vmem [#allocation11], %s417
        %v419 = vld [vmem:[%s363] sm:$0xff]
        %v420 = vld [vmem:[%s363 + $0x8] sm:$0xff]
        %v421 = vld [vmem:[%s363 + $0x10] sm:$0xff]
        %v422 = vld [vmem:[%s363 + $0x18] sm:$0xff]
        %v423 = vld [vmem:[%s363 + $0x20] sm:$0xff]
        %v424 = vld [vmem:[%s363 + $0x28] sm:$0xff]
        %v425 = vld [vmem:[%s363 + $0x30] sm:$0xff]
        %v426 = vld [vmem:[%s363 + $0x38] sm:$0xff]
        %v427 = vld [vmem:[%s363 + $0x40] sm:$0xff]
        %v428 = vld [vmem:[%s363 + $0x48] sm:$0xff]
        %v429 = vld [vmem:[%s363 + $0x50] sm:$0xff]
        %v430 = vld [vmem:[%s363 + $0x58] sm:$0xff]
        %v431 = vld [vmem:[%s363 + $0x60] sm:$0xff]
        %v432 = vld [vmem:[%s363 + $0x68] sm:$0xff]
        %v433 = vld [vmem:[%s363 + $0x70] sm:$0xff]
        %v434 = vld [vmem:[%s363 + $0x78] sm:$0xff]
        %v435 = vld [vmem:[%s363 + $0x80] sm:$0xff]
        %v436 = vld [vmem:[%s363 + $0x88] sm:$0xff]
        %v437 = vld [vmem:[%s363 + $0x90] sm:$0xff]
        %v438 = vld [vmem:[%s363 + $0x98] sm:$0xff]
        %v439 = vld [vmem:[%s363 + $0xa0] sm:$0xff]
        %v440 = vld [vmem:[%s363 + $0xa8] sm:$0xff]
        %v441 = vld [vmem:[%s363 + $0xb0] sm:$0xff]
        %v442 = vld [vmem:[%s363 + $0xb8] sm:$0xff]
        %v443 = vld [vmem:[%s363 + $0xc0] sm:$0xff]
        %v444 = vld [vmem:[%s363 + $0xc8] sm:$0xff]
        %v445 = vld [vmem:[%s363 + $0xd0] sm:$0xff]
        %v446 = vld [vmem:[%s363 + $0xd8] sm:$0xff]
        %v447 = vld [vmem:[%s363 + $0xe0] sm:$0xff]
        %v448 = vld [vmem:[%s363 + $0xe8] sm:$0xff]
        %v449 = vld [vmem:[%s363 + $0xf0] sm:$0xff]
        %v450 = vld [vmem:[%s363 + $0xf8] sm:$0xff]
        %v451 = vmax.f32 %v419, 0.0
        %v452 = vmax.f32 %v420, 0.0
        %v453 = vmax.f32 %v421, 0.0
        %v454 = vmax.f32 %v422, 0.0
        %v455 = vmax.f32 %v423, 0.0
        %v456 = vmax.f32 %v424, 0.0
        %v457 = vmax.f32 %v425, 0.0
        %v458 = vmax.f32 %v426, 0.0
        %v459 = vmax.f32 %v427, 0.0
        %v460 = vmax.f32 %v428, 0.0
        %v461 = vmax.f32 %v429, 0.0
        %v462 = vmax.f32 %v430, 0.0
        %v463 = vmax.f32 %v431, 0.0
        %v464 = vmax.f32 %v432, 0.0
        %v465 = vmax.f32 %v433, 0.0
        %v466 = vmax.f32 %v434, 0.0
        %v467 = vmax.f32 %v435, 0.0
        %v468 = vmax.f32 %v436, 0.0
        %v469 = vmax.f32 %v437, 0.0
        %v470 = vmax.f32 %v438, 0.0
        %v471 = vmax.f32 %v439, 0.0
        %v472 = vmax.f32 %v440, 0.0
        %v473 = vmax.f32 %v441, 0.0
        %v474 = vmax.f32 %v442, 0.0
        %v475 = vmax.f32 %v443, 0.0
        %v476 = vmax.f32 %v444, 0.0
        %v477 = vmax.f32 %v445, 0.0
        %v478 = vmax.f32 %v446, 0.0
        %v479 = vmax.f32 %v447, 0.0
        %v480 = vmax.f32 %v448, 0.0
        %v481 = vmax.f32 %v449, 0.0
        %v482 = vmax.f32 %v450, 0.0
        %vm516 = vcmask 1040384
        %v517 = vrot.slane 0.0, 7
        %v518 = vsel %vm516, %v517, %v517
        %v519 = vrot.slane %v451, 7
        %v520 = vrot.slane %v452, 7
        %v521 = vsel %vm516, %v519, %v520
        %v522 = vrot.slane %v453, 7
        %v523 = vrot.slane %v454, 7
        %v524 = vsel %vm516, %v522, %v523
        %v525 = vrot.slane %v455, 7
        %v526 = vrot.slane %v456, 7
        %v527 = vsel %vm516, %v525, %v526
        %v528 = vrot.slane %v457, 7
        %v529 = vrot.slane %v458, 7
        %v530 = vsel %vm516, %v528, %v529
        %v531 = vrot.slane %v459, 7
        %v532 = vrot.slane %v460, 7
        %v533 = vsel %vm516, %v531, %v532
        %v534 = vrot.slane %v461, 7
        %v535 = vrot.slane %v462, 7
        %v536 = vsel %vm516, %v534, %v535
        %v537 = vrot.slane %v463, 7
        %v538 = vrot.slane %v464, 7
        %v539 = vsel %vm516, %v537, %v538
        %v540 = vrot.slane %v465, 7
        %v541 = vrot.slane %v466, 7
        %v542 = vsel %vm516, %v540, %v541
        %v543 = vrot.slane %v467, 7
        %v544 = vrot.slane %v468, 7
        %v545 = vsel %vm516, %v543, %v544
        %v546 = vrot.slane %v469, 7
        %v547 = vrot.slane %v470, 7
        %v548 = vsel %vm516, %v546, %v547
        %v549 = vrot.slane %v471, 7
        %v550 = vrot.slane %v472, 7
        %v551 = vsel %vm516, %v549, %v550
        %v552 = vrot.slane %v473, 7
        %v553 = vrot.slane %v474, 7
        %v554 = vsel %vm516, %v552, %v553
        %v555 = vrot.slane %v475, 7
        %v556 = vrot.slane %v476, 7
        %v557 = vsel %vm516, %v555, %v556
        %v558 = vrot.slane %v477, 7
        %v559 = vrot.slane %v478, 7
        %v560 = vsel %vm516, %v558, %v559
        %v561 = vrot.slane %v479, 7
        %v562 = vrot.slane %v480, 7
        %v563 = vsel %vm516, %v561, %v562
        %v564 = vrot.slane %v481, 7
        %v565 = vrot.slane %v482, 7
        %v566 = vsel %vm516, %v564, %v565
        %v617 = vsel %vm516, 0.0, %v517
        %v618 = vsel %vm516, 0.0, %v519
        %v619 = vsel %vm516, 0.0, %v522
        %v620 = vsel %vm516, 0.0, %v525
        %v621 = vsel %vm516, 0.0, %v528
        %v622 = vsel %vm516, 0.0, %v531
        %v623 = vsel %vm516, 0.0, %v534
        %v624 = vsel %vm516, 0.0, %v537
        %v625 = vsel %vm516, 0.0, %v540
        %v626 = vsel %vm516, 0.0, %v543
        %v627 = vsel %vm516, 0.0, %v546
        %v628 = vsel %vm516, 0.0, %v549
        %v629 = vsel %vm516, 0.0, %v552
        %v630 = vsel %vm516, 0.0, %v555
        %v631 = vsel %vm516, 0.0, %v558
        %v632 = vsel %vm516, 0.0, %v561
        %v633 = vsel %vm516, 0.0, %v564
        %v634 = vsel %vm516, %v517, 0.0
        %v635 = vsel %vm516, %v520, 0.0
        %v636 = vsel %vm516, %v523, 0.0
        %v637 = vsel %vm516, %v526, 0.0
        %v638 = vsel %vm516, %v529, 0.0
        %v639 = vsel %vm516, %v532, 0.0
        %v640 = vsel %vm516, %v535, 0.0
        %v641 = vsel %vm516, %v538, 0.0
        %v642 = vsel %vm516, %v541, 0.0
        %v643 = vsel %vm516, %v544, 0.0
        %v644 = vsel %vm516, %v547, 0.0
        %v645 = vsel %vm516, %v550, 0.0
        %v646 = vsel %vm516, %v553, 0.0
        %v647 = vsel %vm516, %v556, 0.0
        %v648 = vsel %vm516, %v559, 0.0
        %v649 = vsel %vm516, %v562, 0.0
        %v650 = vsel %vm516, %v565, 0.0
        %v651 = vld [vmem:[#allocation5] sm:$0xff]
        %v652 = vld [vmem:[#allocation5 + $0x8] sm:$0x1]
        %v653 = vperm.slane %v651, 0
        %v654 = vmul.f32 %v617, %v653
        %v655 = vmul.f32 %v518, %v653
        %v656 = vmul.f32 %v618, %v653
        %v657 = vmul.f32 %v521, %v653
        %v658 = vmul.f32 %v619, %v653
        %v659 = vmul.f32 %v524, %v653
        %v660 = vmul.f32 %v620, %v653
        %v661 = vmul.f32 %v527, %v653
        %v662 = vmul.f32 %v621, %v653
        %v663 = vmul.f32 %v530, %v653
        %v664 = vmul.f32 %v622, %v653
        %v665 = vmul.f32 %v533, %v653
        %v666 = vmul.f32 %v623, %v653
        %v667 = vmul.f32 %v536, %v653
        %v668 = vmul.f32 %v624, %v653
        %v669 = vmul.f32 %v539, %v653
        %v670 = vmul.f32 %v625, %v653
        %v671 = vmul.f32 %v542, %v653
        %v672 = vmul.f32 %v626, %v653
        %v673 = vmul.f32 %v545, %v653
        %v674 = vmul.f32 %v627, %v653
        %v675 = vmul.f32 %v548, %v653
        %v676 = vmul.f32 %v628, %v653
        %v677 = vmul.f32 %v551, %v653
        %v678 = vmul.f32 %v629, %v653
        %v679 = vmul.f32 %v554, %v653
        %v680 = vmul.f32 %v630, %v653
        %v681 = vmul.f32 %v557, %v653
        %v682 = vmul.f32 %v631, %v653
        %v683 = vmul.f32 %v560, %v653
        %v684 = vmul.f32 %v632, %v653
        %v685 = vmul.f32 %v563, %v653
        %v686 = vperm.slane %v651, 1
        %v687 = vmul.f32 %v617, %v686
        %v688 = vmul.f32 %v518, %v686
        %v689 = vmul.f32 %v634, %v686
        %v690 = vmul.f32 %v618, %v686
        %v691 = vmul.f32 %v521, %v686
        %v692 = vmul.f32 %v635, %v686
        %v693 = vmul.f32 %v619, %v686
        %v694 = vmul.f32 %v524, %v686
        %v695 = vmul.f32 %v636, %v686
        %v696 = vmul.f32 %v620, %v686
        %v697 = vmul.f32 %v527, %v686
        %v698 = vmul.f32 %v637, %v686
        %v699 = vmul.f32 %v621, %v686
        %v700 = vmul.f32 %v530, %v686
        %v701 = vmul.f32 %v638, %v686
        %v702 = vmul.f32 %v622, %v686
        %v703 = vmul.f32 %v533, %v686
        %v704 = vmul.f32 %v639, %v686
        %v705 = vmul.f32 %v623, %v686
        %v706 = vmul.f32 %v536, %v686
        %v707 = vmul.f32 %v640, %v686
        %v708 = vmul.f32 %v624, %v686
        %v709 = vmul.f32 %v539, %v686
        %v710 = vmul.f32 %v641, %v686
        %v711 = vmul.f32 %v625, %v686
        %v712 = vmul.f32 %v542, %v686
        %v713 = vmul.f32 %v642, %v686
        %v714 = vmul.f32 %v626, %v686
        %v715 = vmul.f32 %v545, %v686
        %v716 = vmul.f32 %v643, %v686
        %v717 = vmul.f32 %v627, %v686
        %v718 = vmul.f32 %v548, %v686
        %v719 = vmul.f32 %v644, %v686
        %v720 = vmul.f32 %v628, %v686
        %v721 = vmul.f32 %v551, %v686
        %v722 = vmul.f32 %v645, %v686
        %v723 = vmul.f32 %v629, %v686
        %v724 = vmul.f32 %v554, %v686
        %v725 = vmul.f32 %v646, %v686
        %v726 = vmul.f32 %v630, %v686
        %v727 = vmul.f32 %v557, %v686
        %v728 = vmul.f32 %v647, %v686
        %v729 = vmul.f32 %v631, %v686
        %v730 = vmul.f32 %v560, %v686
        %v731 = vmul.f32 %v648, %v686
        %v732 = vmul.f32 %v632, %v686
        %v733 = vmul.f32 %v563, %v686
        %v734 = vmul.f32 %v649, %v686
        %vm783 = vcmask 1046528
        %v784 = vrot.slane %v687, 1
        %v785 = vrot.slane %v688, 1
        %v786 = vsel %vm783, %v784, %v785
        %v787 = vrot.slane %v689, 1
        %v788 = vsel %vm783, %v785, %v787
        %v789 = vrot.slane %v690, 1
        %v790 = vrot.slane %v691, 1
        %v791 = vsel %vm783, %v789, %v790
        %v792 = vrot.slane %v692, 1
        %v793 = vsel %vm783, %v790, %v792
        %v794 = vrot.slane %v693, 1
        %v795 = vrot.slane %v694, 1
        %v796 = vsel %vm783, %v794, %v795
        %v797 = vrot.slane %v695, 1
        %v798 = vsel %vm783, %v795, %v797
        %v799 = vrot.slane %v696, 1
        %v800 = vrot.slane %v697, 1
        %v801 = vsel %vm783, %v799, %v800
        %v802 = vrot.slane %v698, 1
        %v803 = vsel %vm783, %v800, %v802
        %v804 = vrot.slane %v699, 1
        %v805 = vrot.slane %v700, 1
        %v806 = vsel %vm783, %v804, %v805
        %v807 = vrot.slane %v701, 1
        %v808 = vsel %vm783, %v805, %v807
        %v809 = vrot.slane %v702, 1
        %v810 = vrot.slane %v703, 1
        %v811 = vsel %vm783, %v809, %v810
        %v812 = vrot.slane %v704, 1
        %v813 = vsel %vm783, %v810, %v812
        %v814 = vrot.slane %v705, 1
        %v815 = vrot.slane %v706, 1
        %v816 = vsel %vm783, %v814, %v815
        %v817 = vrot.slane %v707, 1
        %v818 = vsel %vm783, %v815, %v817
        %v819 = vrot.slane %v708, 1
        %v820 = vrot.slane %v709, 1
        %v821 = vsel %vm783, %v819, %v820
        %v822 = vrot.slane %v710, 1
        %v823 = vsel %vm783, %v820, %v822
        %v824 = vrot.slane %v711, 1
        %v825 = vrot.slane %v712, 1
        %v826 = vsel %vm783, %v824, %v825
        %v827 = vrot.slane %v713, 1
        %v828 = vsel %vm783, %v825, %v827
        %v829 = vrot.slane %v714, 1
        %v830 = vrot.slane %v715, 1
        %v831 = vsel %vm783, %v829, %v830
        %v832 = vrot.slane %v716, 1
        %v833 = vsel %vm783, %v830, %v832
        %v834 = vrot.slane %v717, 1
        %v835 = vrot.slane %v718, 1
        %v836 = vsel %vm783, %v834, %v835
        %v837 = vrot.slane %v719, 1
        %v838 = vsel %vm783, %v835, %v837
        %v839 = vrot.slane %v720, 1
        %v840 = vrot.slane %v721, 1
        %v841 = vsel %vm783, %v839, %v840
        %v842 = vrot.slane %v722, 1
        %v843 = vsel %vm783, %v840, %v842
        %v844 = vrot.slane %v723, 1
        %v845 = vrot.slane %v724, 1
        %v846 = vsel %vm783, %v844, %v845
        %v847 = vrot.slane %v725, 1
        %v848 = vsel %vm783, %v845, %v847
        %v849 = vrot.slane %v726, 1
        %v850 = vrot.slane %v727, 1
        %v851 = vsel %vm783, %v849, %v850
        %v852 = vrot.slane %v728, 1
        %v853 = vsel %vm783, %v850, %v852
        %v854 = vrot.slane %v729, 1
        %v855 = vrot.slane %v730, 1
        %v856 = vsel %vm783, %v854, %v855
        %v857 = vrot.slane %v731, 1
        %v858 = vsel %vm783, %v855, %v857
        %v859 = vrot.slane %v732, 1
        %v860 = vrot.slane %v733, 1
        %v861 = vsel %vm783, %v859, %v860
        %v862 = vrot.slane %v734, 1
        %v863 = vsel %vm783, %v860, %v862
        %v896 = vadd.f32 %v654, %v786
        %v897 = vadd.f32 %v655, %v788
        %v898 = vadd.f32 %v656, %v791
        %v899 = vadd.f32 %v657, %v793
        %v900 = vadd.f32 %v658, %v796
        %v901 = vadd.f32 %v659, %v798
        %v902 = vadd.f32 %v660, %v801
        %v903 = vadd.f32 %v661, %v803
        %v904 = vadd.f32 %v662, %v806
        %v905 = vadd.f32 %v663, %v808
        %v906 = vadd.f32 %v664, %v811
        %v907 = vadd.f32 %v665, %v813
        %v908 = vadd.f32 %v666, %v816
        %v909 = vadd.f32 %v667, %v818
        %v910 = vadd.f32 %v668, %v821
        %v911 = vadd.f32 %v669, %v823
        %v912 = vadd.f32 %v670, %v826
        %v913 = vadd.f32 %v671, %v828
        %v914 = vadd.f32 %v672, %v831
        %v915 = vadd.f32 %v673, %v833
        %v916 = vadd.f32 %v674, %v836
        %v917 = vadd.f32 %v675, %v838
        %v918 = vadd.f32 %v676, %v841
        %v919 = vadd.f32 %v677, %v843
        %v920 = vadd.f32 %v678, %v846
        %v921 = vadd.f32 %v679, %v848
        %v922 = vadd.f32 %v680, %v851
        %v923 = vadd.f32 %v681, %v853
        %v924 = vadd.f32 %v682, %v856
        %v925 = vadd.f32 %v683, %v858
        %v926 = vadd.f32 %v684, %v861
        %v927 = vadd.f32 %v685, %v863
        %v928 = vperm.slane %v651, 2
        %v929 = vmul.f32 %v617, %v928
        %v930 = vmul.f32 %v518, %v928
        %v931 = vmul.f32 %v634, %v928
        %v932 = vmul.f32 %v618, %v928
        %v933 = vmul.f32 %v521, %v928
        %v934 = vmul.f32 %v635, %v928
        %v935 = vmul.f32 %v619, %v928
        %v936 = vmul.f32 %v524, %v928
        %v937 = vmul.f32 %v636, %v928
        %v938 = vmul.f32 %v620, %v928
        %v939 = vmul.f32 %v527, %v928
        %v940 = vmul.f32 %v637, %v928
        %v941 = vmul.f32 %v621, %v928
        %v942 = vmul.f32 %v530, %v928
        %v943 = vmul.f32 %v638, %v928
        %v944 = vmul.f32 %v622, %v928
        %v945 = vmul.f32 %v533, %v928
        %v946 = vmul.f32 %v639, %v928
        %v947 = vmul.f32 %v623, %v928
        %v948 = vmul.f32 %v536, %v928
        %v949 = vmul.f32 %v640, %v928
        %v950 = vmul.f32 %v624, %v928
        %v951 = vmul.f32 %v539, %v928
        %v952 = vmul.f32 %v641, %v928
        %v953 = vmul.f32 %v625, %v928
        %v954 = vmul.f32 %v542, %v928
        %v955 = vmul.f32 %v642, %v928
        %v956 = vmul.f32 %v626, %v928
        %v957 = vmul.f32 %v545, %v928
        %v958 = vmul.f32 %v643, %v928
        %v959 = vmul.f32 %v627, %v928
        %v960 = vmul.f32 %v548, %v928
        %v961 = vmul.f32 %v644, %v928
        %v962 = vmul.f32 %v628, %v928
        %v963 = vmul.f32 %v551, %v928
        %v964 = vmul.f32 %v645, %v928
        %v965 = vmul.f32 %v629, %v928
        %v966 = vmul.f32 %v554, %v928
        %v967 = vmul.f32 %v646, %v928
        %v968 = vmul.f32 %v630, %v928
        %v969 = vmul.f32 %v557, %v928
        %v970 = vmul.f32 %v647, %v928
        %v971 = vmul.f32 %v631, %v928
        %v972 = vmul.f32 %v560, %v928
        %v973 = vmul.f32 %v648, %v928
        %v974 = vmul.f32 %v632, %v928
        %v975 = vmul.f32 %v563, %v928
        %v976 = vmul.f32 %v649, %v928
        %vm1025 = vcmask 1045504
        %v1026 = vrot.slane %v929, 2
        %v1027 = vrot.slane %v930, 2
        %v1028 = vsel %vm1025, %v1026, %v1027
        %v1029 = vrot.slane %v931, 2
        %v1030 = vsel %vm1025, %v1027, %v1029
        %v1031 = vrot.slane %v932, 2
        %v1032 = vrot.slane %v933, 2
        %v1033 = vsel %vm1025, %v1031, %v1032
        %v1034 = vrot.slane %v934, 2
        %v1035 = vsel %vm1025, %v1032, %v1034
        %v1036 = vrot.slane %v935, 2
        %v1037 = vrot.slane %v936, 2
        %v1038 = vsel %vm1025, %v1036, %v1037
        %v1039 = vrot.slane %v937, 2
        %v1040 = vsel %vm1025, %v1037, %v1039
        %v1041 = vrot.slane %v938, 2
        %v1042 = vrot.slane %v939, 2
        %v1043 = vsel %vm1025, %v1041, %v1042
        %v1044 = vrot.slane %v940, 2
        %v1045 = vsel %vm1025, %v1042, %v1044
        %v1046 = vrot.slane %v941, 2
        %v1047 = vrot.slane %v942, 2
        %v1048 = vsel %vm1025, %v1046, %v1047
        %v1049 = vrot.slane %v943, 2
        %v1050 = vsel %vm1025, %v1047, %v1049
        %v1051 = vrot.slane %v944, 2
        %v1052 = vrot.slane %v945, 2
        %v1053 = vsel %vm1025, %v1051, %v1052
        %v1054 = vrot.slane %v946, 2
        %v1055 = vsel %vm1025, %v1052, %v1054
        %v1056 = vrot.slane %v947, 2
        %v1057 = vrot.slane %v948, 2
        %v1058 = vsel %vm1025, %v1056, %v1057
        %v1059 = vrot.slane %v949, 2
        %v1060 = vsel %vm1025, %v1057, %v1059
        %v1061 = vrot.slane %v950, 2
        %v1062 = vrot.slane %v951, 2
        %v1063 = vsel %vm1025, %v1061, %v1062
        %v1064 = vrot.slane %v952, 2
        %v1065 = vsel %vm1025, %v1062, %v1064
        %v1066 = vrot.slane %v953, 2
        %v1067 = vrot.slane %v954, 2
        %v1068 = vsel %vm1025, %v1066, %v1067
        %v1069 = vrot.slane %v955, 2
        %v1070 = vsel %vm1025, %v1067, %v1069
        %v1071 = vrot.slane %v956, 2
        %v1072 = vrot.slane %v957, 2
        %v1073 = vsel %vm1025, %v1071, %v1072
        %v1074 = vrot.slane %v958, 2
        %v1075 = vsel %vm1025, %v1072, %v1074
        %v1076 = vrot.slane %v959, 2
        %v1077 = vrot.slane %v960, 2
        %v1078 = vsel %vm1025, %v1076, %v1077
        %v1079 = vrot.slane %v961, 2
        %v1080 = vsel %vm1025, %v1077, %v1079
        %v1081 = vrot.slane %v962, 2
        %v1082 = vrot.slane %v963, 2
        %v1083 = vsel %vm1025, %v1081, %v1082
        %v1084 = vrot.slane %v964, 2
        %v1085 = vsel %vm1025, %v1082, %v1084
        %v1086 = vrot.slane %v965, 2
        %v1087 = vrot.slane %v966, 2
        %v1088 = vsel %vm1025, %v1086, %v1087
        %v1089 = vrot.slane %v967, 2
        %v1090 = vsel %vm1025, %v1087, %v1089
        %v1091 = vrot.slane %v968, 2
        %v1092 = vrot.slane %v969, 2
        %v1093 = vsel %vm1025, %v1091, %v1092
        %v1094 = vrot.slane %v970, 2
        %v1095 = vsel %vm1025, %v1092, %v1094
        %v1096 = vrot.slane %v971, 2
        %v1097 = vrot.slane %v972, 2
        %v1098 = vsel %vm1025, %v1096, %v1097
        %v1099 = vrot.slane %v973, 2
        %v1100 = vsel %vm1025, %v1097, %v1099
        %v1101 = vrot.slane %v974, 2
        %v1102 = vrot.slane %v975, 2
        %v1103 = vsel %vm1025, %v1101, %v1102
        %v1104 = vrot.slane %v976, 2
        %v1105 = vsel %vm1025, %v1102, %v1104
        %v1138 = vadd.f32 %v896, %v1028
        %v1139 = vadd.f32 %v897, %v1030
        %v1140 = vadd.f32 %v898, %v1033
        %v1141 = vadd.f32 %v899, %v1035
        %v1142 = vadd.f32 %v900, %v1038
        %v1143 = vadd.f32 %v901, %v1040
        %v1144 = vadd.f32 %v902, %v1043
        %v1145 = vadd.f32 %v903, %v1045
        %v1146 = vadd.f32 %v904, %v1048
        %v1147 = vadd.f32 %v905, %v1050
        %v1148 = vadd.f32 %v906, %v1053
        %v1149 = vadd.f32 %v907, %v1055
        %v1150 = vadd.f32 %v908, %v1058
        %v1151 = vadd.f32 %v909, %v1060
        %v1152 = vadd.f32 %v910, %v1063
        %v1153 = vadd.f32 %v911, %v1065
        %v1154 = vadd.f32 %v912, %v1068
        %v1155 = vadd.f32 %v913, %v1070
        %v1156 = vadd.f32 %v914, %v1073
        %v1157 = vadd.f32 %v915, %v1075
        %v1158 = vadd.f32 %v916, %v1078
        %v1159 = vadd.f32 %v917, %v1080
        %v1160 = vadd.f32 %v918, %v1083
        %v1161 = vadd.f32 %v919, %v1085
        %v1162 = vadd.f32 %v920, %v1088
        %v1163 = vadd.f32 %v921, %v1090
        %v1164 = vadd.f32 %v922, %v1093
        %v1165 = vadd.f32 %v923, %v1095
        %v1166 = vadd.f32 %v924, %v1098
        %v1167 = vadd.f32 %v925, %v1100
        %v1168 = vadd.f32 %v926, %v1103
        %v1169 = vadd.f32 %v927, %v1105
        %v1170 = vperm.slane %v651, 3
        %v1171 = vmul.f32 %v618, %v1170
        %v1172 = vmul.f32 %v521, %v1170
        %v1173 = vmul.f32 %v619, %v1170
        %v1174 = vmul.f32 %v524, %v1170
        %v1175 = vmul.f32 %v620, %v1170
        %v1176 = vmul.f32 %v527, %v1170
        %v1177 = vmul.f32 %v621, %v1170
        %v1178 = vmul.f32 %v530, %v1170
        %v1179 = vmul.f32 %v622, %v1170
        %v1180 = vmul.f32 %v533, %v1170
        %v1181 = vmul.f32 %v623, %v1170
        %v1182 = vmul.f32 %v536, %v1170
        %v1183 = vmul.f32 %v624, %v1170
        %v1184 = vmul.f32 %v539, %v1170
        %v1185 = vmul.f32 %v625, %v1170
        %v1186 = vmul.f32 %v542, %v1170
        %v1187 = vmul.f32 %v626, %v1170
        %v1188 = vmul.f32 %v545, %v1170
        %v1189 = vmul.f32 %v627, %v1170
        %v1190 = vmul.f32 %v548, %v1170
        %v1191 = vmul.f32 %v628, %v1170
        %v1192 = vmul.f32 %v551, %v1170
        %v1193 = vmul.f32 %v629, %v1170
        %v1194 = vmul.f32 %v554, %v1170
        %v1195 = vmul.f32 %v630, %v1170
        %v1196 = vmul.f32 %v557, %v1170
        %v1197 = vmul.f32 %v631, %v1170
        %v1198 = vmul.f32 %v560, %v1170
        %v1199 = vmul.f32 %v632, %v1170
        %v1200 = vmul.f32 %v563, %v1170
        %v1201 = vmul.f32 %v633, %v1170
        %v1202 = vmul.f32 %v566, %v1170
        %v1203 = vadd.f32 %v1138, %v1171
        %v1204 = vadd.f32 %v1139, %v1172
        %v1205 = vadd.f32 %v1140, %v1173
        %v1206 = vadd.f32 %v1141, %v1174
        %v1207 = vadd.f32 %v1142, %v1175
        %v1208 = vadd.f32 %v1143, %v1176
        %v1209 = vadd.f32 %v1144, %v1177
        %v1210 = vadd.f32 %v1145, %v1178
        %v1211 = vadd.f32 %v1146, %v1179
        %v1212 = vadd.f32 %v1147, %v1180
        %v1213 = vadd.f32 %v1148, %v1181
        %v1214 = vadd.f32 %v1149, %v1182
        %v1215 = vadd.f32 %v1150, %v1183
        %v1216 = vadd.f32 %v1151, %v1184
        %v1217 = vadd.f32 %v1152, %v1185
        %v1218 = vadd.f32 %v1153, %v1186
        %v1219 = vadd.f32 %v1154, %v1187
        %v1220 = vadd.f32 %v1155, %v1188
        %v1221 = vadd.f32 %v1156, %v1189
        %v1222 = vadd.f32 %v1157, %v1190
        %v1223 = vadd.f32 %v1158, %v1191
        %v1224 = vadd.f32 %v1159, %v1192
        %v1225 = vadd.f32 %v1160, %v1193
        %v1226 = vadd.f32 %v1161, %v1194
        %v1227 = vadd.f32 %v1162, %v1195
        %v1228 = vadd.f32 %v1163, %v1196
        %v1229 = vadd.f32 %v1164, %v1197
        %v1230 = vadd.f32 %v1165, %v1198
        %v1231 = vadd.f32 %v1166, %v1199
        %v1232 = vadd.f32 %v1167, %v1200
        %v1233 = vadd.f32 %v1168, %v1201
        %v1234 = vadd.f32 %v1169, %v1202
        %v1235 = vperm.slane %v651, 4
        %v1236 = vmul.f32 %v618, %v1235
        %v1237 = vmul.f32 %v521, %v1235
        %v1238 = vmul.f32 %v635, %v1235
        %v1239 = vmul.f32 %v619, %v1235
        %v1240 = vmul.f32 %v524, %v1235
        %v1241 = vmul.f32 %v636, %v1235
        %v1242 = vmul.f32 %v620, %v1235
        %v1243 = vmul.f32 %v527, %v1235
        %v1244 = vmul.f32 %v637, %v1235
        %v1245 = vmul.f32 %v621, %v1235
        %v1246 = vmul.f32 %v530, %v1235
        %v1247 = vmul.f32 %v638, %v1235
        %v1248 = vmul.f32 %v622, %v1235
        %v1249 = vmul.f32 %v533, %v1235
        %v1250 = vmul.f32 %v639, %v1235
        %v1251 = vmul.f32 %v623, %v1235
        %v1252 = vmul.f32 %v536, %v1235
        %v1253 = vmul.f32 %v640, %v1235
        %v1254 = vmul.f32 %v624, %v1235
        %v1255 = vmul.f32 %v539, %v1235
        %v1256 = vmul.f32 %v641, %v1235
        %v1257 = vmul.f32 %v625, %v1235
        %v1258 = vmul.f32 %v542, %v1235
        %v1259 = vmul.f32 %v642, %v1235
        %v1260 = vmul.f32 %v626, %v1235
        %v1261 = vmul.f32 %v545, %v1235
        %v1262 = vmul.f32 %v643, %v1235
        %v1263 = vmul.f32 %v627, %v1235
        %v1264 = vmul.f32 %v548, %v1235
        %v1265 = vmul.f32 %v644, %v1235
        %v1266 = vmul.f32 %v628, %v1235
        %v1267 = vmul.f32 %v551, %v1235
        %v1268 = vmul.f32 %v645, %v1235
        %v1269 = vmul.f32 %v629, %v1235
        %v1270 = vmul.f32 %v554, %v1235
        %v1271 = vmul.f32 %v646, %v1235
        %v1272 = vmul.f32 %v630, %v1235
        %v1273 = vmul.f32 %v557, %v1235
        %v1274 = vmul.f32 %v647, %v1235
        %v1275 = vmul.f32 %v631, %v1235
        %v1276 = vmul.f32 %v560, %v1235
        %v1277 = vmul.f32 %v648, %v1235
        %v1278 = vmul.f32 %v632, %v1235
        %v1279 = vmul.f32 %v563, %v1235
        %v1280 = vmul.f32 %v649, %v1235
        %v1281 = vmul.f32 %v633, %v1235
        %v1282 = vmul.f32 %v566, %v1235
        %v1283 = vmul.f32 %v650, %v1235
        %v1332 = vrot.slane %v1236, 1
        %v1333 = vrot.slane %v1237, 1
        %v1334 = vsel %vm783, %v1332, %v1333
        %v1335 = vrot.slane %v1238, 1
        %v1336 = vsel %vm783, %v1333, %v1335
        %v1337 = vrot.slane %v1239, 1
        %v1338 = vrot.slane %v1240, 1
        %v1339 = vsel %vm783, %v1337, %v1338
        %v1340 = vrot.slane %v1241, 1
        %v1341 = vsel %vm783, %v1338, %v1340
        %v1342 = vrot.slane %v1242, 1
        %v1343 = vrot.slane %v1243, 1
        %v1344 = vsel %vm783, %v1342, %v1343
        %v1345 = vrot.slane %v1244, 1
        %v1346 = vsel %vm783, %v1343, %v1345
        %v1347 = vrot.slane %v1245, 1
        %v1348 = vrot.slane %v1246, 1
        %v1349 = vsel %vm783, %v1347, %v1348
        %v1350 = vrot.slane %v1247, 1
        %v1351 = vsel %vm783, %v1348, %v1350
        %v1352 = vrot.slane %v1248, 1
        %v1353 = vrot.slane %v1249, 1
        %v1354 = vsel %vm783, %v1352, %v1353
        %v1355 = vrot.slane %v1250, 1
        %v1356 = vsel %vm783, %v1353, %v1355
        %v1357 = vrot.slane %v1251, 1
        %v1358 = vrot.slane %v1252, 1
        %v1359 = vsel %vm783, %v1357, %v1358
        %v1360 = vrot.slane %v1253, 1
        %v1361 = vsel %vm783, %v1358, %v1360
        %v1362 = vrot.slane %v1254, 1
        %v1363 = vrot.slane %v1255, 1
        %v1364 = vsel %vm783, %v1362, %v1363
        %v1365 = vrot.slane %v1256, 1
        %v1366 = vsel %vm783, %v1363, %v1365
        %v1367 = vrot.slane %v1257, 1
        %v1368 = vrot.slane %v1258, 1
        %v1369 = vsel %vm783, %v1367, %v1368
        %v1370 = vrot.slane %v1259, 1
        %v1371 = vsel %vm783, %v1368, %v1370
        %v1372 = vrot.slane %v1260, 1
        %v1373 = vrot.slane %v1261, 1
        %v1374 = vsel %vm783, %v1372, %v1373
        %v1375 = vrot.slane %v1262, 1
        %v1376 = vsel %vm783, %v1373, %v1375
        %v1377 = vrot.slane %v1263, 1
        %v1378 = vrot.slane %v1264, 1
        %v1379 = vsel %vm783, %v1377, %v1378
        %v1380 = vrot.slane %v1265, 1
        %v1381 = vsel %vm783, %v1378, %v1380
        %v1382 = vrot.slane %v1266, 1
        %v1383 = vrot.slane %v1267, 1
        %v1384 = vsel %vm783, %v1382, %v1383
        %v1385 = vrot.slane %v1268, 1
        %v1386 = vsel %vm783, %v1383, %v1385
        %v1387 = vrot.slane %v1269, 1
        %v1388 = vrot.slane %v1270, 1
        %v1389 = vsel %vm783, %v1387, %v1388
        %v1390 = vrot.slane %v1271, 1
        %v1391 = vsel %vm783, %v1388, %v1390
        %v1392 = vrot.slane %v1272, 1
        %v1393 = vrot.slane %v1273, 1
        %v1394 = vsel %vm783, %v1392, %v1393
        %v1395 = vrot.slane %v1274, 1
        %v1396 = vsel %vm783, %v1393, %v1395
        %v1397 = vrot.slane %v1275, 1
        %v1398 = vrot.slane %v1276, 1
        %v1399 = vsel %vm783, %v1397, %v1398
        %v1400 = vrot.slane %v1277, 1
        %v1401 = vsel %vm783, %v1398, %v1400
        %v1402 = vrot.slane %v1278, 1
        %v1403 = vrot.slane %v1279, 1
        %v1404 = vsel %vm783, %v1402, %v1403
        %v1405 = vrot.slane %v1280, 1
        %v1406 = vsel %vm783, %v1403, %v1405
        %v1407 = vrot.slane %v1281, 1
        %v1408 = vrot.slane %v1282, 1
        %v1409 = vsel %vm783, %v1407, %v1408
        %v1410 = vrot.slane %v1283, 1
        %v1411 = vsel %vm783, %v1408, %v1410
        %v1444 = vadd.f32 %v1203, %v1334
        %v1445 = vadd.f32 %v1204, %v1336
        %v1446 = vadd.f32 %v1205, %v1339
        %v1447 = vadd.f32 %v1206, %v1341
        %v1448 = vadd.f32 %v1207, %v1344
        %v1449 = vadd.f32 %v1208, %v1346
        %v1450 = vadd.f32 %v1209, %v1349
        %v1451 = vadd.f32 %v1210, %v1351
        %v1452 = vadd.f32 %v1211, %v1354
        %v1453 = vadd.f32 %v1212, %v1356
        %v1454 = vadd.f32 %v1213, %v1359
        %v1455 = vadd.f32 %v1214, %v1361
        %v1456 = vadd.f32 %v1215, %v1364
        %v1457 = vadd.f32 %v1216, %v1366
        %v1458 = vadd.f32 %v1217, %v1369
        %v1459 = vadd.f32 %v1218, %v1371
        %v1460 = vadd.f32 %v1219, %v1374
        %v1461 = vadd.f32 %v1220, %v1376
        %v1462 = vadd.f32 %v1221, %v1379
        %v1463 = vadd.f32 %v1222, %v1381
        %v1464 = vadd.f32 %v1223, %v1384
        %v1465 = vadd.f32 %v1224, %v1386
        %v1466 = vadd.f32 %v1225, %v1389
        %v1467 = vadd.f32 %v1226, %v1391
        %v1468 = vadd.f32 %v1227, %v1394
        %v1469 = vadd.f32 %v1228, %v1396
        %v1470 = vadd.f32 %v1229, %v1399
        %v1471 = vadd.f32 %v1230, %v1401
        %v1472 = vadd.f32 %v1231, %v1404
        %v1473 = vadd.f32 %v1232, %v1406
        %v1474 = vadd.f32 %v1233, %v1409
        %v1475 = vadd.f32 %v1234, %v1411
        %v1476 = vperm.slane %v651, 5
        %v1477 = vmul.f32 %v618, %v1476
        %v1478 = vmul.f32 %v521, %v1476
        %v1479 = vmul.f32 %v635, %v1476
        %v1480 = vmul.f32 %v619, %v1476
        %v1481 = vmul.f32 %v524, %v1476
        %v1482 = vmul.f32 %v636, %v1476
        %v1483 = vmul.f32 %v620, %v1476
        %v1484 = vmul.f32 %v527, %v1476
        %v1485 = vmul.f32 %v637, %v1476
        %v1486 = vmul.f32 %v621, %v1476
        %v1487 = vmul.f32 %v530, %v1476
        %v1488 = vmul.f32 %v638, %v1476
        %v1489 = vmul.f32 %v622, %v1476
        %v1490 = vmul.f32 %v533, %v1476
        %v1491 = vmul.f32 %v639, %v1476
        %v1492 = vmul.f32 %v623, %v1476
        %v1493 = vmul.f32 %v536, %v1476
        %v1494 = vmul.f32 %v640, %v1476
        %v1495 = vmul.f32 %v624, %v1476
        %v1496 = vmul.f32 %v539, %v1476
        %v1497 = vmul.f32 %v641, %v1476
        %v1498 = vmul.f32 %v625, %v1476
        %v1499 = vmul.f32 %v542, %v1476
        %v1500 = vmul.f32 %v642, %v1476
        %v1501 = vmul.f32 %v626, %v1476
        %v1502 = vmul.f32 %v545, %v1476
        %v1503 = vmul.f32 %v643, %v1476
        %v1504 = vmul.f32 %v627, %v1476
        %v1505 = vmul.f32 %v548, %v1476
        %v1506 = vmul.f32 %v644, %v1476
        %v1507 = vmul.f32 %v628, %v1476
        %v1508 = vmul.f32 %v551, %v1476
        %v1509 = vmul.f32 %v645, %v1476
        %v1510 = vmul.f32 %v629, %v1476
        %v1511 = vmul.f32 %v554, %v1476
        %v1512 = vmul.f32 %v646, %v1476
        %v1513 = vmul.f32 %v630, %v1476
        %v1514 = vmul.f32 %v557, %v1476
        %v1515 = vmul.f32 %v647, %v1476
        %v1516 = vmul.f32 %v631, %v1476
        %v1517 = vmul.f32 %v560, %v1476
        %v1518 = vmul.f32 %v648, %v1476
        %v1519 = vmul.f32 %v632, %v1476
        %v1520 = vmul.f32 %v563, %v1476
        %v1521 = vmul.f32 %v649, %v1476
        %v1522 = vmul.f32 %v633, %v1476
        %v1523 = vmul.f32 %v566, %v1476
        %v1524 = vmul.f32 %v650, %v1476
        %v1573 = vrot.slane %v1477, 2
        %v1574 = vrot.slane %v1478, 2
        %v1575 = vsel %vm1025, %v1573, %v1574
        %v1576 = vrot.slane %v1479, 2
        %v1577 = vsel %vm1025, %v1574, %v1576
        %v1578 = vrot.slane %v1480, 2
        %v1579 = vrot.slane %v1481, 2
        %v1580 = vsel %vm1025, %v1578, %v1579
        %v1581 = vrot.slane %v1482, 2
        %v1582 = vsel %vm1025, %v1579, %v1581
        %v1583 = vrot.slane %v1483, 2
        %v1584 = vrot.slane %v1484, 2
        %v1585 = vsel %vm1025, %v1583, %v1584
        %v1586 = vrot.slane %v1485, 2
        %v1587 = vsel %vm1025, %v1584, %v1586
        %v1588 = vrot.slane %v1486, 2
        %v1589 = vrot.slane %v1487, 2
        %v1590 = vsel %vm1025, %v1588, %v1589
        %v1591 = vrot.slane %v1488, 2
        %v1592 = vsel %vm1025, %v1589, %v1591
        %v1593 = vrot.slane %v1489, 2
        %v1594 = vrot.slane %v1490, 2
        %v1595 = vsel %vm1025, %v1593, %v1594
        %v1596 = vrot.slane %v1491, 2
        %v1597 = vsel %vm1025, %v1594, %v1596
        %v1598 = vrot.slane %v1492, 2
        %v1599 = vrot.slane %v1493, 2
        %v1600 = vsel %vm1025, %v1598, %v1599
        %v1601 = vrot.slane %v1494, 2
        %v1602 = vsel %vm1025, %v1599, %v1601
        %v1603 = vrot.slane %v1495, 2
        %v1604 = vrot.slane %v1496, 2
        %v1605 = vsel %vm1025, %v1603, %v1604
        %v1606 = vrot.slane %v1497, 2
        %v1607 = vsel %vm1025, %v1604, %v1606
        %v1608 = vrot.slane %v1498, 2
        %v1609 = vrot.slane %v1499, 2
        %v1610 = vsel %vm1025, %v1608, %v1609
        %v1611 = vrot.slane %v1500, 2
        %v1612 = vsel %vm1025, %v1609, %v1611
        %v1613 = vrot.slane %v1501, 2
        %v1614 = vrot.slane %v1502, 2
        %v1615 = vsel %vm1025, %v1613, %v1614
        %v1616 = vrot.slane %v1503, 2
        %v1617 = vsel %vm1025, %v1614, %v1616
        %v1618 = vrot.slane %v1504, 2
        %v1619 = vrot.slane %v1505, 2
        %v1620 = vsel %vm1025, %v1618, %v1619
        %v1621 = vrot.slane %v1506, 2
        %v1622 = vsel %vm1025, %v1619, %v1621
        %v1623 = vrot.slane %v1507, 2
        %v1624 = vrot.slane %v1508, 2
        %v1625 = vsel %vm1025, %v1623, %v1624
        %v1626 = vrot.slane %v1509, 2
        %v1627 = vsel %vm1025, %v1624, %v1626
        %v1628 = vrot.slane %v1510, 2
        %v1629 = vrot.slane %v1511, 2
        %v1630 = vsel %vm1025, %v1628, %v1629
        %v1631 = vrot.slane %v1512, 2
        %v1632 = vsel %vm1025, %v1629, %v1631
        %v1633 = vrot.slane %v1513, 2
        %v1634 = vrot.slane %v1514, 2
        %v1635 = vsel %vm1025, %v1633, %v1634
        %v1636 = vrot.slane %v1515, 2
        %v1637 = vsel %vm1025, %v1634, %v1636
        %v1638 = vrot.slane %v1516, 2
        %v1639 = vrot.slane %v1517, 2
        %v1640 = vsel %vm1025, %v1638, %v1639
        %v1641 = vrot.slane %v1518, 2
        %v1642 = vsel %vm1025, %v1639, %v1641
        %v1643 = vrot.slane %v1519, 2
        %v1644 = vrot.slane %v1520, 2
        %v1645 = vsel %vm1025, %v1643, %v1644
        %v1646 = vrot.slane %v1521, 2
        %v1647 = vsel %vm1025, %v1644, %v1646
        %v1648 = vrot.slane %v1522, 2
        %v1649 = vrot.slane %v1523, 2
        %v1650 = vsel %vm1025, %v1648, %v1649
        %v1651 = vrot.slane %v1524, 2
        %v1652 = vsel %vm1025, %v1649, %v1651
        %v1685 = vadd.f32 %v1444, %v1575
        %v1686 = vadd.f32 %v1445, %v1577
        %v1687 = vadd.f32 %v1446, %v1580
        %v1688 = vadd.f32 %v1447, %v1582
        %v1689 = vadd.f32 %v1448, %v1585
        %v1690 = vadd.f32 %v1449, %v1587
        %v1691 = vadd.f32 %v1450, %v1590
        %v1692 = vadd.f32 %v1451, %v1592
        %v1693 = vadd.f32 %v1452, %v1595
        %v1694 = vadd.f32 %v1453, %v1597
        %v1695 = vadd.f32 %v1454, %v1600
        %v1696 = vadd.f32 %v1455, %v1602
        %v1697 = vadd.f32 %v1456, %v1605
        %v1698 = vadd.f32 %v1457, %v1607
        %v1699 = vadd.f32 %v1458, %v1610
        %v1700 = vadd.f32 %v1459, %v1612
        %v1701 = vadd.f32 %v1460, %v1615
        %v1702 = vadd.f32 %v1461, %v1617
        %v1703 = vadd.f32 %v1462, %v1620
        %v1704 = vadd.f32 %v1463, %v1622
        %v1705 = vadd.f32 %v1464, %v1625
        %v1706 = vadd.f32 %v1465, %v1627
        %v1707 = vadd.f32 %v1466, %v1630
        %v1708 = vadd.f32 %v1467, %v1632
        %v1709 = vadd.f32 %v1468, %v1635
        %v1710 = vadd.f32 %v1469, %v1637
        %v1711 = vadd.f32 %v1470, %v1640
        %v1712 = vadd.f32 %v1471, %v1642
        %v1713 = vadd.f32 %v1472, %v1645
        %v1714 = vadd.f32 %v1473, %v1647
        %v1715 = vadd.f32 %v1474, %v1650
        %v1716 = vadd.f32 %v1475, %v1652
        %v1717 = vperm.slane %v651, 6
        %v1718 = vmul.f32 %v619, %v1717
        %v1719 = vmul.f32 %v524, %v1717
        %v1720 = vmul.f32 %v620, %v1717
        %v1721 = vmul.f32 %v527, %v1717
        %v1722 = vmul.f32 %v621, %v1717
        %v1723 = vmul.f32 %v530, %v1717
        %v1724 = vmul.f32 %v622, %v1717
        %v1725 = vmul.f32 %v533, %v1717
        %v1726 = vmul.f32 %v623, %v1717
        %v1727 = vmul.f32 %v536, %v1717
        %v1728 = vmul.f32 %v624, %v1717
        %v1729 = vmul.f32 %v539, %v1717
        %v1730 = vmul.f32 %v625, %v1717
        %v1731 = vmul.f32 %v542, %v1717
        %v1732 = vmul.f32 %v626, %v1717
        %v1733 = vmul.f32 %v545, %v1717
        %v1734 = vmul.f32 %v627, %v1717
        %v1735 = vmul.f32 %v548, %v1717
        %v1736 = vmul.f32 %v628, %v1717
        %v1737 = vmul.f32 %v551, %v1717
        %v1738 = vmul.f32 %v629, %v1717
        %v1739 = vmul.f32 %v554, %v1717
        %v1740 = vmul.f32 %v630, %v1717
        %v1741 = vmul.f32 %v557, %v1717
        %v1742 = vmul.f32 %v631, %v1717
        %v1743 = vmul.f32 %v560, %v1717
        %v1744 = vmul.f32 %v632, %v1717
        %v1745 = vmul.f32 %v563, %v1717
        %v1746 = vmul.f32 %v633, %v1717
        %v1747 = vmul.f32 %v566, %v1717
        %v1748 = vmul.f32 %v617, %v1717
        %v1749 = vmul.f32 %v518, %v1717
        %v1750 = vadd.f32 %v1685, %v1718
        %v1751 = vadd.f32 %v1686, %v1719
        %v1752 = vadd.f32 %v1687, %v1720
        %v1753 = vadd.f32 %v1688, %v1721
        %v1754 = vadd.f32 %v1689, %v1722
        %v1755 = vadd.f32 %v1690, %v1723
        %v1756 = vadd.f32 %v1691, %v1724
        %v1757 = vadd.f32 %v1692, %v1725
        %v1758 = vadd.f32 %v1693, %v1726
        %v1759 = vadd.f32 %v1694, %v1727
        %v1760 = vadd.f32 %v1695, %v1728
        %v1761 = vadd.f32 %v1696, %v1729
        %v1762 = vadd.f32 %v1697, %v1730
        %v1763 = vadd.f32 %v1698, %v1731
        %v1764 = vadd.f32 %v1699, %v1732
        %v1765 = vadd.f32 %v1700, %v1733
        %v1766 = vadd.f32 %v1701, %v1734
        %v1767 = vadd.f32 %v1702, %v1735
        %v1768 = vadd.f32 %v1703, %v1736
        %v1769 = vadd.f32 %v1704, %v1737
        %v1770 = vadd.f32 %v1705, %v1738
        %v1771 = vadd.f32 %v1706, %v1739
        %v1772 = vadd.f32 %v1707, %v1740
        %v1773 = vadd.f32 %v1708, %v1741
        %v1774 = vadd.f32 %v1709, %v1742
        %v1775 = vadd.f32 %v1710, %v1743
        %v1776 = vadd.f32 %v1711, %v1744
        %v1777 = vadd.f32 %v1712, %v1745
        %v1778 = vadd.f32 %v1713, %v1746
        %v1779 = vadd.f32 %v1714, %v1747
        %v1780 = vadd.f32 %v1715, %v1748
        %v1781 = vadd.f32 %v1716, %v1749
        %v1782 = vperm.slane %v651, 7
        %v1783 = vmul.f32 %v619, %v1782
        %v1784 = vmul.f32 %v524, %v1782
        %v1785 = vmul.f32 %v636, %v1782
        %v1786 = vmul.f32 %v620, %v1782
        %v1787 = vmul.f32 %v527, %v1782
        %v1788 = vmul.f32 %v637, %v1782
        %v1789 = vmul.f32 %v621, %v1782
        %v1790 = vmul.f32 %v530, %v1782
        %v1791 = vmul.f32 %v638, %v1782
        %v1792 = vmul.f32 %v622, %v1782
        %v1793 = vmul.f32 %v533, %v1782
        %v1794 = vmul.f32 %v639, %v1782
        %v1795 = vmul.f32 %v623, %v1782
        %v1796 = vmul.f32 %v536, %v1782
        %v1797 = vmul.f32 %v640, %v1782
        %v1798 = vmul.f32 %v624, %v1782
        %v1799 = vmul.f32 %v539, %v1782
        %v1800 = vmul.f32 %v641, %v1782
        %v1801 = vmul.f32 %v625, %v1782
        %v1802 = vmul.f32 %v542, %v1782
        %v1803 = vmul.f32 %v642, %v1782
        %v1804 = vmul.f32 %v626, %v1782
        %v1805 = vmul.f32 %v545, %v1782
        %v1806 = vmul.f32 %v643, %v1782
        %v1807 = vmul.f32 %v627, %v1782
        %v1808 = vmul.f32 %v548, %v1782
        %v1809 = vmul.f32 %v644, %v1782
        %v1810 = vmul.f32 %v628, %v1782
        %v1811 = vmul.f32 %v551, %v1782
        %v1812 = vmul.f32 %v645, %v1782
        %v1813 = vmul.f32 %v629, %v1782
        %v1814 = vmul.f32 %v554, %v1782
        %v1815 = vmul.f32 %v646, %v1782
        %v1816 = vmul.f32 %v630, %v1782
        %v1817 = vmul.f32 %v557, %v1782
        %v1818 = vmul.f32 %v647, %v1782
        %v1819 = vmul.f32 %v631, %v1782
        %v1820 = vmul.f32 %v560, %v1782
        %v1821 = vmul.f32 %v648, %v1782
        %v1822 = vmul.f32 %v632, %v1782
        %v1823 = vmul.f32 %v563, %v1782
        %v1824 = vmul.f32 %v649, %v1782
        %v1825 = vmul.f32 %v633, %v1782
        %v1826 = vmul.f32 %v566, %v1782
        %v1827 = vmul.f32 %v650, %v1782
        %v1828 = vmul.f32 %v617, %v1782
        %v1829 = vmul.f32 %v518, %v1782
        %v1830 = vmul.f32 %v634, %v1782
        %v1879 = vrot.slane %v1783, 1
        %v1880 = vrot.slane %v1784, 1
        %v1881 = vsel %vm783, %v1879, %v1880
        %v1882 = vrot.slane %v1785, 1
        %v1883 = vsel %vm783, %v1880, %v1882
        %v1884 = vrot.slane %v1786, 1
        %v1885 = vrot.slane %v1787, 1
        %v1886 = vsel %vm783, %v1884, %v1885
        %v1887 = vrot.slane %v1788, 1
        %v1888 = vsel %vm783, %v1885, %v1887
        %v1889 = vrot.slane %v1789, 1
        %v1890 = vrot.slane %v1790, 1
        %v1891 = vsel %vm783, %v1889, %v1890
        %v1892 = vrot.slane %v1791, 1
        %v1893 = vsel %vm783, %v1890, %v1892
        %v1894 = vrot.slane %v1792, 1
        %v1895 = vrot.slane %v1793, 1
        %v1896 = vsel %vm783, %v1894, %v1895
        %v1897 = vrot.slane %v1794, 1
        %v1898 = vsel %vm783, %v1895, %v1897
        %v1899 = vrot.slane %v1795, 1
        %v1900 = vrot.slane %v1796, 1
        %v1901 = vsel %vm783, %v1899, %v1900
        %v1902 = vrot.slane %v1797, 1
        %v1903 = vsel %vm783, %v1900, %v1902
        %v1904 = vrot.slane %v1798, 1
        %v1905 = vrot.slane %v1799, 1
        %v1906 = vsel %vm783, %v1904, %v1905
        %v1907 = vrot.slane %v1800, 1
        %v1908 = vsel %vm783, %v1905, %v1907
        %v1909 = vrot.slane %v1801, 1
        %v1910 = vrot.slane %v1802, 1
        %v1911 = vsel %vm783, %v1909, %v1910
        %v1912 = vrot.slane %v1803, 1
        %v1913 = vsel %vm783, %v1910, %v1912
        %v1914 = vrot.slane %v1804, 1
        %v1915 = vrot.slane %v1805, 1
        %v1916 = vsel %vm783, %v1914, %v1915
        %v1917 = vrot.slane %v1806, 1
        %v1918 = vsel %vm783, %v1915, %v1917
        %v1919 = vrot.slane %v1807, 1
        %v1920 = vrot.slane %v1808, 1
        %v1921 = vsel %vm783, %v1919, %v1920
        %v1922 = vrot.slane %v1809, 1
        %v1923 = vsel %vm783, %v1920, %v1922
        %v1924 = vrot.slane %v1810, 1
        %v1925 = vrot.slane %v1811, 1
        %v1926 = vsel %vm783, %v1924, %v1925
        %v1927 = vrot.slane %v1812, 1
        %v1928 = vsel %vm783, %v1925, %v1927
        %v1929 = vrot.slane %v1813, 1
        %v1930 = vrot.slane %v1814, 1
        %v1931 = vsel %vm783, %v1929, %v1930
        %v1932 = vrot.slane %v1815, 1
        %v1933 = vsel %vm783, %v1930, %v1932
        %v1934 = vrot.slane %v1816, 1
        %v1935 = vrot.slane %v1817, 1
        %v1936 = vsel %vm783, %v1934, %v1935
        %v1937 = vrot.slane %v1818, 1
        %v1938 = vsel %vm783, %v1935, %v1937
        %v1939 = vrot.slane %v1819, 1
        %v1940 = vrot.slane %v1820, 1
        %v1941 = vsel %vm783, %v1939, %v1940
        %v1942 = vrot.slane %v1821, 1
        %v1943 = vsel %vm783, %v1940, %v1942
        %v1944 = vrot.slane %v1822, 1
        %v1945 = vrot.slane %v1823, 1
        %v1946 = vsel %vm783, %v1944, %v1945
        %v1947 = vrot.slane %v1824, 1
        %v1948 = vsel %vm783, %v1945, %v1947
        %v1949 = vrot.slane %v1825, 1
        %v1950 = vrot.slane %v1826, 1
        %v1951 = vsel %vm783, %v1949, %v1950
        %v1952 = vrot.slane %v1827, 1
        %v1953 = vsel %vm783, %v1950, %v1952
        %v1954 = vrot.slane %v1828, 1
        %v1955 = vrot.slane %v1829, 1
        %v1956 = vsel %vm783, %v1954, %v1955
        %v1957 = vrot.slane %v1830, 1
        %v1958 = vsel %vm783, %v1955, %v1957
        %v1991 = vadd.f32 %v1750, %v1881
        %v1992 = vadd.f32 %v1751, %v1883
        %v1993 = vadd.f32 %v1752, %v1886
        %v1994 = vadd.f32 %v1753, %v1888
        %v1995 = vadd.f32 %v1754, %v1891
        %v1996 = vadd.f32 %v1755, %v1893
        %v1997 = vadd.f32 %v1756, %v1896
        %v1998 = vadd.f32 %v1757, %v1898
        %v1999 = vadd.f32 %v1758, %v1901
        %v2000 = vadd.f32 %v1759, %v1903
        %v2001 = vadd.f32 %v1760, %v1906
        %v2002 = vadd.f32 %v1761, %v1908
        %v2003 = vadd.f32 %v1762, %v1911
        %v2004 = vadd.f32 %v1763, %v1913
        %v2005 = vadd.f32 %v1764, %v1916
        %v2006 = vadd.f32 %v1765, %v1918
        %v2007 = vadd.f32 %v1766, %v1921
        %v2008 = vadd.f32 %v1767, %v1923
        %v2009 = vadd.f32 %v1768, %v1926
        %v2010 = vadd.f32 %v1769, %v1928
        %v2011 = vadd.f32 %v1770, %v1931
        %v2012 = vadd.f32 %v1771, %v1933
        %v2013 = vadd.f32 %v1772, %v1936
        %v2014 = vadd.f32 %v1773, %v1938
        %v2015 = vadd.f32 %v1774, %v1941
        %v2016 = vadd.f32 %v1775, %v1943
        %v2017 = vadd.f32 %v1776, %v1946
        %v2018 = vadd.f32 %v1777, %v1948
        %v2019 = vadd.f32 %v1778, %v1951
        %v2020 = vadd.f32 %v1779, %v1953
        %v2021 = vadd.f32 %v1780, %v1956
        %v2022 = vadd.f32 %v1781, %v1958
        %v2023 = vperm.slane %v652, 0
        %v2024 = vmul.f32 %v619, %v2023
        %v2025 = vmul.f32 %v524, %v2023
        %v2026 = vmul.f32 %v636, %v2023
        %v2027 = vmul.f32 %v620, %v2023
        %v2028 = vmul.f32 %v527, %v2023
        %v2029 = vmul.f32 %v637, %v2023
        %v2030 = vmul.f32 %v621, %v2023
        %v2031 = vmul.f32 %v530, %v2023
        %v2032 = vmul.f32 %v638, %v2023
        %v2033 = vmul.f32 %v622, %v2023
        %v2034 = vmul.f32 %v533, %v2023
        %v2035 = vmul.f32 %v639, %v2023
        %v2036 = vmul.f32 %v623, %v2023
        %v2037 = vmul.f32 %v536, %v2023
        %v2038 = vmul.f32 %v640, %v2023
        %v2039 = vmul.f32 %v624, %v2023
        %v2040 = vmul.f32 %v539, %v2023
        %v2041 = vmul.f32 %v641, %v2023
        %v2042 = vmul.f32 %v625, %v2023
        %v2043 = vmul.f32 %v542, %v2023
        %v2044 = vmul.f32 %v642, %v2023
        %v2045 = vmul.f32 %v626, %v2023
        %v2046 = vmul.f32 %v545, %v2023
        %v2047 = vmul.f32 %v643, %v2023
        %v2048 = vmul.f32 %v627, %v2023
        %v2049 = vmul.f32 %v548, %v2023
        %v2050 = vmul.f32 %v644, %v2023
        %v2051 = vmul.f32 %v628, %v2023
        %v2052 = vmul.f32 %v551, %v2023
        %v2053 = vmul.f32 %v645, %v2023
        %v2054 = vmul.f32 %v629, %v2023
        %v2055 = vmul.f32 %v554, %v2023
        %v2056 = vmul.f32 %v646, %v2023
        %v2057 = vmul.f32 %v630, %v2023
        %v2058 = vmul.f32 %v557, %v2023
        %v2059 = vmul.f32 %v647, %v2023
        %v2060 = vmul.f32 %v631, %v2023
        %v2061 = vmul.f32 %v560, %v2023
        %v2062 = vmul.f32 %v648, %v2023
        %v2063 = vmul.f32 %v632, %v2023
        %v2064 = vmul.f32 %v563, %v2023
        %v2065 = vmul.f32 %v649, %v2023
        %v2066 = vmul.f32 %v633, %v2023
        %v2067 = vmul.f32 %v566, %v2023
        %v2068 = vmul.f32 %v650, %v2023
        %v2069 = vmul.f32 %v617, %v2023
        %v2070 = vmul.f32 %v518, %v2023
        %v2071 = vmul.f32 %v634, %v2023
        %v2120 = vrot.slane %v2024, 2
        %v2121 = vrot.slane %v2025, 2
        %v2122 = vsel %vm1025, %v2120, %v2121
        %v2123 = vrot.slane %v2026, 2
        %v2124 = vsel %vm1025, %v2121, %v2123
        %v2125 = vrot.slane %v2027, 2
        %v2126 = vrot.slane %v2028, 2
        %v2127 = vsel %vm1025, %v2125, %v2126
        %v2128 = vrot.slane %v2029, 2
        %v2129 = vsel %vm1025, %v2126, %v2128
        %v2130 = vrot.slane %v2030, 2
        %v2131 = vrot.slane %v2031, 2
        %v2132 = vsel %vm1025, %v2130, %v2131
        %v2133 = vrot.slane %v2032, 2
        %v2134 = vsel %vm1025, %v2131, %v2133
        %v2135 = vrot.slane %v2033, 2
        %v2136 = vrot.slane %v2034, 2
        %v2137 = vsel %vm1025, %v2135, %v2136
        %v2138 = vrot.slane %v2035, 2
        %v2139 = vsel %vm1025, %v2136, %v2138
        %v2140 = vrot.slane %v2036, 2
        %v2141 = vrot.slane %v2037, 2
        %v2142 = vsel %vm1025, %v2140, %v2141
        %v2143 = vrot.slane %v2038, 2
        %v2144 = vsel %vm1025, %v2141, %v2143
        %v2145 = vrot.slane %v2039, 2
        %v2146 = vrot.slane %v2040, 2
        %v2147 = vsel %vm1025, %v2145, %v2146
        %v2148 = vrot.slane %v2041, 2
        %v2149 = vsel %vm1025, %v2146, %v2148
        %v2150 = vrot.slane %v2042, 2
        %v2151 = vrot.slane %v2043, 2
        %v2152 = vsel %vm1025, %v2150, %v2151
        %v2153 = vrot.slane %v2044, 2
        %v2154 = vsel %vm1025, %v2151, %v2153
        %v2155 = vrot.slane %v2045, 2
        %v2156 = vrot.slane %v2046, 2
        %v2157 = vsel %vm1025, %v2155, %v2156
        %v2158 = vrot.slane %v2047, 2
        %v2159 = vsel %vm1025, %v2156, %v2158
        %v2160 = vrot.slane %v2048, 2
        %v2161 = vrot.slane %v2049, 2
        %v2162 = vsel %vm1025, %v2160, %v2161
        %v2163 = vrot.slane %v2050, 2
        %v2164 = vsel %vm1025, %v2161, %v2163
        %v2165 = vrot.slane %v2051, 2
        %v2166 = vrot.slane %v2052, 2
        %v2167 = vsel %vm1025, %v2165, %v2166
        %v2168 = vrot.slane %v2053, 2
        %v2169 = vsel %vm1025, %v2166, %v2168
        %v2170 = vrot.slane %v2054, 2
        %v2171 = vrot.slane %v2055, 2
        %v2172 = vsel %vm1025, %v2170, %v2171
        %v2173 = vrot.slane %v2056, 2
        %v2174 = vsel %vm1025, %v2171, %v2173
        %v2175 = vrot.slane %v2057, 2
        %v2176 = vrot.slane %v2058, 2
        %v2177 = vsel %vm1025, %v2175, %v2176
        %v2178 = vrot.slane %v2059, 2
        %v2179 = vsel %vm1025, %v2176, %v2178
        %v2180 = vrot.slane %v2060, 2
        %v2181 = vrot.slane %v2061, 2
        %v2182 = vsel %vm1025, %v2180, %v2181
        %v2183 = vrot.slane %v2062, 2
        %v2184 = vsel %vm1025, %v2181, %v2183
        %v2185 = vrot.slane %v2063, 2
        %v2186 = vrot.slane %v2064, 2
        %v2187 = vsel %vm1025, %v2185, %v2186
        %v2188 = vrot.slane %v2065, 2
        %v2189 = vsel %vm1025, %v2186, %v2188
        %v2190 = vrot.slane %v2066, 2
        %v2191 = vrot.slane %v2067, 2
        %v2192 = vsel %vm1025, %v2190, %v2191
        %v2193 = vrot.slane %v2068, 2
        %v2194 = vsel %vm1025, %v2191, %v2193
        %v2195 = vrot.slane %v2069, 2
        %v2196 = vrot.slane %v2070, 2
        %v2197 = vsel %vm1025, %v2195, %v2196
        %v2198 = vrot.slane %v2071, 2
        %v2199 = vsel %vm1025, %v2196, %v2198
        %v2232 = vadd.f32 %v1991, %v2122
        %v2233 = vadd.f32 %v1992, %v2124
        %v2234 = vadd.f32 %v1993, %v2127
        %v2235 = vadd.f32 %v1994, %v2129
        %v2236 = vadd.f32 %v1995, %v2132
        %v2237 = vadd.f32 %v1996, %v2134
        %v2238 = vadd.f32 %v1997, %v2137
        %v2239 = vadd.f32 %v1998, %v2139
        %v2240 = vadd.f32 %v1999, %v2142
        %v2241 = vadd.f32 %v2000, %v2144
        %v2242 = vadd.f32 %v2001, %v2147
        %v2243 = vadd.f32 %v2002, %v2149
        %v2244 = vadd.f32 %v2003, %v2152
        %v2245 = vadd.f32 %v2004, %v2154
        %v2246 = vadd.f32 %v2005, %v2157
        %v2247 = vadd.f32 %v2006, %v2159
        %v2248 = vadd.f32 %v2007, %v2162
        %v2249 = vadd.f32 %v2008, %v2164
        %v2250 = vadd.f32 %v2009, %v2167
        %v2251 = vadd.f32 %v2010, %v2169
        %v2252 = vadd.f32 %v2011, %v2172
        %v2253 = vadd.f32 %v2012, %v2174
        %v2254 = vadd.f32 %v2013, %v2177
        %v2255 = vadd.f32 %v2014, %v2179
        %v2256 = vadd.f32 %v2015, %v2182
        %v2257 = vadd.f32 %v2016, %v2184
        %v2258 = vadd.f32 %v2017, %v2187
        %v2259 = vadd.f32 %v2018, %v2189
        %v2260 = vadd.f32 %v2019, %v2192
        %v2261 = vadd.f32 %v2020, %v2194
        %v2262 = vadd.f32 %v2021, %v2197
        %v2263 = vadd.f32 %v2022, %v2199
        %v2264 = vld [vmem:[#allocation7] sm:$0xff]
        %v2265 = vld [vmem:[#allocation7 + $0x8] sm:$0xff]
        %v2266 = vld [vmem:[#allocation7 + $0x10] sm:$0xff]
        %v2267 = vld [vmem:[#allocation7 + $0x18] sm:$0xff]
        %v2268 = vld [vmem:[#allocation7 + $0x20] sm:$0xff]
        %v2269 = vld [vmem:[#allocation7 + $0x28] sm:$0xff]
        %v2270 = vld [vmem:[#allocation7 + $0x30] sm:$0xff]
        %v2271 = vld [vmem:[#allocation7 + $0x38] sm:$0xff]
        %vm2272 = vcmask 523264
        %v2274 = vsel %vm2272, %v2232, 0
        %v2277 = vsel %vm2272, %v2233, 0
        %v2280 = vsel %vm2272, %v2234, 0
        %v2283 = vsel %vm2272, %v2235, 0
        %v2286 = vsel %vm2272, %v2236, 0
        %v2289 = vsel %vm2272, %v2237, 0
        %v2292 = vsel %vm2272, %v2238, 0
        %v2295 = vsel %vm2272, %v2239, 0
        %v2298 = vsel %vm2272, %v2240, 0
        %v2301 = vsel %vm2272, %v2241, 0
        %v2304 = vsel %vm2272, %v2242, 0
        %v2307 = vsel %vm2272, %v2243, 0
        %v2310 = vsel %vm2272, %v2244, 0
        %v2313 = vsel %vm2272, %v2245, 0
        %v2316 = vsel %vm2272, %v2246, 0
        %v2319 = vsel %vm2272, %v2247, 0
        %v2322 = vsel %vm2272, %v2248, 0
        %v2325 = vsel %vm2272, %v2249, 0
        %v2328 = vsel %vm2272, %v2250, 0
        %v2331 = vsel %vm2272, %v2251, 0
        %v2334 = vsel %vm2272, %v2252, 0
        %v2337 = vsel %vm2272, %v2253, 0
        %v2340 = vsel %vm2272, %v2254, 0
        %v2343 = vsel %vm2272, %v2255, 0
        %v2346 = vsel %vm2272, %v2256, 0
        %v2349 = vsel %vm2272, %v2257, 0
        %v2352 = vsel %vm2272, %v2258, 0
        %v2355 = vsel %vm2272, %v2259, 0
        %v2358 = vsel %vm2272, %v2260, 0
        %v2361 = vsel %vm2272, %v2261, 0
        %v2364 = vsel %vm2272, %v2262, 0
        %v2367 = vsel %vm2272, %v2263, 0
        %2369 = vmatpush.msra.mxu0 0.0
        %2370 = vmatpush.msra.mxu0 0.0
        %2371 = vmatpush.msra.mxu0 0.0
        %2372 = vmatpush.msra.mxu0 0.0
        %2373 = vmatpush.msra.mxu0 0.0
        %2374 = vmatpush.msra.mxu0 0.0
        %2375 = vmatpush.msra.mxu0 0.0
        %2376 = vmatpush.msra.mxu0 0.0
        %2377 = vmatpush.msra.mxu0 %v2271
        %2378 = vmatpush.msra.mxu0 %v2270
        %2379 = vmatpush.msra.mxu0 %v2269
        %2380 = vmatpush.msra.mxu0 %v2268
        %2381 = vmatpush.msra.mxu0 %v2267
        %2382 = vmatpush.msra.mxu0 %v2266
        %2383 = vmatpush.msra.mxu0 %v2265
        %2384 = vmatpush.msra.mxu0 %v2264
        %2385 = vmatmul.f32.gmra.mxu0 %v2274
        %v2386 = vpop.f32.mrf.mxu0
        %v2387 = vadd.f32 0.0, %v2386
        %2388 = vmatmul.f32.gmra.mxu0 %v2277
        %v2389 = vpop.f32.mrf.mxu0
        %v2390 = vadd.f32 0.0, %v2389
        %2391 = vmatmul.f32.gmra.mxu0 %v2280
        %v2392 = vpop.f32.mrf.mxu0
        %v2393 = vadd.f32 0.0, %v2392
        %2394 = vmatmul.f32.gmra.mxu0 %v2283
        %v2395 = vpop.f32.mrf.mxu0
        %v2396 = vadd.f32 0.0, %v2395
        %2397 = vmatmul.f32.gmra.mxu0 %v2286
        %v2398 = vpop.f32.mrf.mxu0
        %v2399 = vadd.f32 0.0, %v2398
        %2400 = vmatmul.f32.gmra.mxu0 %v2289
        %v2401 = vpop.f32.mrf.mxu0
        %v2402 = vadd.f32 0.0, %v2401
        %2403 = vmatmul.f32.gmra.mxu0 %v2292
        %v2404 = vpop.f32.mrf.mxu0
        %v2405 = vadd.f32 0.0, %v2404
        %2406 = vmatmul.f32.gmra.mxu0 %v2295
        %v2407 = vpop.f32.mrf.mxu0
        %v2408 = vadd.f32 0.0, %v2407
        %2409 = vmatmul.f32.gmra.mxu0 %v2298
        %v2410 = vpop.f32.mrf.mxu0
        %v2411 = vadd.f32 0.0, %v2410
        %2412 = vmatmul.f32.gmra.mxu0 %v2301
        %v2413 = vpop.f32.mrf.mxu0
        %v2414 = vadd.f32 0.0, %v2413
        %2415 = vmatmul.f32.gmra.mxu0 %v2304
        %v2416 = vpop.f32.mrf.mxu0
        %v2417 = vadd.f32 0.0, %v2416
        %2418 = vmatmul.f32.gmra.mxu0 %v2307
        %v2419 = vpop.f32.mrf.mxu0
        %v2420 = vadd.f32 0.0, %v2419
        %2421 = vmatmul.f32.gmra.mxu0 %v2310
        %v2422 = vpop.f32.mrf.mxu0
        %v2423 = vadd.f32 0.0, %v2422
        %2424 = vmatmul.f32.gmra.mxu0 %v2313
        %v2425 = vpop.f32.mrf.mxu0
        %v2426 = vadd.f32 0.0, %v2425
        %2427 = vmatmul.f32.gmra.mxu0 %v2316
        %v2428 = vpop.f32.mrf.mxu0
        %v2429 = vadd.f32 0.0, %v2428
        %2430 = vmatmul.f32.gmra.mxu0 %v2319
        %v2431 = vpop.f32.mrf.mxu0
        %v2432 = vadd.f32 0.0, %v2431
        %2433 = vmatmul.f32.gmra.mxu0 %v2322
        %v2434 = vpop.f32.mrf.mxu0
        %v2435 = vadd.f32 0.0, %v2434
        %2436 = vmatmul.f32.gmra.mxu0 %v2325
        %v2437 = vpop.f32.mrf.mxu0
        %v2438 = vadd.f32 0.0, %v2437
        %2439 = vmatmul.f32.gmra.mxu0 %v2328
        %v2440 = vpop.f32.mrf.mxu0
        %v2441 = vadd.f32 0.0, %v2440
        %2442 = vmatmul.f32.gmra.mxu0 %v2331
        %v2443 = vpop.f32.mrf.mxu0
        %v2444 = vadd.f32 0.0, %v2443
        %2445 = vmatmul.f32.gmra.mxu0 %v2334
        %v2446 = vpop.f32.mrf.mxu0
        %v2447 = vadd.f32 0.0, %v2446
        %2448 = vmatmul.f32.gmra.mxu0 %v2337
        %v2449 = vpop.f32.mrf.mxu0
        %v2450 = vadd.f32 0.0, %v2449
        %2451 = vmatmul.f32.gmra.mxu0 %v2340
        %v2452 = vpop.f32.mrf.mxu0
        %v2453 = vadd.f32 0.0, %v2452
        %2454 = vmatmul.f32.gmra.mxu0 %v2343
        %v2455 = vpop.f32.mrf.mxu0
        %v2456 = vadd.f32 0.0, %v2455
        %2457 = vmatmul.f32.gmra.mxu0 %v2346
        %v2458 = vpop.f32.mrf.mxu0
        %v2459 = vadd.f32 0.0, %v2458
        %2460 = vmatmul.f32.gmra.mxu0 %v2349
        %v2461 = vpop.f32.mrf.mxu0
        %v2462 = vadd.f32 0.0, %v2461
        %2463 = vmatmul.f32.gmra.mxu0 %v2352
        %v2464 = vpop.f32.mrf.mxu0
        %v2465 = vadd.f32 0.0, %v2464
        %2466 = vmatmul.f32.gmra.mxu0 %v2355
        %v2467 = vpop.f32.mrf.mxu0
        %v2468 = vadd.f32 0.0, %v2467
        %2469 = vmatmul.f32.gmra.mxu0 %v2358
        %v2470 = vpop.f32.mrf.mxu0
        %v2471 = vadd.f32 0.0, %v2470
        %2472 = vmatmul.f32.gmra.mxu0 %v2361
        %v2473 = vpop.f32.mrf.mxu0
        %v2474 = vadd.f32 0.0, %v2473
        %2475 = vmatmul.f32.gmra.mxu0 %v2364
        %v2476 = vpop.f32.mrf.mxu0
        %v2477 = vadd.f32 0.0, %v2476
        %2478 = vmatmul.f32.gmra.mxu0 %v2367
        %v2479 = vpop.f32.mrf.mxu0
        %v2480 = vadd.f32 0.0, %v2479
        %2481 = vdwg.mxu0
        %v2482 = vld [vmem:[%s3] sm:$0x1]
        %v2484 = vperm.slane %v2482, 0
        %v2486 = vmul.f32 %v2387, %v2484
        %v2487 = vmul.f32 %v2390, %v2484
        %v2488 = vmul.f32 %v2393, %v2484
        %v2489 = vmul.f32 %v2396, %v2484
        %v2490 = vmul.f32 %v2399, %v2484
        %v2491 = vmul.f32 %v2402, %v2484
        %v2492 = vmul.f32 %v2405, %v2484
        %v2493 = vmul.f32 %v2408, %v2484
        %v2494 = vmul.f32 %v2411, %v2484
        %v2495 = vmul.f32 %v2414, %v2484
        %v2496 = vmul.f32 %v2417, %v2484
        %v2497 = vmul.f32 %v2420, %v2484
        %v2498 = vmul.f32 %v2423, %v2484
        %v2499 = vmul.f32 %v2426, %v2484
        %v2500 = vmul.f32 %v2429, %v2484
        %v2501 = vmul.f32 %v2432, %v2484
        %v2502 = vmul.f32 %v2435, %v2484
        %v2503 = vmul.f32 %v2438, %v2484
        %v2504 = vmul.f32 %v2441, %v2484
        %v2505 = vmul.f32 %v2444, %v2484
        %v2506 = vmul.f32 %v2447, %v2484
        %v2507 = vmul.f32 %v2450, %v2484
        %v2508 = vmul.f32 %v2453, %v2484
        %v2509 = vmul.f32 %v2456, %v2484
        %v2510 = vmul.f32 %v2459, %v2484
        %v2511 = vmul.f32 %v2462, %v2484
        %v2512 = vmul.f32 %v2465, %v2484
        %v2513 = vmul.f32 %v2468, %v2484
        %v2514 = vmul.f32 %v2471, %v2484
        %v2515 = vmul.f32 %v2474, %v2484
        %v2516 = vmul.f32 %v2477, %v2484
        %v2517 = vmul.f32 %v2480, %v2484
        %v2518 = vld [vmem:[%s4] sm:$0x1]
        %v2520 = vperm.slane %v2518, 0
        %v2522 = vadd.f32 %v2486, %v2520
        %v2523 = vadd.f32 %v2487, %v2520
        %v2524 = vadd.f32 %v2488, %v2520
        %v2525 = vadd.f32 %v2489, %v2520
        %v2526 = vadd.f32 %v2490, %v2520
        %v2527 = vadd.f32 %v2491, %v2520
        %v2528 = vadd.f32 %v2492, %v2520
        %v2529 = vadd.f32 %v2493, %v2520
        %v2530 = vadd.f32 %v2494, %v2520
        %v2531 = vadd.f32 %v2495, %v2520
        %v2532 = vadd.f32 %v2496, %v2520
        %v2533 = vadd.f32 %v2497, %v2520
        %v2534 = vadd.f32 %v2498, %v2520
        %v2535 = vadd.f32 %v2499, %v2520
        %v2536 = vadd.f32 %v2500, %v2520
        %v2537 = vadd.f32 %v2501, %v2520
        %v2538 = vadd.f32 %v2502, %v2520
        %v2539 = vadd.f32 %v2503, %v2520
        %v2540 = vadd.f32 %v2504, %v2520
        %v2541 = vadd.f32 %v2505, %v2520
        %v2542 = vadd.f32 %v2506, %v2520
        %v2543 = vadd.f32 %v2507, %v2520
        %v2544 = vadd.f32 %v2508, %v2520
        %v2545 = vadd.f32 %v2509, %v2520
        %v2546 = vadd.f32 %v2510, %v2520
        %v2547 = vadd.f32 %v2511, %v2520
        %v2548 = vadd.f32 %v2512, %v2520
        %v2549 = vadd.f32 %v2513, %v2520
        %v2550 = vadd.f32 %v2514, %v2520
        %v2551 = vadd.f32 %v2515, %v2520
        %v2552 = vadd.f32 %v2516, %v2520
        %v2553 = vadd.f32 %v2517, %v2520
        %v2554 = vmax.f32 %v2522, 0.0
        %v2555 = vmax.f32 %v2523, 0.0
        %v2556 = vmax.f32 %v2524, 0.0
        %v2557 = vmax.f32 %v2525, 0.0
        %v2558 = vmax.f32 %v2526, 0.0
        %v2559 = vmax.f32 %v2527, 0.0
        %v2560 = vmax.f32 %v2528, 0.0
        %v2561 = vmax.f32 %v2529, 0.0
        %v2562 = vmax.f32 %v2530, 0.0
        %v2563 = vmax.f32 %v2531, 0.0
        %v2564 = vmax.f32 %v2532, 0.0
        %v2565 = vmax.f32 %v2533, 0.0
        %v2566 = vmax.f32 %v2534, 0.0
        %v2567 = vmax.f32 %v2535, 0.0
        %v2568 = vmax.f32 %v2536, 0.0
        %v2569 = vmax.f32 %v2537, 0.0
        %v2570 = vmax.f32 %v2538, 0.0
        %v2571 = vmax.f32 %v2539, 0.0
        %v2572 = vmax.f32 %v2540, 0.0
        %v2573 = vmax.f32 %v2541, 0.0
        %v2574 = vmax.f32 %v2542, 0.0
        %v2575 = vmax.f32 %v2543, 0.0
        %v2576 = vmax.f32 %v2544, 0.0
        %v2577 = vmax.f32 %v2545, 0.0
        %v2578 = vmax.f32 %v2546, 0.0
        %v2579 = vmax.f32 %v2547, 0.0
        %v2580 = vmax.f32 %v2548, 0.0
        %v2581 = vmax.f32 %v2549, 0.0
        %v2582 = vmax.f32 %v2550, 0.0
        %v2583 = vmax.f32 %v2551, 0.0
        %v2584 = vmax.f32 %v2552, 0.0
        %v2585 = vmax.f32 %v2553, 0.0
        %v2618 = vrot.slane %v2554, 7
        %v2619 = vrot.slane %v2555, 7
        %v2620 = vsel %vm516, %v2618, %v2619
        %v2621 = vrot.slane %v2556, 7
        %v2622 = vrot.slane %v2557, 7
        %v2623 = vsel %vm516, %v2621, %v2622
        %v2624 = vrot.slane %v2558, 7
        %v2625 = vrot.slane %v2559, 7
        %v2626 = vsel %vm516, %v2624, %v2625
        %v2627 = vrot.slane %v2560, 7
        %v2628 = vrot.slane %v2561, 7
        %v2629 = vsel %vm516, %v2627, %v2628
        %v2630 = vrot.slane %v2562, 7
        %v2631 = vrot.slane %v2563, 7
        %v2632 = vsel %vm516, %v2630, %v2631
        %v2633 = vrot.slane %v2564, 7
        %v2634 = vrot.slane %v2565, 7
        %v2635 = vsel %vm516, %v2633, %v2634
        %v2636 = vrot.slane %v2566, 7
        %v2637 = vrot.slane %v2567, 7
        %v2638 = vsel %vm516, %v2636, %v2637
        %v2639 = vrot.slane %v2568, 7
        %v2640 = vrot.slane %v2569, 7
        %v2641 = vsel %vm516, %v2639, %v2640
        %v2642 = vrot.slane %v2570, 7
        %v2643 = vrot.slane %v2571, 7
        %v2644 = vsel %vm516, %v2642, %v2643
        %v2645 = vrot.slane %v2572, 7
        %v2646 = vrot.slane %v2573, 7
        %v2647 = vsel %vm516, %v2645, %v2646
        %v2648 = vrot.slane %v2574, 7
        %v2649 = vrot.slane %v2575, 7
        %v2650 = vsel %vm516, %v2648, %v2649
        %v2651 = vrot.slane %v2576, 7
        %v2652 = vrot.slane %v2577, 7
        %v2653 = vsel %vm516, %v2651, %v2652
        %v2654 = vrot.slane %v2578, 7
        %v2655 = vrot.slane %v2579, 7
        %v2656 = vsel %vm516, %v2654, %v2655
        %v2657 = vrot.slane %v2580, 7
        %v2658 = vrot.slane %v2581, 7
        %v2659 = vsel %vm516, %v2657, %v2658
        %v2660 = vrot.slane %v2582, 7
        %v2661 = vrot.slane %v2583, 7
        %v2662 = vsel %vm516, %v2660, %v2661
        %v2663 = vrot.slane %v2584, 7
        %v2664 = vrot.slane %v2585, 7
        %v2665 = vsel %vm516, %v2663, %v2664
        %v2714 = vsel %vm516, 0.0, %v2618
        %v2715 = vsel %vm516, 0.0, %v2621
        %v2716 = vsel %vm516, 0.0, %v2624
        %v2717 = vsel %vm516, 0.0, %v2627
        %v2718 = vsel %vm516, 0.0, %v2630
        %v2719 = vsel %vm516, 0.0, %v2633
        %v2720 = vsel %vm516, 0.0, %v2636
        %v2721 = vsel %vm516, 0.0, %v2639
        %v2722 = vsel %vm516, 0.0, %v2642
        %v2723 = vsel %vm516, 0.0, %v2645
        %v2724 = vsel %vm516, 0.0, %v2648
        %v2725 = vsel %vm516, 0.0, %v2651
        %v2726 = vsel %vm516, 0.0, %v2654
        %v2727 = vsel %vm516, 0.0, %v2657
        %v2728 = vsel %vm516, 0.0, %v2660
        %v2729 = vsel %vm516, 0.0, %v2663
        %v2730 = vsel %vm516, %v2619, 0.0
        %v2731 = vsel %vm516, %v2622, 0.0
        %v2732 = vsel %vm516, %v2625, 0.0
        %v2733 = vsel %vm516, %v2628, 0.0
        %v2734 = vsel %vm516, %v2631, 0.0
        %v2735 = vsel %vm516, %v2634, 0.0
        %v2736 = vsel %vm516, %v2637, 0.0
        %v2737 = vsel %vm516, %v2640, 0.0
        %v2738 = vsel %vm516, %v2643, 0.0
        %v2739 = vsel %vm516, %v2646, 0.0
        %v2740 = vsel %vm516, %v2649, 0.0
        %v2741 = vsel %vm516, %v2652, 0.0
        %v2742 = vsel %vm516, %v2655, 0.0
        %v2743 = vsel %vm516, %v2658, 0.0
        %v2744 = vsel %vm516, %v2661, 0.0
        %v2745 = vsel %vm516, %v2664, 0.0
        %v2746 = vld [vmem:[#allocation8] sm:$0xff]
        %v2747 = vld [vmem:[#allocation8 + $0x8] sm:$0x1]
        %v2748 = vperm.slane %v2746, 0
        %v2749 = vmul.f32 %v617, %v2748
        %v2750 = vmul.f32 %v518, %v2748
        %v2751 = vmul.f32 %v2714, %v2748
        %v2752 = vmul.f32 %v2620, %v2748
        %v2753 = vmul.f32 %v2715, %v2748
        %v2754 = vmul.f32 %v2623, %v2748
        %v2755 = vmul.f32 %v2716, %v2748
        %v2756 = vmul.f32 %v2626, %v2748
        %v2757 = vmul.f32 %v2717, %v2748
        %v2758 = vmul.f32 %v2629, %v2748
        %v2759 = vmul.f32 %v2718, %v2748
        %v2760 = vmul.f32 %v2632, %v2748
        %v2761 = vmul.f32 %v2719, %v2748
        %v2762 = vmul.f32 %v2635, %v2748
        %v2763 = vmul.f32 %v2720, %v2748
        %v2764 = vmul.f32 %v2638, %v2748
        %v2765 = vmul.f32 %v2721, %v2748
        %v2766 = vmul.f32 %v2641, %v2748
        %v2767 = vmul.f32 %v2722, %v2748
        %v2768 = vmul.f32 %v2644, %v2748
        %v2769 = vmul.f32 %v2723, %v2748
        %v2770 = vmul.f32 %v2647, %v2748
        %v2771 = vmul.f32 %v2724, %v2748
        %v2772 = vmul.f32 %v2650, %v2748
        %v2773 = vmul.f32 %v2725, %v2748
        %v2774 = vmul.f32 %v2653, %v2748
        %v2775 = vmul.f32 %v2726, %v2748
        %v2776 = vmul.f32 %v2656, %v2748
        %v2777 = vmul.f32 %v2727, %v2748
        %v2778 = vmul.f32 %v2659, %v2748
        %v2779 = vmul.f32 %v2728, %v2748
        %v2780 = vmul.f32 %v2662, %v2748
        %v2781 = vperm.slane %v2746, 1
        %v2782 = vmul.f32 %v617, %v2781
        %v2783 = vmul.f32 %v518, %v2781
        %v2784 = vmul.f32 %v634, %v2781
        %v2785 = vmul.f32 %v2714, %v2781
        %v2786 = vmul.f32 %v2620, %v2781
        %v2787 = vmul.f32 %v2730, %v2781
        %v2788 = vmul.f32 %v2715, %v2781
        %v2789 = vmul.f32 %v2623, %v2781
        %v2790 = vmul.f32 %v2731, %v2781
        %v2791 = vmul.f32 %v2716, %v2781
        %v2792 = vmul.f32 %v2626, %v2781
        %v2793 = vmul.f32 %v2732, %v2781
        %v2794 = vmul.f32 %v2717, %v2781
        %v2795 = vmul.f32 %v2629, %v2781
        %v2796 = vmul.f32 %v2733, %v2781
        %v2797 = vmul.f32 %v2718, %v2781
        %v2798 = vmul.f32 %v2632, %v2781
        %v2799 = vmul.f32 %v2734, %v2781
        %v2800 = vmul.f32 %v2719, %v2781
        %v2801 = vmul.f32 %v2635, %v2781
        %v2802 = vmul.f32 %v2735, %v2781
        %v2803 = vmul.f32 %v2720, %v2781
        %v2804 = vmul.f32 %v2638, %v2781
        %v2805 = vmul.f32 %v2736, %v2781
        %v2806 = vmul.f32 %v2721, %v2781
        %v2807 = vmul.f32 %v2641, %v2781
        %v2808 = vmul.f32 %v2737, %v2781
        %v2809 = vmul.f32 %v2722, %v2781
        %v2810 = vmul.f32 %v2644, %v2781
        %v2811 = vmul.f32 %v2738, %v2781
        %v2812 = vmul.f32 %v2723, %v2781
        %v2813 = vmul.f32 %v2647, %v2781
        %v2814 = vmul.f32 %v2739, %v2781
        %v2815 = vmul.f32 %v2724, %v2781
        %v2816 = vmul.f32 %v2650, %v2781
        %v2817 = vmul.f32 %v2740, %v2781
        %v2818 = vmul.f32 %v2725, %v2781
        %v2819 = vmul.f32 %v2653, %v2781
        %v2820 = vmul.f32 %v2741, %v2781
        %v2821 = vmul.f32 %v2726, %v2781
        %v2822 = vmul.f32 %v2656, %v2781
        %v2823 = vmul.f32 %v2742, %v2781
        %v2824 = vmul.f32 %v2727, %v2781
        %v2825 = vmul.f32 %v2659, %v2781
        %v2826 = vmul.f32 %v2743, %v2781
        %v2827 = vmul.f32 %v2728, %v2781
        %v2828 = vmul.f32 %v2662, %v2781
        %v2829 = vmul.f32 %v2744, %v2781
        %v2878 = vrot.slane %v2782, 1
        %v2879 = vrot.slane %v2783, 1
        %v2880 = vsel %vm783, %v2878, %v2879
        %v2881 = vrot.slane %v2784, 1
        %v2882 = vsel %vm783, %v2879, %v2881
        %v2883 = vrot.slane %v2785, 1
        %v2884 = vrot.slane %v2786, 1
        %v2885 = vsel %vm783, %v2883, %v2884
        %v2886 = vrot.slane %v2787, 1
        %v2887 = vsel %vm783, %v2884, %v2886
        %v2888 = vrot.slane %v2788, 1
        %v2889 = vrot.slane %v2789, 1
        %v2890 = vsel %vm783, %v2888, %v2889
        %v2891 = vrot.slane %v2790, 1
        %v2892 = vsel %vm783, %v2889, %v2891
        %v2893 = vrot.slane %v2791, 1
        %v2894 = vrot.slane %v2792, 1
        %v2895 = vsel %vm783, %v2893, %v2894
        %v2896 = vrot.slane %v2793, 1
        %v2897 = vsel %vm783, %v2894, %v2896
        %v2898 = vrot.slane %v2794, 1
        %v2899 = vrot.slane %v2795, 1
        %v2900 = vsel %vm783, %v2898, %v2899
        %v2901 = vrot.slane %v2796, 1
        %v2902 = vsel %vm783, %v2899, %v2901
        %v2903 = vrot.slane %v2797, 1
        %v2904 = vrot.slane %v2798, 1
        %v2905 = vsel %vm783, %v2903, %v2904
        %v2906 = vrot.slane %v2799, 1
        %v2907 = vsel %vm783, %v2904, %v2906
        %v2908 = vrot.slane %v2800, 1
        %v2909 = vrot.slane %v2801, 1
        %v2910 = vsel %vm783, %v2908, %v2909
        %v2911 = vrot.slane %v2802, 1
        %v2912 = vsel %vm783, %v2909, %v2911
        %v2913 = vrot.slane %v2803, 1
        %v2914 = vrot.slane %v2804, 1
        %v2915 = vsel %vm783, %v2913, %v2914
        %v2916 = vrot.slane %v2805, 1
        %v2917 = vsel %vm783, %v2914, %v2916
        %v2918 = vrot.slane %v2806, 1
        %v2919 = vrot.slane %v2807, 1
        %v2920 = vsel %vm783, %v2918, %v2919
        %v2921 = vrot.slane %v2808, 1
        %v2922 = vsel %vm783, %v2919, %v2921
        %v2923 = vrot.slane %v2809, 1
        %v2924 = vrot.slane %v2810, 1
        %v2925 = vsel %vm783, %v2923, %v2924
        %v2926 = vrot.slane %v2811, 1
        %v2927 = vsel %vm783, %v2924, %v2926
        %v2928 = vrot.slane %v2812, 1
        %v2929 = vrot.slane %v2813, 1
        %v2930 = vsel %vm783, %v2928, %v2929
        %v2931 = vrot.slane %v2814, 1
        %v2932 = vsel %vm783, %v2929, %v2931
        %v2933 = vrot.slane %v2815, 1
        %v2934 = vrot.slane %v2816, 1
        %v2935 = vsel %vm783, %v2933, %v2934
        %v2936 = vrot.slane %v2817, 1
        %v2937 = vsel %vm783, %v2934, %v2936
        %v2938 = vrot.slane %v2818, 1
        %v2939 = vrot.slane %v2819, 1
        %v2940 = vsel %vm783, %v2938, %v2939
        %v2941 = vrot.slane %v2820, 1
        %v2942 = vsel %vm783, %v2939, %v2941
        %v2943 = vrot.slane %v2821, 1
        %v2944 = vrot.slane %v2822, 1
        %v2945 = vsel %vm783, %v2943, %v2944
        %v2946 = vrot.slane %v2823, 1
        %v2947 = vsel %vm783, %v2944, %v2946
        %v2948 = vrot.slane %v2824, 1
        %v2949 = vrot.slane %v2825, 1
        %v2950 = vsel %vm783, %v2948, %v2949
        %v2951 = vrot.slane %v2826, 1
        %v2952 = vsel %vm783, %v2949, %v2951
        %v2953 = vrot.slane %v2827, 1
        %v2954 = vrot.slane %v2828, 1
        %v2955 = vsel %vm783, %v2953, %v2954
        %v2956 = vrot.slane %v2829, 1
        %v2957 = vsel %vm783, %v2954, %v2956
        %v2990 = vadd.f32 %v2749, %v2880
        %v2991 = vadd.f32 %v2750, %v2882
        %v2992 = vadd.f32 %v2751, %v2885
        %v2993 = vadd.f32 %v2752, %v2887
        %v2994 = vadd.f32 %v2753, %v2890
        %v2995 = vadd.f32 %v2754, %v2892
        %v2996 = vadd.f32 %v2755, %v2895
        %v2997 = vadd.f32 %v2756, %v2897
        %v2998 = vadd.f32 %v2757, %v2900
        %v2999 = vadd.f32 %v2758, %v2902
        %v3000 = vadd.f32 %v2759, %v2905
        %v3001 = vadd.f32 %v2760, %v2907
        %v3002 = vadd.f32 %v2761, %v2910
        %v3003 = vadd.f32 %v2762, %v2912
        %v3004 = vadd.f32 %v2763, %v2915
        %v3005 = vadd.f32 %v2764, %v2917
        %v3006 = vadd.f32 %v2765, %v2920
        %v3007 = vadd.f32 %v2766, %v2922
        %v3008 = vadd.f32 %v2767, %v2925
        %v3009 = vadd.f32 %v2768, %v2927
        %v3010 = vadd.f32 %v2769, %v2930
        %v3011 = vadd.f32 %v2770, %v2932
        %v3012 = vadd.f32 %v2771, %v2935
        %v3013 = vadd.f32 %v2772, %v2937
        %v3014 = vadd.f32 %v2773, %v2940
        %v3015 = vadd.f32 %v2774, %v2942
        %v3016 = vadd.f32 %v2775, %v2945
        %v3017 = vadd.f32 %v2776, %v2947
        %v3018 = vadd.f32 %v2777, %v2950
        %v3019 = vadd.f32 %v2778, %v2952
        %v3020 = vadd.f32 %v2779, %v2955
        %v3021 = vadd.f32 %v2780, %v2957
        %v3022 = vperm.slane %v2746, 2
        %v3023 = vmul.f32 %v617, %v3022
        %v3024 = vmul.f32 %v518, %v3022
        %v3025 = vmul.f32 %v634, %v3022
        %v3026 = vmul.f32 %v2714, %v3022
        %v3027 = vmul.f32 %v2620, %v3022
        %v3028 = vmul.f32 %v2730, %v3022
        %v3029 = vmul.f32 %v2715, %v3022
        %v3030 = vmul.f32 %v2623, %v3022
        %v3031 = vmul.f32 %v2731, %v3022
        %v3032 = vmul.f32 %v2716, %v3022
        %v3033 = vmul.f32 %v2626, %v3022
        %v3034 = vmul.f32 %v2732, %v3022
        %v3035 = vmul.f32 %v2717, %v3022
        %v3036 = vmul.f32 %v2629, %v3022
        %v3037 = vmul.f32 %v2733, %v3022
        %v3038 = vmul.f32 %v2718, %v3022
        %v3039 = vmul.f32 %v2632, %v3022
        %v3040 = vmul.f32 %v2734, %v3022
        %v3041 = vmul.f32 %v2719, %v3022
        %v3042 = vmul.f32 %v2635, %v3022
        %v3043 = vmul.f32 %v2735, %v3022
        %v3044 = vmul.f32 %v2720, %v3022
        %v3045 = vmul.f32 %v2638, %v3022
        %v3046 = vmul.f32 %v2736, %v3022
        %v3047 = vmul.f32 %v2721, %v3022
        %v3048 = vmul.f32 %v2641, %v3022
        %v3049 = vmul.f32 %v2737, %v3022
        %v3050 = vmul.f32 %v2722, %v3022
        %v3051 = vmul.f32 %v2644, %v3022
        %v3052 = vmul.f32 %v2738, %v3022
        %v3053 = vmul.f32 %v2723, %v3022
        %v3054 = vmul.f32 %v2647, %v3022
        %v3055 = vmul.f32 %v2739, %v3022
        %v3056 = vmul.f32 %v2724, %v3022
        %v3057 = vmul.f32 %v2650, %v3022
        %v3058 = vmul.f32 %v2740, %v3022
        %v3059 = vmul.f32 %v2725, %v3022
        %v3060 = vmul.f32 %v2653, %v3022
        %v3061 = vmul.f32 %v2741, %v3022
        %v3062 = vmul.f32 %v2726, %v3022
        %v3063 = vmul.f32 %v2656, %v3022
        %v3064 = vmul.f32 %v2742, %v3022
        %v3065 = vmul.f32 %v2727, %v3022
        %v3066 = vmul.f32 %v2659, %v3022
        %v3067 = vmul.f32 %v2743, %v3022
        %v3068 = vmul.f32 %v2728, %v3022
        %v3069 = vmul.f32 %v2662, %v3022
        %v3070 = vmul.f32 %v2744, %v3022
        %v3119 = vrot.slane %v3023, 2
        %v3120 = vrot.slane %v3024, 2
        %v3121 = vsel %vm1025, %v3119, %v3120
        %v3122 = vrot.slane %v3025, 2
        %v3123 = vsel %vm1025, %v3120, %v3122
        %v3124 = vrot.slane %v3026, 2
        %v3125 = vrot.slane %v3027, 2
        %v3126 = vsel %vm1025, %v3124, %v3125
        %v3127 = vrot.slane %v3028, 2
        %v3128 = vsel %vm1025, %v3125, %v3127
        %v3129 = vrot.slane %v3029, 2
        %v3130 = vrot.slane %v3030, 2
        %v3131 = vsel %vm1025, %v3129, %v3130
        %v3132 = vrot.slane %v3031, 2
        %v3133 = vsel %vm1025, %v3130, %v3132
        %v3134 = vrot.slane %v3032, 2
        %v3135 = vrot.slane %v3033, 2
        %v3136 = vsel %vm1025, %v3134, %v3135
        %v3137 = vrot.slane %v3034, 2
        %v3138 = vsel %vm1025, %v3135, %v3137
        %v3139 = vrot.slane %v3035, 2
        %v3140 = vrot.slane %v3036, 2
        %v3141 = vsel %vm1025, %v3139, %v3140
        %v3142 = vrot.slane %v3037, 2
        %v3143 = vsel %vm1025, %v3140, %v3142
        %v3144 = vrot.slane %v3038, 2
        %v3145 = vrot.slane %v3039, 2
        %v3146 = vsel %vm1025, %v3144, %v3145
        %v3147 = vrot.slane %v3040, 2
        %v3148 = vsel %vm1025, %v3145, %v3147
        %v3149 = vrot.slane %v3041, 2
        %v3150 = vrot.slane %v3042, 2
        %v3151 = vsel %vm1025, %v3149, %v3150
        %v3152 = vrot.slane %v3043, 2
        %v3153 = vsel %vm1025, %v3150, %v3152
        %v3154 = vrot.slane %v3044, 2
        %v3155 = vrot.slane %v3045, 2
        %v3156 = vsel %vm1025, %v3154, %v3155
        %v3157 = vrot.slane %v3046, 2
        %v3158 = vsel %vm1025, %v3155, %v3157
        %v3159 = vrot.slane %v3047, 2
        %v3160 = vrot.slane %v3048, 2
        %v3161 = vsel %vm1025, %v3159, %v3160
        %v3162 = vrot.slane %v3049, 2
        %v3163 = vsel %vm1025, %v3160, %v3162
        %v3164 = vrot.slane %v3050, 2
        %v3165 = vrot.slane %v3051, 2
        %v3166 = vsel %vm1025, %v3164, %v3165
        %v3167 = vrot.slane %v3052, 2
        %v3168 = vsel %vm1025, %v3165, %v3167
        %v3169 = vrot.slane %v3053, 2
        %v3170 = vrot.slane %v3054, 2
        %v3171 = vsel %vm1025, %v3169, %v3170
        %v3172 = vrot.slane %v3055, 2
        %v3173 = vsel %vm1025, %v3170, %v3172
        %v3174 = vrot.slane %v3056, 2
        %v3175 = vrot.slane %v3057, 2
        %v3176 = vsel %vm1025, %v3174, %v3175
        %v3177 = vrot.slane %v3058, 2
        %v3178 = vsel %vm1025, %v3175, %v3177
        %v3179 = vrot.slane %v3059, 2
        %v3180 = vrot.slane %v3060, 2
        %v3181 = vsel %vm1025, %v3179, %v3180
        %v3182 = vrot.slane %v3061, 2
        %v3183 = vsel %vm1025, %v3180, %v3182
        %v3184 = vrot.slane %v3062, 2
        %v3185 = vrot.slane %v3063, 2
        %v3186 = vsel %vm1025, %v3184, %v3185
        %v3187 = vrot.slane %v3064, 2
        %v3188 = vsel %vm1025, %v3185, %v3187
        %v3189 = vrot.slane %v3065, 2
        %v3190 = vrot.slane %v3066, 2
        %v3191 = vsel %vm1025, %v3189, %v3190
        %v3192 = vrot.slane %v3067, 2
        %v3193 = vsel %vm1025, %v3190, %v3192
        %v3194 = vrot.slane %v3068, 2
        %v3195 = vrot.slane %v3069, 2
        %v3196 = vsel %vm1025, %v3194, %v3195
        %v3197 = vrot.slane %v3070, 2
        %v3198 = vsel %vm1025, %v3195, %v3197
        %v3231 = vadd.f32 %v2990, %v3121
        %v3232 = vadd.f32 %v2991, %v3123
        %v3233 = vadd.f32 %v2992, %v3126
        %v3234 = vadd.f32 %v2993, %v3128
        %v3235 = vadd.f32 %v2994, %v3131
        %v3236 = vadd.f32 %v2995, %v3133
        %v3237 = vadd.f32 %v2996, %v3136
        %v3238 = vadd.f32 %v2997, %v3138
        %v3239 = vadd.f32 %v2998, %v3141
        %v3240 = vadd.f32 %v2999, %v3143
        %v3241 = vadd.f32 %v3000, %v3146
        %v3242 = vadd.f32 %v3001, %v3148
        %v3243 = vadd.f32 %v3002, %v3151
        %v3244 = vadd.f32 %v3003, %v3153
        %v3245 = vadd.f32 %v3004, %v3156
        %v3246 = vadd.f32 %v3005, %v3158
        %v3247 = vadd.f32 %v3006, %v3161
        %v3248 = vadd.f32 %v3007, %v3163
        %v3249 = vadd.f32 %v3008, %v3166
        %v3250 = vadd.f32 %v3009, %v3168
        %v3251 = vadd.f32 %v3010, %v3171
        %v3252 = vadd.f32 %v3011, %v3173
        %v3253 = vadd.f32 %v3012, %v3176
        %v3254 = vadd.f32 %v3013, %v3178
        %v3255 = vadd.f32 %v3014, %v3181
        %v3256 = vadd.f32 %v3015, %v3183
        %v3257 = vadd.f32 %v3016, %v3186
        %v3258 = vadd.f32 %v3017, %v3188
        %v3259 = vadd.f32 %v3018, %v3191
        %v3260 = vadd.f32 %v3019, %v3193
        %v3261 = vadd.f32 %v3020, %v3196
        %v3262 = vadd.f32 %v3021, %v3198
        %v3263 = vperm.slane %v2746, 3
        %v3264 = vmul.f32 %v2714, %v3263
        %v3265 = vmul.f32 %v2620, %v3263
        %v3266 = vmul.f32 %v2715, %v3263
        %v3267 = vmul.f32 %v2623, %v3263
        %v3268 = vmul.f32 %v2716, %v3263
        %v3269 = vmul.f32 %v2626, %v3263
        %v3270 = vmul.f32 %v2717, %v3263
        %v3271 = vmul.f32 %v2629, %v3263
        %v3272 = vmul.f32 %v2718, %v3263
        %v3273 = vmul.f32 %v2632, %v3263
        %v3274 = vmul.f32 %v2719, %v3263
        %v3275 = vmul.f32 %v2635, %v3263
        %v3276 = vmul.f32 %v2720, %v3263
        %v3277 = vmul.f32 %v2638, %v3263
        %v3278 = vmul.f32 %v2721, %v3263
        %v3279 = vmul.f32 %v2641, %v3263
        %v3280 = vmul.f32 %v2722, %v3263
        %v3281 = vmul.f32 %v2644, %v3263
        %v3282 = vmul.f32 %v2723, %v3263
        %v3283 = vmul.f32 %v2647, %v3263
        %v3284 = vmul.f32 %v2724, %v3263
        %v3285 = vmul.f32 %v2650, %v3263
        %v3286 = vmul.f32 %v2725, %v3263
        %v3287 = vmul.f32 %v2653, %v3263
        %v3288 = vmul.f32 %v2726, %v3263
        %v3289 = vmul.f32 %v2656, %v3263
        %v3290 = vmul.f32 %v2727, %v3263
        %v3291 = vmul.f32 %v2659, %v3263
        %v3292 = vmul.f32 %v2728, %v3263
        %v3293 = vmul.f32 %v2662, %v3263
        %v3294 = vmul.f32 %v2729, %v3263
        %v3295 = vmul.f32 %v2665, %v3263
        %v3296 = vadd.f32 %v3231, %v3264
        %v3297 = vadd.f32 %v3232, %v3265
        %v3298 = vadd.f32 %v3233, %v3266
        %v3299 = vadd.f32 %v3234, %v3267
        %v3300 = vadd.f32 %v3235, %v3268
        %v3301 = vadd.f32 %v3236, %v3269
        %v3302 = vadd.f32 %v3237, %v3270
        %v3303 = vadd.f32 %v3238, %v3271
        %v3304 = vadd.f32 %v3239, %v3272
        %v3305 = vadd.f32 %v3240, %v3273
        %v3306 = vadd.f32 %v3241, %v3274
        %v3307 = vadd.f32 %v3242, %v3275
        %v3308 = vadd.f32 %v3243, %v3276
        %v3309 = vadd.f32 %v3244, %v3277
        %v3310 = vadd.f32 %v3245, %v3278
        %v3311 = vadd.f32 %v3246, %v3279
        %v3312 = vadd.f32 %v3247, %v3280
        %v3313 = vadd.f32 %v3248, %v3281
        %v3314 = vadd.f32 %v3249, %v3282
        %v3315 = vadd.f32 %v3250, %v3283
        %v3316 = vadd.f32 %v3251, %v3284
        %v3317 = vadd.f32 %v3252, %v3285
        %v3318 = vadd.f32 %v3253, %v3286
        %v3319 = vadd.f32 %v3254, %v3287
        %v3320 = vadd.f32 %v3255, %v3288
        %v3321 = vadd.f32 %v3256, %v3289
        %v3322 = vadd.f32 %v3257, %v3290
        %v3323 = vadd.f32 %v3258, %v3291
        %v3324 = vadd.f32 %v3259, %v3292
        %v3325 = vadd.f32 %v3260, %v3293
        %v3326 = vadd.f32 %v3261, %v3294
        %v3327 = vadd.f32 %v3262, %v3295
        %v3328 = vperm.slane %v2746, 4
        %v3329 = vmul.f32 %v2714, %v3328
        %v3330 = vmul.f32 %v2620, %v3328
        %v3331 = vmul.f32 %v2730, %v3328
        %v3332 = vmul.f32 %v2715, %v3328
        %v3333 = vmul.f32 %v2623, %v3328
        %v3334 = vmul.f32 %v2731, %v3328
        %v3335 = vmul.f32 %v2716, %v3328
        %v3336 = vmul.f32 %v2626, %v3328
        %v3337 = vmul.f32 %v2732, %v3328
        %v3338 = vmul.f32 %v2717, %v3328
        %v3339 = vmul.f32 %v2629, %v3328
        %v3340 = vmul.f32 %v2733, %v3328
        %v3341 = vmul.f32 %v2718, %v3328
        %v3342 = vmul.f32 %v2632, %v3328
        %v3343 = vmul.f32 %v2734, %v3328
        %v3344 = vmul.f32 %v2719, %v3328
        %v3345 = vmul.f32 %v2635, %v3328
        %v3346 = vmul.f32 %v2735, %v3328
        %v3347 = vmul.f32 %v2720, %v3328
        %v3348 = vmul.f32 %v2638, %v3328
        %v3349 = vmul.f32 %v2736, %v3328
        %v3350 = vmul.f32 %v2721, %v3328
        %v3351 = vmul.f32 %v2641, %v3328
        %v3352 = vmul.f32 %v2737, %v3328
        %v3353 = vmul.f32 %v2722, %v3328
        %v3354 = vmul.f32 %v2644, %v3328
        %v3355 = vmul.f32 %v2738, %v3328
        %v3356 = vmul.f32 %v2723, %v3328
        %v3357 = vmul.f32 %v2647, %v3328
        %v3358 = vmul.f32 %v2739, %v3328
        %v3359 = vmul.f32 %v2724, %v3328
        %v3360 = vmul.f32 %v2650, %v3328
        %v3361 = vmul.f32 %v2740, %v3328
        %v3362 = vmul.f32 %v2725, %v3328
        %v3363 = vmul.f32 %v2653, %v3328
        %v3364 = vmul.f32 %v2741, %v3328
        %v3365 = vmul.f32 %v2726, %v3328
        %v3366 = vmul.f32 %v2656, %v3328
        %v3367 = vmul.f32 %v2742, %v3328
        %v3368 = vmul.f32 %v2727, %v3328
        %v3369 = vmul.f32 %v2659, %v3328
        %v3370 = vmul.f32 %v2743, %v3328
        %v3371 = vmul.f32 %v2728, %v3328
        %v3372 = vmul.f32 %v2662, %v3328
        %v3373 = vmul.f32 %v2744, %v3328
        %v3374 = vmul.f32 %v2729, %v3328
        %v3375 = vmul.f32 %v2665, %v3328
        %v3376 = vmul.f32 %v2745, %v3328
        %v3425 = vrot.slane %v3329, 1
        %v3426 = vrot.slane %v3330, 1
        %v3427 = vsel %vm783, %v3425, %v3426
        %v3428 = vrot.slane %v3331, 1
        %v3429 = vsel %vm783, %v3426, %v3428
        %v3430 = vrot.slane %v3332, 1
        %v3431 = vrot.slane %v3333, 1
        %v3432 = vsel %vm783, %v3430, %v3431
        %v3433 = vrot.slane %v3334, 1
        %v3434 = vsel %vm783, %v3431, %v3433
        %v3435 = vrot.slane %v3335, 1
        %v3436 = vrot.slane %v3336, 1
        %v3437 = vsel %vm783, %v3435, %v3436
        %v3438 = vrot.slane %v3337, 1
        %v3439 = vsel %vm783, %v3436, %v3438
        %v3440 = vrot.slane %v3338, 1
        %v3441 = vrot.slane %v3339, 1
        %v3442 = vsel %vm783, %v3440, %v3441
        %v3443 = vrot.slane %v3340, 1
        %v3444 = vsel %vm783, %v3441, %v3443
        %v3445 = vrot.slane %v3341, 1
        %v3446 = vrot.slane %v3342, 1
        %v3447 = vsel %vm783, %v3445, %v3446
        %v3448 = vrot.slane %v3343, 1
        %v3449 = vsel %vm783, %v3446, %v3448
        %v3450 = vrot.slane %v3344, 1
        %v3451 = vrot.slane %v3345, 1
        %v3452 = vsel %vm783, %v3450, %v3451
        %v3453 = vrot.slane %v3346, 1
        %v3454 = vsel %vm783, %v3451, %v3453
        %v3455 = vrot.slane %v3347, 1
        %v3456 = vrot.slane %v3348, 1
        %v3457 = vsel %vm783, %v3455, %v3456
        %v3458 = vrot.slane %v3349, 1
        %v3459 = vsel %vm783, %v3456, %v3458
        %v3460 = vrot.slane %v3350, 1
        %v3461 = vrot.slane %v3351, 1
        %v3462 = vsel %vm783, %v3460, %v3461
        %v3463 = vrot.slane %v3352, 1
        %v3464 = vsel %vm783, %v3461, %v3463
        %v3465 = vrot.slane %v3353, 1
        %v3466 = vrot.slane %v3354, 1
        %v3467 = vsel %vm783, %v3465, %v3466
        %v3468 = vrot.slane %v3355, 1
        %v3469 = vsel %vm783, %v3466, %v3468
        %v3470 = vrot.slane %v3356, 1
        %v3471 = vrot.slane %v3357, 1
        %v3472 = vsel %vm783, %v3470, %v3471
        %v3473 = vrot.slane %v3358, 1
        %v3474 = vsel %vm783, %v3471, %v3473
        %v3475 = vrot.slane %v3359, 1
        %v3476 = vrot.slane %v3360, 1
        %v3477 = vsel %vm783, %v3475, %v3476
        %v3478 = vrot.slane %v3361, 1
        %v3479 = vsel %vm783, %v3476, %v3478
        %v3480 = vrot.slane %v3362, 1
        %v3481 = vrot.slane %v3363, 1
        %v3482 = vsel %vm783, %v3480, %v3481
        %v3483 = vrot.slane %v3364, 1
        %v3484 = vsel %vm783, %v3481, %v3483
        %v3485 = vrot.slane %v3365, 1
        %v3486 = vrot.slane %v3366, 1
        %v3487 = vsel %vm783, %v3485, %v3486
        %v3488 = vrot.slane %v3367, 1
        %v3489 = vsel %vm783, %v3486, %v3488
        %v3490 = vrot.slane %v3368, 1
        %v3491 = vrot.slane %v3369, 1
        %v3492 = vsel %vm783, %v3490, %v3491
        %v3493 = vrot.slane %v3370, 1
        %v3494 = vsel %vm783, %v3491, %v3493
        %v3495 = vrot.slane %v3371, 1
        %v3496 = vrot.slane %v3372, 1
        %v3497 = vsel %vm783, %v3495, %v3496
        %v3498 = vrot.slane %v3373, 1
        %v3499 = vsel %vm783, %v3496, %v3498
        %v3500 = vrot.slane %v3374, 1
        %v3501 = vrot.slane %v3375, 1
        %v3502 = vsel %vm783, %v3500, %v3501
        %v3503 = vrot.slane %v3376, 1
        %v3504 = vsel %vm783, %v3501, %v3503
        %v3537 = vadd.f32 %v3296, %v3427
        %v3538 = vadd.f32 %v3297, %v3429
        %v3539 = vadd.f32 %v3298, %v3432
        %v3540 = vadd.f32 %v3299, %v3434
        %v3541 = vadd.f32 %v3300, %v3437
        %v3542 = vadd.f32 %v3301, %v3439
        %v3543 = vadd.f32 %v3302, %v3442
        %v3544 = vadd.f32 %v3303, %v3444
        %v3545 = vadd.f32 %v3304, %v3447
        %v3546 = vadd.f32 %v3305, %v3449
        %v3547 = vadd.f32 %v3306, %v3452
        %v3548 = vadd.f32 %v3307, %v3454
        %v3549 = vadd.f32 %v3308, %v3457
        %v3550 = vadd.f32 %v3309, %v3459
        %v3551 = vadd.f32 %v3310, %v3462
        %v3552 = vadd.f32 %v3311, %v3464
        %v3553 = vadd.f32 %v3312, %v3467
        %v3554 = vadd.f32 %v3313, %v3469
        %v3555 = vadd.f32 %v3314, %v3472
        %v3556 = vadd.f32 %v3315, %v3474
        %v3557 = vadd.f32 %v3316, %v3477
        %v3558 = vadd.f32 %v3317, %v3479
        %v3559 = vadd.f32 %v3318, %v3482
        %v3560 = vadd.f32 %v3319, %v3484
        %v3561 = vadd.f32 %v3320, %v3487
        %v3562 = vadd.f32 %v3321, %v3489
        %v3563 = vadd.f32 %v3322, %v3492
        %v3564 = vadd.f32 %v3323, %v3494
        %v3565 = vadd.f32 %v3324, %v3497
        %v3566 = vadd.f32 %v3325, %v3499
        %v3567 = vadd.f32 %v3326, %v3502
        %v3568 = vadd.f32 %v3327, %v3504
        %v3569 = vperm.slane %v2746, 5
        %v3570 = vmul.f32 %v2714, %v3569
        %v3571 = vmul.f32 %v2620, %v3569
        %v3572 = vmul.f32 %v2730, %v3569
        %v3573 = vmul.f32 %v2715, %v3569
        %v3574 = vmul.f32 %v2623, %v3569
        %v3575 = vmul.f32 %v2731, %v3569
        %v3576 = vmul.f32 %v2716, %v3569
        %v3577 = vmul.f32 %v2626, %v3569
        %v3578 = vmul.f32 %v2732, %v3569
        %v3579 = vmul.f32 %v2717, %v3569
        %v3580 = vmul.f32 %v2629, %v3569
        %v3581 = vmul.f32 %v2733, %v3569
        %v3582 = vmul.f32 %v2718, %v3569
        %v3583 = vmul.f32 %v2632, %v3569
        %v3584 = vmul.f32 %v2734, %v3569
        %v3585 = vmul.f32 %v2719, %v3569
        %v3586 = vmul.f32 %v2635, %v3569
        %v3587 = vmul.f32 %v2735, %v3569
        %v3588 = vmul.f32 %v2720, %v3569
        %v3589 = vmul.f32 %v2638, %v3569
        %v3590 = vmul.f32 %v2736, %v3569
        %v3591 = vmul.f32 %v2721, %v3569
        %v3592 = vmul.f32 %v2641, %v3569
        %v3593 = vmul.f32 %v2737, %v3569
        %v3594 = vmul.f32 %v2722, %v3569
        %v3595 = vmul.f32 %v2644, %v3569
        %v3596 = vmul.f32 %v2738, %v3569
        %v3597 = vmul.f32 %v2723, %v3569
        %v3598 = vmul.f32 %v2647, %v3569
        %v3599 = vmul.f32 %v2739, %v3569
        %v3600 = vmul.f32 %v2724, %v3569
        %v3601 = vmul.f32 %v2650, %v3569
        %v3602 = vmul.f32 %v2740, %v3569
        %v3603 = vmul.f32 %v2725, %v3569
        %v3604 = vmul.f32 %v2653, %v3569
        %v3605 = vmul.f32 %v2741, %v3569
        %v3606 = vmul.f32 %v2726, %v3569
        %v3607 = vmul.f32 %v2656, %v3569
        %v3608 = vmul.f32 %v2742, %v3569
        %v3609 = vmul.f32 %v2727, %v3569
        %v3610 = vmul.f32 %v2659, %v3569
        %v3611 = vmul.f32 %v2743, %v3569
        %v3612 = vmul.f32 %v2728, %v3569
        %v3613 = vmul.f32 %v2662, %v3569
        %v3614 = vmul.f32 %v2744, %v3569
        %v3615 = vmul.f32 %v2729, %v3569
        %v3616 = vmul.f32 %v2665, %v3569
        %v3617 = vmul.f32 %v2745, %v3569
        %v3666 = vrot.slane %v3570, 2
        %v3667 = vrot.slane %v3571, 2
        %v3668 = vsel %vm1025, %v3666, %v3667
        %v3669 = vrot.slane %v3572, 2
        %v3670 = vsel %vm1025, %v3667, %v3669
        %v3671 = vrot.slane %v3573, 2
        %v3672 = vrot.slane %v3574, 2
        %v3673 = vsel %vm1025, %v3671, %v3672
        %v3674 = vrot.slane %v3575, 2
        %v3675 = vsel %vm1025, %v3672, %v3674
        %v3676 = vrot.slane %v3576, 2
        %v3677 = vrot.slane %v3577, 2
        %v3678 = vsel %vm1025, %v3676, %v3677
        %v3679 = vrot.slane %v3578, 2
        %v3680 = vsel %vm1025, %v3677, %v3679
        %v3681 = vrot.slane %v3579, 2
        %v3682 = vrot.slane %v3580, 2
        %v3683 = vsel %vm1025, %v3681, %v3682
        %v3684 = vrot.slane %v3581, 2
        %v3685 = vsel %vm1025, %v3682, %v3684
        %v3686 = vrot.slane %v3582, 2
        %v3687 = vrot.slane %v3583, 2
        %v3688 = vsel %vm1025, %v3686, %v3687
        %v3689 = vrot.slane %v3584, 2
        %v3690 = vsel %vm1025, %v3687, %v3689
        %v3691 = vrot.slane %v3585, 2
        %v3692 = vrot.slane %v3586, 2
        %v3693 = vsel %vm1025, %v3691, %v3692
        %v3694 = vrot.slane %v3587, 2
        %v3695 = vsel %vm1025, %v3692, %v3694
        %v3696 = vrot.slane %v3588, 2
        %v3697 = vrot.slane %v3589, 2
        %v3698 = vsel %vm1025, %v3696, %v3697
        %v3699 = vrot.slane %v3590, 2
        %v3700 = vsel %vm1025, %v3697, %v3699
        %v3701 = vrot.slane %v3591, 2
        %v3702 = vrot.slane %v3592, 2
        %v3703 = vsel %vm1025, %v3701, %v3702
        %v3704 = vrot.slane %v3593, 2
        %v3705 = vsel %vm1025, %v3702, %v3704
        %v3706 = vrot.slane %v3594, 2
        %v3707 = vrot.slane %v3595, 2
        %v3708 = vsel %vm1025, %v3706, %v3707
        %v3709 = vrot.slane %v3596, 2
        %v3710 = vsel %vm1025, %v3707, %v3709
        %v3711 = vrot.slane %v3597, 2
        %v3712 = vrot.slane %v3598, 2
        %v3713 = vsel %vm1025, %v3711, %v3712
        %v3714 = vrot.slane %v3599, 2
        %v3715 = vsel %vm1025, %v3712, %v3714
        %v3716 = vrot.slane %v3600, 2
        %v3717 = vrot.slane %v3601, 2
        %v3718 = vsel %vm1025, %v3716, %v3717
        %v3719 = vrot.slane %v3602, 2
        %v3720 = vsel %vm1025, %v3717, %v3719
        %v3721 = vrot.slane %v3603, 2
        %v3722 = vrot.slane %v3604, 2
        %v3723 = vsel %vm1025, %v3721, %v3722
        %v3724 = vrot.slane %v3605, 2
        %v3725 = vsel %vm1025, %v3722, %v3724
        %v3726 = vrot.slane %v3606, 2
        %v3727 = vrot.slane %v3607, 2
        %v3728 = vsel %vm1025, %v3726, %v3727
        %v3729 = vrot.slane %v3608, 2
        %v3730 = vsel %vm1025, %v3727, %v3729
        %v3731 = vrot.slane %v3609, 2
        %v3732 = vrot.slane %v3610, 2
        %v3733 = vsel %vm1025, %v3731, %v3732
        %v3734 = vrot.slane %v3611, 2
        %v3735 = vsel %vm1025, %v3732, %v3734
        %v3736 = vrot.slane %v3612, 2
        %v3737 = vrot.slane %v3613, 2
        %v3738 = vsel %vm1025, %v3736, %v3737
        %v3739 = vrot.slane %v3614, 2
        %v3740 = vsel %vm1025, %v3737, %v3739
        %v3741 = vrot.slane %v3615, 2
        %v3742 = vrot.slane %v3616, 2
        %v3743 = vsel %vm1025, %v3741, %v3742
        %v3744 = vrot.slane %v3617, 2
        %v3745 = vsel %vm1025, %v3742, %v3744
        %v3778 = vadd.f32 %v3537, %v3668
        %v3779 = vadd.f32 %v3538, %v3670
        %v3780 = vadd.f32 %v3539, %v3673
        %v3781 = vadd.f32 %v3540, %v3675
        %v3782 = vadd.f32 %v3541, %v3678
        %v3783 = vadd.f32 %v3542, %v3680
        %v3784 = vadd.f32 %v3543, %v3683
        %v3785 = vadd.f32 %v3544, %v3685
        %v3786 = vadd.f32 %v3545, %v3688
        %v3787 = vadd.f32 %v3546, %v3690
        %v3788 = vadd.f32 %v3547, %v3693
        %v3789 = vadd.f32 %v3548, %v3695
        %v3790 = vadd.f32 %v3549, %v3698
        %v3791 = vadd.f32 %v3550, %v3700
        %v3792 = vadd.f32 %v3551, %v3703
        %v3793 = vadd.f32 %v3552, %v3705
        %v3794 = vadd.f32 %v3553, %v3708
        %v3795 = vadd.f32 %v3554, %v3710
        %v3796 = vadd.f32 %v3555, %v3713
        %v3797 = vadd.f32 %v3556, %v3715
        %v3798 = vadd.f32 %v3557, %v3718
        %v3799 = vadd.f32 %v3558, %v3720
        %v3800 = vadd.f32 %v3559, %v3723
        %v3801 = vadd.f32 %v3560, %v3725
        %v3802 = vadd.f32 %v3561, %v3728
        %v3803 = vadd.f32 %v3562, %v3730
        %v3804 = vadd.f32 %v3563, %v3733
        %v3805 = vadd.f32 %v3564, %v3735
        %v3806 = vadd.f32 %v3565, %v3738
        %v3807 = vadd.f32 %v3566, %v3740
        %v3808 = vadd.f32 %v3567, %v3743
        %v3809 = vadd.f32 %v3568, %v3745
        %v3810 = vperm.slane %v2746, 6
        %v3811 = vmul.f32 %v2715, %v3810
        %v3812 = vmul.f32 %v2623, %v3810
        %v3813 = vmul.f32 %v2716, %v3810
        %v3814 = vmul.f32 %v2626, %v3810
        %v3815 = vmul.f32 %v2717, %v3810
        %v3816 = vmul.f32 %v2629, %v3810
        %v3817 = vmul.f32 %v2718, %v3810
        %v3818 = vmul.f32 %v2632, %v3810
        %v3819 = vmul.f32 %v2719, %v3810
        %v3820 = vmul.f32 %v2635, %v3810
        %v3821 = vmul.f32 %v2720, %v3810
        %v3822 = vmul.f32 %v2638, %v3810
        %v3823 = vmul.f32 %v2721, %v3810
        %v3824 = vmul.f32 %v2641, %v3810
        %v3825 = vmul.f32 %v2722, %v3810
        %v3826 = vmul.f32 %v2644, %v3810
        %v3827 = vmul.f32 %v2723, %v3810
        %v3828 = vmul.f32 %v2647, %v3810
        %v3829 = vmul.f32 %v2724, %v3810
        %v3830 = vmul.f32 %v2650, %v3810
        %v3831 = vmul.f32 %v2725, %v3810
        %v3832 = vmul.f32 %v2653, %v3810
        %v3833 = vmul.f32 %v2726, %v3810
        %v3834 = vmul.f32 %v2656, %v3810
        %v3835 = vmul.f32 %v2727, %v3810
        %v3836 = vmul.f32 %v2659, %v3810
        %v3837 = vmul.f32 %v2728, %v3810
        %v3838 = vmul.f32 %v2662, %v3810
        %v3839 = vmul.f32 %v2729, %v3810
        %v3840 = vmul.f32 %v2665, %v3810
        %v3841 = vmul.f32 %v617, %v3810
        %v3842 = vmul.f32 %v518, %v3810
        %v3843 = vadd.f32 %v3778, %v3811
        %v3844 = vadd.f32 %v3779, %v3812
        %v3845 = vadd.f32 %v3780, %v3813
        %v3846 = vadd.f32 %v3781, %v3814
        %v3847 = vadd.f32 %v3782, %v3815
        %v3848 = vadd.f32 %v3783, %v3816
        %v3849 = vadd.f32 %v3784, %v3817
        %v3850 = vadd.f32 %v3785, %v3818
        %v3851 = vadd.f32 %v3786, %v3819
        %v3852 = vadd.f32 %v3787, %v3820
        %v3853 = vadd.f32 %v3788, %v3821
        %v3854 = vadd.f32 %v3789, %v3822
        %v3855 = vadd.f32 %v3790, %v3823
        %v3856 = vadd.f32 %v3791, %v3824
        %v3857 = vadd.f32 %v3792, %v3825
        %v3858 = vadd.f32 %v3793, %v3826
        %v3859 = vadd.f32 %v3794, %v3827
        %v3860 = vadd.f32 %v3795, %v3828
        %v3861 = vadd.f32 %v3796, %v3829
        %v3862 = vadd.f32 %v3797, %v3830
        %v3863 = vadd.f32 %v3798, %v3831
        %v3864 = vadd.f32 %v3799, %v3832
        %v3865 = vadd.f32 %v3800, %v3833
        %v3866 = vadd.f32 %v3801, %v3834
        %v3867 = vadd.f32 %v3802, %v3835
        %v3868 = vadd.f32 %v3803, %v3836
        %v3869 = vadd.f32 %v3804, %v3837
        %v3870 = vadd.f32 %v3805, %v3838
        %v3871 = vadd.f32 %v3806, %v3839
        %v3872 = vadd.f32 %v3807, %v3840
        %v3873 = vadd.f32 %v3808, %v3841
        %v3874 = vadd.f32 %v3809, %v3842
        %v3875 = vperm.slane %v2746, 7
        %v3876 = vmul.f32 %v2715, %v3875
        %v3877 = vmul.f32 %v2623, %v3875
        %v3878 = vmul.f32 %v2731, %v3875
        %v3879 = vmul.f32 %v2716, %v3875
        %v3880 = vmul.f32 %v2626, %v3875
        %v3881 = vmul.f32 %v2732, %v3875
        %v3882 = vmul.f32 %v2717, %v3875
        %v3883 = vmul.f32 %v2629, %v3875
        %v3884 = vmul.f32 %v2733, %v3875
        %v3885 = vmul.f32 %v2718, %v3875
        %v3886 = vmul.f32 %v2632, %v3875
        %v3887 = vmul.f32 %v2734, %v3875
        %v3888 = vmul.f32 %v2719, %v3875
        %v3889 = vmul.f32 %v2635, %v3875
        %v3890 = vmul.f32 %v2735, %v3875
        %v3891 = vmul.f32 %v2720, %v3875
        %v3892 = vmul.f32 %v2638, %v3875
        %v3893 = vmul.f32 %v2736, %v3875
        %v3894 = vmul.f32 %v2721, %v3875
        %v3895 = vmul.f32 %v2641, %v3875
        %v3896 = vmul.f32 %v2737, %v3875
        %v3897 = vmul.f32 %v2722, %v3875
        %v3898 = vmul.f32 %v2644, %v3875
        %v3899 = vmul.f32 %v2738, %v3875
        %v3900 = vmul.f32 %v2723, %v3875
        %v3901 = vmul.f32 %v2647, %v3875
        %v3902 = vmul.f32 %v2739, %v3875
        %v3903 = vmul.f32 %v2724, %v3875
        %v3904 = vmul.f32 %v2650, %v3875
        %v3905 = vmul.f32 %v2740, %v3875
        %v3906 = vmul.f32 %v2725, %v3875
        %v3907 = vmul.f32 %v2653, %v3875
        %v3908 = vmul.f32 %v2741, %v3875
        %v3909 = vmul.f32 %v2726, %v3875
        %v3910 = vmul.f32 %v2656, %v3875
        %v3911 = vmul.f32 %v2742, %v3875
        %v3912 = vmul.f32 %v2727, %v3875
        %v3913 = vmul.f32 %v2659, %v3875
        %v3914 = vmul.f32 %v2743, %v3875
        %v3915 = vmul.f32 %v2728, %v3875
        %v3916 = vmul.f32 %v2662, %v3875
        %v3917 = vmul.f32 %v2744, %v3875
        %v3918 = vmul.f32 %v2729, %v3875
        %v3919 = vmul.f32 %v2665, %v3875
        %v3920 = vmul.f32 %v2745, %v3875
        %v3921 = vmul.f32 %v617, %v3875
        %v3922 = vmul.f32 %v518, %v3875
        %v3923 = vmul.f32 %v634, %v3875
        %v3972 = vrot.slane %v3876, 1
        %v3973 = vrot.slane %v3877, 1
        %v3974 = vsel %vm783, %v3972, %v3973
        %v3975 = vrot.slane %v3878, 1
        %v3976 = vsel %vm783, %v3973, %v3975
        %v3977 = vrot.slane %v3879, 1
        %v3978 = vrot.slane %v3880, 1
        %v3979 = vsel %vm783, %v3977, %v3978
        %v3980 = vrot.slane %v3881, 1
        %v3981 = vsel %vm783, %v3978, %v3980
        %v3982 = vrot.slane %v3882, 1
        %v3983 = vrot.slane %v3883, 1
        %v3984 = vsel %vm783, %v3982, %v3983
        %v3985 = vrot.slane %v3884, 1
        %v3986 = vsel %vm783, %v3983, %v3985
        %v3987 = vrot.slane %v3885, 1
        %v3988 = vrot.slane %v3886, 1
        %v3989 = vsel %vm783, %v3987, %v3988
        %v3990 = vrot.slane %v3887, 1
        %v3991 = vsel %vm783, %v3988, %v3990
        %v3992 = vrot.slane %v3888, 1
        %v3993 = vrot.slane %v3889, 1
        %v3994 = vsel %vm783, %v3992, %v3993
        %v3995 = vrot.slane %v3890, 1
        %v3996 = vsel %vm783, %v3993, %v3995
        %v3997 = vrot.slane %v3891, 1
        %v3998 = vrot.slane %v3892, 1
        %v3999 = vsel %vm783, %v3997, %v3998
        %v4000 = vrot.slane %v3893, 1
        %v4001 = vsel %vm783, %v3998, %v4000
        %v4002 = vrot.slane %v3894, 1
        %v4003 = vrot.slane %v3895, 1
        %v4004 = vsel %vm783, %v4002, %v4003
        %v4005 = vrot.slane %v3896, 1
        %v4006 = vsel %vm783, %v4003, %v4005
        %v4007 = vrot.slane %v3897, 1
        %v4008 = vrot.slane %v3898, 1
        %v4009 = vsel %vm783, %v4007, %v4008
        %v4010 = vrot.slane %v3899, 1
        %v4011 = vsel %vm783, %v4008, %v4010
        %v4012 = vrot.slane %v3900, 1
        %v4013 = vrot.slane %v3901, 1
        %v4014 = vsel %vm783, %v4012, %v4013
        %v4015 = vrot.slane %v3902, 1
        %v4016 = vsel %vm783, %v4013, %v4015
        %v4017 = vrot.slane %v3903, 1
        %v4018 = vrot.slane %v3904, 1
        %v4019 = vsel %vm783, %v4017, %v4018
        %v4020 = vrot.slane %v3905, 1
        %v4021 = vsel %vm783, %v4018, %v4020
        %v4022 = vrot.slane %v3906, 1
        %v4023 = vrot.slane %v3907, 1
        %v4024 = vsel %vm783, %v4022, %v4023
        %v4025 = vrot.slane %v3908, 1
        %v4026 = vsel %vm783, %v4023, %v4025
        %v4027 = vrot.slane %v3909, 1
        %v4028 = vrot.slane %v3910, 1
        %v4029 = vsel %vm783, %v4027, %v4028
        %v4030 = vrot.slane %v3911, 1
        %v4031 = vsel %vm783, %v4028, %v4030
        %v4032 = vrot.slane %v3912, 1
        %v4033 = vrot.slane %v3913, 1
        %v4034 = vsel %vm783, %v4032, %v4033
        %v4035 = vrot.slane %v3914, 1
        %v4036 = vsel %vm783, %v4033, %v4035
        %v4037 = vrot.slane %v3915, 1
        %v4038 = vrot.slane %v3916, 1
        %v4039 = vsel %vm783, %v4037, %v4038
        %v4040 = vrot.slane %v3917, 1
        %v4041 = vsel %vm783, %v4038, %v4040
        %v4042 = vrot.slane %v3918, 1
        %v4043 = vrot.slane %v3919, 1
        %v4044 = vsel %vm783, %v4042, %v4043
        %v4045 = vrot.slane %v3920, 1
        %v4046 = vsel %vm783, %v4043, %v4045
        %v4047 = vrot.slane %v3921, 1
        %v4048 = vrot.slane %v3922, 1
        %v4049 = vsel %vm783, %v4047, %v4048
        %v4050 = vrot.slane %v3923, 1
        %v4051 = vsel %vm783, %v4048, %v4050
        %v4084 = vadd.f32 %v3843, %v3974
        %v4085 = vadd.f32 %v3844, %v3976
        %v4086 = vadd.f32 %v3845, %v3979
        %v4087 = vadd.f32 %v3846, %v3981
        %v4088 = vadd.f32 %v3847, %v3984
        %v4089 = vadd.f32 %v3848, %v3986
        %v4090 = vadd.f32 %v3849, %v3989
        %v4091 = vadd.f32 %v3850, %v3991
        %v4092 = vadd.f32 %v3851, %v3994
        %v4093 = vadd.f32 %v3852, %v3996
        %v4094 = vadd.f32 %v3853, %v3999
        %v4095 = vadd.f32 %v3854, %v4001
        %v4096 = vadd.f32 %v3855, %v4004
        %v4097 = vadd.f32 %v3856, %v4006
        %v4098 = vadd.f32 %v3857, %v4009
        %v4099 = vadd.f32 %v3858, %v4011
        %v4100 = vadd.f32 %v3859, %v4014
        %v4101 = vadd.f32 %v3860, %v4016
        %v4102 = vadd.f32 %v3861, %v4019
        %v4103 = vadd.f32 %v3862, %v4021
        %v4104 = vadd.f32 %v3863, %v4024
        %v4105 = vadd.f32 %v3864, %v4026
        %v4106 = vadd.f32 %v3865, %v4029
        %v4107 = vadd.f32 %v3866, %v4031
        %v4108 = vadd.f32 %v3867, %v4034
        %v4109 = vadd.f32 %v3868, %v4036
        %v4110 = vadd.f32 %v3869, %v4039
        %v4111 = vadd.f32 %v3870, %v4041
        %v4112 = vadd.f32 %v3871, %v4044
        %v4113 = vadd.f32 %v3872, %v4046
        %v4114 = vadd.f32 %v3873, %v4049
        %v4115 = vadd.f32 %v3874, %v4051
        %v4116 = vperm.slane %v2747, 0
        %v4117 = vmul.f32 %v2715, %v4116
        %v4118 = vmul.f32 %v2623, %v4116
        %v4119 = vmul.f32 %v2731, %v4116
        %v4120 = vmul.f32 %v2716, %v4116
        %v4121 = vmul.f32 %v2626, %v4116
        %v4122 = vmul.f32 %v2732, %v4116
        %v4123 = vmul.f32 %v2717, %v4116
        %v4124 = vmul.f32 %v2629, %v4116
        %v4125 = vmul.f32 %v2733, %v4116
        %v4126 = vmul.f32 %v2718, %v4116
        %v4127 = vmul.f32 %v2632, %v4116
        %v4128 = vmul.f32 %v2734, %v4116
        %v4129 = vmul.f32 %v2719, %v4116
        %v4130 = vmul.f32 %v2635, %v4116
        %v4131 = vmul.f32 %v2735, %v4116
        %v4132 = vmul.f32 %v2720, %v4116
        %v4133 = vmul.f32 %v2638, %v4116
        %v4134 = vmul.f32 %v2736, %v4116
        %v4135 = vmul.f32 %v2721, %v4116
        %v4136 = vmul.f32 %v2641, %v4116
        %v4137 = vmul.f32 %v2737, %v4116
        %v4138 = vmul.f32 %v2722, %v4116
        %v4139 = vmul.f32 %v2644, %v4116
        %v4140 = vmul.f32 %v2738, %v4116
        %v4141 = vmul.f32 %v2723, %v4116
        %v4142 = vmul.f32 %v2647, %v4116
        %v4143 = vmul.f32 %v2739, %v4116
        %v4144 = vmul.f32 %v2724, %v4116
        %v4145 = vmul.f32 %v2650, %v4116
        %v4146 = vmul.f32 %v2740, %v4116
        %v4147 = vmul.f32 %v2725, %v4116
        %v4148 = vmul.f32 %v2653, %v4116
        %v4149 = vmul.f32 %v2741, %v4116
        %v4150 = vmul.f32 %v2726, %v4116
        %v4151 = vmul.f32 %v2656, %v4116
        %v4152 = vmul.f32 %v2742, %v4116
        %v4153 = vmul.f32 %v2727, %v4116
        %v4154 = vmul.f32 %v2659, %v4116
        %v4155 = vmul.f32 %v2743, %v4116
        %v4156 = vmul.f32 %v2728, %v4116
        %v4157 = vmul.f32 %v2662, %v4116
        %v4158 = vmul.f32 %v2744, %v4116
        %v4159 = vmul.f32 %v2729, %v4116
        %v4160 = vmul.f32 %v2665, %v4116
        %v4161 = vmul.f32 %v2745, %v4116
        %v4162 = vmul.f32 %v617, %v4116
        %v4163 = vmul.f32 %v518, %v4116
        %v4164 = vmul.f32 %v634, %v4116
        %v4213 = vrot.slane %v4117, 2
        %v4214 = vrot.slane %v4118, 2
        %v4215 = vsel %vm1025, %v4213, %v4214
        %v4216 = vrot.slane %v4119, 2
        %v4217 = vsel %vm1025, %v4214, %v4216
        %v4218 = vrot.slane %v4120, 2
        %v4219 = vrot.slane %v4121, 2
        %v4220 = vsel %vm1025, %v4218, %v4219
        %v4221 = vrot.slane %v4122, 2
        %v4222 = vsel %vm1025, %v4219, %v4221
        %v4223 = vrot.slane %v4123, 2
        %v4224 = vrot.slane %v4124, 2
        %v4225 = vsel %vm1025, %v4223, %v4224
        %v4226 = vrot.slane %v4125, 2
        %v4227 = vsel %vm1025, %v4224, %v4226
        %v4228 = vrot.slane %v4126, 2
        %v4229 = vrot.slane %v4127, 2
        %v4230 = vsel %vm1025, %v4228, %v4229
        %v4231 = vrot.slane %v4128, 2
        %v4232 = vsel %vm1025, %v4229, %v4231
        %v4233 = vrot.slane %v4129, 2
        %v4234 = vrot.slane %v4130, 2
        %v4235 = vsel %vm1025, %v4233, %v4234
        %v4236 = vrot.slane %v4131, 2
        %v4237 = vsel %vm1025, %v4234, %v4236
        %v4238 = vrot.slane %v4132, 2
        %v4239 = vrot.slane %v4133, 2
        %v4240 = vsel %vm1025, %v4238, %v4239
        %v4241 = vrot.slane %v4134, 2
        %v4242 = vsel %vm1025, %v4239, %v4241
        %v4243 = vrot.slane %v4135, 2
        %v4244 = vrot.slane %v4136, 2
        %v4245 = vsel %vm1025, %v4243, %v4244
        %v4246 = vrot.slane %v4137, 2
        %v4247 = vsel %vm1025, %v4244, %v4246
        %v4248 = vrot.slane %v4138, 2
        %v4249 = vrot.slane %v4139, 2
        %v4250 = vsel %vm1025, %v4248, %v4249
        %v4251 = vrot.slane %v4140, 2
        %v4252 = vsel %vm1025, %v4249, %v4251
        %v4253 = vrot.slane %v4141, 2
        %v4254 = vrot.slane %v4142, 2
        %v4255 = vsel %vm1025, %v4253, %v4254
        %v4256 = vrot.slane %v4143, 2
        %v4257 = vsel %vm1025, %v4254, %v4256
        %v4258 = vrot.slane %v4144, 2
        %v4259 = vrot.slane %v4145, 2
        %v4260 = vsel %vm1025, %v4258, %v4259
        %v4261 = vrot.slane %v4146, 2
        %v4262 = vsel %vm1025, %v4259, %v4261
        %v4263 = vrot.slane %v4147, 2
        %v4264 = vrot.slane %v4148, 2
        %v4265 = vsel %vm1025, %v4263, %v4264
        %v4266 = vrot.slane %v4149, 2
        %v4267 = vsel %vm1025, %v4264, %v4266
        %v4268 = vrot.slane %v4150, 2
        %v4269 = vrot.slane %v4151, 2
        %v4270 = vsel %vm1025, %v4268, %v4269
        %v4271 = vrot.slane %v4152, 2
        %v4272 = vsel %vm1025, %v4269, %v4271
        %v4273 = vrot.slane %v4153, 2
        %v4274 = vrot.slane %v4154, 2
        %v4275 = vsel %vm1025, %v4273, %v4274
        %v4276 = vrot.slane %v4155, 2
        %v4277 = vsel %vm1025, %v4274, %v4276
        %v4278 = vrot.slane %v4156, 2
        %v4279 = vrot.slane %v4157, 2
        %v4280 = vsel %vm1025, %v4278, %v4279
        %v4281 = vrot.slane %v4158, 2
        %v4282 = vsel %vm1025, %v4279, %v4281
        %v4283 = vrot.slane %v4159, 2
        %v4284 = vrot.slane %v4160, 2
        %v4285 = vsel %vm1025, %v4283, %v4284
        %v4286 = vrot.slane %v4161, 2
        %v4287 = vsel %vm1025, %v4284, %v4286
        %v4288 = vrot.slane %v4162, 2
        %v4289 = vrot.slane %v4163, 2
        %v4290 = vsel %vm1025, %v4288, %v4289
        %v4291 = vrot.slane %v4164, 2
        %v4292 = vsel %vm1025, %v4289, %v4291
        %v4325 = vadd.f32 %v4084, %v4215
        %v4326 = vadd.f32 %v4085, %v4217
        %v4327 = vadd.f32 %v4086, %v4220
        %v4328 = vadd.f32 %v4087, %v4222
        %v4329 = vadd.f32 %v4088, %v4225
        %v4330 = vadd.f32 %v4089, %v4227
        %v4331 = vadd.f32 %v4090, %v4230
        %v4332 = vadd.f32 %v4091, %v4232
        %v4333 = vadd.f32 %v4092, %v4235
        %v4334 = vadd.f32 %v4093, %v4237
        %v4335 = vadd.f32 %v4094, %v4240
        %v4336 = vadd.f32 %v4095, %v4242
        %v4337 = vadd.f32 %v4096, %v4245
        %v4338 = vadd.f32 %v4097, %v4247
        %v4339 = vadd.f32 %v4098, %v4250
        %v4340 = vadd.f32 %v4099, %v4252
        %v4341 = vadd.f32 %v4100, %v4255
        %v4342 = vadd.f32 %v4101, %v4257
        %v4343 = vadd.f32 %v4102, %v4260
        %v4344 = vadd.f32 %v4103, %v4262
        %v4345 = vadd.f32 %v4104, %v4265
        %v4346 = vadd.f32 %v4105, %v4267
        %v4347 = vadd.f32 %v4106, %v4270
        %v4348 = vadd.f32 %v4107, %v4272
        %v4349 = vadd.f32 %v4108, %v4275
        %v4350 = vadd.f32 %v4109, %v4277
        %v4351 = vadd.f32 %v4110, %v4280
        %v4352 = vadd.f32 %v4111, %v4282
        %v4353 = vadd.f32 %v4112, %v4285
        %v4354 = vadd.f32 %v4113, %v4287
        %v4355 = vadd.f32 %v4114, %v4290
        %v4356 = vadd.f32 %v4115, %v4292
        %v4357 = vld [vmem:[#allocation10] sm:$0xff]
        %v4358 = vld [vmem:[#allocation10 + $0x8] sm:$0xff]
        %v4359 = vld [vmem:[#allocation10 + $0x10] sm:$0xff]
        %v4360 = vld [vmem:[#allocation10 + $0x18] sm:$0xff]
        %v4361 = vld [vmem:[#allocation10 + $0x20] sm:$0xff]
        %v4362 = vld [vmem:[#allocation10 + $0x28] sm:$0xff]
        %v4363 = vld [vmem:[#allocation10 + $0x30] sm:$0xff]
        %v4364 = vld [vmem:[#allocation10 + $0x38] sm:$0xff]
        %v4365 = vld [vmem:[#allocation10 + $0x40] sm:$0xff]
        %v4366 = vld [vmem:[#allocation10 + $0x48] sm:$0xff]
        %v4367 = vld [vmem:[#allocation10 + $0x50] sm:$0xff]
        %v4368 = vld [vmem:[#allocation10 + $0x58] sm:$0xff]
        %v4369 = vld [vmem:[#allocation10 + $0x60] sm:$0xff]
        %v4370 = vld [vmem:[#allocation10 + $0x68] sm:$0xff]
        %v4371 = vld [vmem:[#allocation10 + $0x70] sm:$0xff]
        %v4372 = vld [vmem:[#allocation10 + $0x78] sm:$0xff]
        %4373 = vmatpush.msra.mxu0 %v4372
        %4374 = vmatpush.msra.mxu0 %v4371
        %4375 = vmatpush.msra.mxu0 %v4370
        %4376 = vmatpush.msra.mxu0 %v4369
        %4377 = vmatpush.msra.mxu0 %v4368
        %4378 = vmatpush.msra.mxu0 %v4367
        %4379 = vmatpush.msra.mxu0 %v4366
        %4380 = vmatpush.msra.mxu0 %v4365
        %4381 = vmatpush.msra.mxu0 %v4364
        %4382 = vmatpush.msra.mxu0 %v4363
        %4383 = vmatpush.msra.mxu0 %v4362
        %4384 = vmatpush.msra.mxu0 %v4361
        %4385 = vmatpush.msra.mxu0 %v4360
        %4386 = vmatpush.msra.mxu0 %v4359
        %4387 = vmatpush.msra.mxu0 %v4358
        %4388 = vmatpush.msra.mxu0 %v4357
        %4389 = vmatmul.f32.gmra.mxu0 %v4325
        %v4390 = vpop.f32.mrf.mxu0
        %v4391 = vadd.f32 0.0, %v4390
        %4392 = vmatmul.f32.gmra.mxu0 %v4326
        %v4393 = vpop.f32.mrf.mxu0
        %v4394 = vadd.f32 0.0, %v4393
        %4395 = vmatmul.f32.gmra.mxu0 %v4327
        %v4396 = vpop.f32.mrf.mxu0
        %v4397 = vadd.f32 0.0, %v4396
        %4398 = vmatmul.f32.gmra.mxu0 %v4328
        %v4399 = vpop.f32.mrf.mxu0
        %v4400 = vadd.f32 0.0, %v4399
        %4401 = vmatmul.f32.gmra.mxu0 %v4329
        %v4402 = vpop.f32.mrf.mxu0
        %v4403 = vadd.f32 0.0, %v4402
        %4404 = vmatmul.f32.gmra.mxu0 %v4330
        %v4405 = vpop.f32.mrf.mxu0
        %v4406 = vadd.f32 0.0, %v4405
        %4407 = vmatmul.f32.gmra.mxu0 %v4331
        %v4408 = vpop.f32.mrf.mxu0
        %v4409 = vadd.f32 0.0, %v4408
        %4410 = vmatmul.f32.gmra.mxu0 %v4332
        %v4411 = vpop.f32.mrf.mxu0
        %v4412 = vadd.f32 0.0, %v4411
        %4413 = vmatmul.f32.gmra.mxu0 %v4333
        %v4414 = vpop.f32.mrf.mxu0
        %v4415 = vadd.f32 0.0, %v4414
        %4416 = vmatmul.f32.gmra.mxu0 %v4334
        %v4417 = vpop.f32.mrf.mxu0
        %v4418 = vadd.f32 0.0, %v4417
        %4419 = vmatmul.f32.gmra.mxu0 %v4335
        %v4420 = vpop.f32.mrf.mxu0
        %v4421 = vadd.f32 0.0, %v4420
        %4422 = vmatmul.f32.gmra.mxu0 %v4336
        %v4423 = vpop.f32.mrf.mxu0
        %v4424 = vadd.f32 0.0, %v4423
        %4425 = vmatmul.f32.gmra.mxu0 %v4337
        %v4426 = vpop.f32.mrf.mxu0
        %v4427 = vadd.f32 0.0, %v4426
        %4428 = vmatmul.f32.gmra.mxu0 %v4338
        %v4429 = vpop.f32.mrf.mxu0
        %v4430 = vadd.f32 0.0, %v4429
        %4431 = vmatmul.f32.gmra.mxu0 %v4339
        %v4432 = vpop.f32.mrf.mxu0
        %v4433 = vadd.f32 0.0, %v4432
        %4434 = vmatmul.f32.gmra.mxu0 %v4340
        %v4435 = vpop.f32.mrf.mxu0
        %v4436 = vadd.f32 0.0, %v4435
        %4437 = vmatmul.f32.gmra.mxu0 %v4341
        %v4438 = vpop.f32.mrf.mxu0
        %v4439 = vadd.f32 0.0, %v4438
        %4440 = vmatmul.f32.gmra.mxu0 %v4342
        %v4441 = vpop.f32.mrf.mxu0
        %v4442 = vadd.f32 0.0, %v4441
        %4443 = vmatmul.f32.gmra.mxu0 %v4343
        %v4444 = vpop.f32.mrf.mxu0
        %v4445 = vadd.f32 0.0, %v4444
        %4446 = vmatmul.f32.gmra.mxu0 %v4344
        %v4447 = vpop.f32.mrf.mxu0
        %v4448 = vadd.f32 0.0, %v4447
        %4449 = vmatmul.f32.gmra.mxu0 %v4345
        %v4450 = vpop.f32.mrf.mxu0
        %v4451 = vadd.f32 0.0, %v4450
        %4452 = vmatmul.f32.gmra.mxu0 %v4346
        %v4453 = vpop.f32.mrf.mxu0
        %v4454 = vadd.f32 0.0, %v4453
        %4455 = vmatmul.f32.gmra.mxu0 %v4347
        %v4456 = vpop.f32.mrf.mxu0
        %v4457 = vadd.f32 0.0, %v4456
        %4458 = vmatmul.f32.gmra.mxu0 %v4348
        %v4459 = vpop.f32.mrf.mxu0
        %v4460 = vadd.f32 0.0, %v4459
        %4461 = vmatmul.f32.gmra.mxu0 %v4349
        %v4462 = vpop.f32.mrf.mxu0
        %v4463 = vadd.f32 0.0, %v4462
        %4464 = vmatmul.f32.gmra.mxu0 %v4350
        %v4465 = vpop.f32.mrf.mxu0
        %v4466 = vadd.f32 0.0, %v4465
        %4467 = vmatmul.f32.gmra.mxu0 %v4351
        %v4468 = vpop.f32.mrf.mxu0
        %v4469 = vadd.f32 0.0, %v4468
        %4470 = vmatmul.f32.gmra.mxu0 %v4352
        %v4471 = vpop.f32.mrf.mxu0
        %v4472 = vadd.f32 0.0, %v4471
        %4473 = vmatmul.f32.gmra.mxu0 %v4353
        %v4474 = vpop.f32.mrf.mxu0
        %v4475 = vadd.f32 0.0, %v4474
        %4476 = vmatmul.f32.gmra.mxu0 %v4354
        %v4477 = vpop.f32.mrf.mxu0
        %v4478 = vadd.f32 0.0, %v4477
        %4479 = vmatmul.f32.gmra.mxu0 %v4355
        %v4480 = vpop.f32.mrf.mxu0
        %v4481 = vadd.f32 0.0, %v4480
        %4482 = vmatmul.f32.gmra.mxu0 %v4356
        %v4483 = vpop.f32.mrf.mxu0
        %v4484 = vadd.f32 0.0, %v4483
        %4485 = vdwg.mxu0
        %v4486 = vld [vmem:[%s7] sm:$0x1]
        %v4488 = vperm.slane %v4486, 0
        %v4490 = vmul.f32 %v4391, %v4488
        %v4491 = vmul.f32 %v4394, %v4488
        %v4492 = vmul.f32 %v4397, %v4488
        %v4493 = vmul.f32 %v4400, %v4488
        %v4494 = vmul.f32 %v4403, %v4488
        %v4495 = vmul.f32 %v4406, %v4488
        %v4496 = vmul.f32 %v4409, %v4488
        %v4497 = vmul.f32 %v4412, %v4488
        %v4498 = vmul.f32 %v4415, %v4488
        %v4499 = vmul.f32 %v4418, %v4488
        %v4500 = vmul.f32 %v4421, %v4488
        %v4501 = vmul.f32 %v4424, %v4488
        %v4502 = vmul.f32 %v4427, %v4488
        %v4503 = vmul.f32 %v4430, %v4488
        %v4504 = vmul.f32 %v4433, %v4488
        %v4505 = vmul.f32 %v4436, %v4488
        %v4506 = vmul.f32 %v4439, %v4488
        %v4507 = vmul.f32 %v4442, %v4488
        %v4508 = vmul.f32 %v4445, %v4488
        %v4509 = vmul.f32 %v4448, %v4488
        %v4510 = vmul.f32 %v4451, %v4488
        %v4511 = vmul.f32 %v4454, %v4488
        %v4512 = vmul.f32 %v4457, %v4488
        %v4513 = vmul.f32 %v4460, %v4488
        %v4514 = vmul.f32 %v4463, %v4488
        %v4515 = vmul.f32 %v4466, %v4488
        %v4516 = vmul.f32 %v4469, %v4488
        %v4517 = vmul.f32 %v4472, %v4488
        %v4518 = vmul.f32 %v4475, %v4488
        %v4519 = vmul.f32 %v4478, %v4488
        %v4520 = vmul.f32 %v4481, %v4488
        %v4521 = vmul.f32 %v4484, %v4488
        %v4522 = vld [vmem:[%s8] sm:$0x1]
        %v4524 = vperm.slane %v4522, 0
        %v4526 = vadd.f32 %v4490, %v4524
        %v4527 = vadd.f32 %v4491, %v4524
        %v4528 = vadd.f32 %v4492, %v4524
        %v4529 = vadd.f32 %v4493, %v4524
        %v4530 = vadd.f32 %v4494, %v4524
        %v4531 = vadd.f32 %v4495, %v4524
        %v4532 = vadd.f32 %v4496, %v4524
        %v4533 = vadd.f32 %v4497, %v4524
        %v4534 = vadd.f32 %v4498, %v4524
        %v4535 = vadd.f32 %v4499, %v4524
        %v4536 = vadd.f32 %v4500, %v4524
        %v4537 = vadd.f32 %v4501, %v4524
        %v4538 = vadd.f32 %v4502, %v4524
        %v4539 = vadd.f32 %v4503, %v4524
        %v4540 = vadd.f32 %v4504, %v4524
        %v4541 = vadd.f32 %v4505, %v4524
        %v4542 = vadd.f32 %v4506, %v4524
        %v4543 = vadd.f32 %v4507, %v4524
        %v4544 = vadd.f32 %v4508, %v4524
        %v4545 = vadd.f32 %v4509, %v4524
        %v4546 = vadd.f32 %v4510, %v4524
        %v4547 = vadd.f32 %v4511, %v4524
        %v4548 = vadd.f32 %v4512, %v4524
        %v4549 = vadd.f32 %v4513, %v4524
        %v4550 = vadd.f32 %v4514, %v4524
        %v4551 = vadd.f32 %v4515, %v4524
        %v4552 = vadd.f32 %v4516, %v4524
        %v4553 = vadd.f32 %v4517, %v4524
        %v4554 = vadd.f32 %v4518, %v4524
        %v4555 = vadd.f32 %v4519, %v4524
        %v4556 = vadd.f32 %v4520, %v4524
        %v4557 = vadd.f32 %v4521, %v4524
        %v4558 = vmax.f32 %v4530, %v4526
        %v4559 = vmax.f32 %v4531, %v4527
        %v4560 = vmax.f32 %v4532, %v4528
        %v4561 = vmax.f32 %v4533, %v4529
        %v4562 = vmax.f32 %v4534, %v4530
        %v4563 = vmax.f32 %v4535, %v4531
        %v4564 = vmax.f32 %v4536, %v4532
        %v4565 = vmax.f32 %v4537, %v4533
        %v4566 = vmax.f32 %v4538, %v4534
        %v4567 = vmax.f32 %v4539, %v4535
        %v4568 = vmax.f32 %v4540, %v4536
        %v4569 = vmax.f32 %v4541, %v4537
        %v4570 = vmax.f32 %v4542, %v4538
        %v4571 = vmax.f32 %v4543, %v4539
        %v4572 = vmax.f32 %v4544, %v4540
        %v4573 = vmax.f32 %v4545, %v4541
        %v4574 = vmax.f32 %v4546, %v4542
        %v4575 = vmax.f32 %v4547, %v4543
        %v4576 = vmax.f32 %v4548, %v4544
        %v4577 = vmax.f32 %v4549, %v4545
        %v4578 = vmax.f32 %v4550, %v4546
        %v4579 = vmax.f32 %v4551, %v4547
        %v4580 = vmax.f32 %v4552, %v4548
        %v4581 = vmax.f32 %v4553, %v4549
        %v4582 = vmax.f32 %v4554, %v4550
        %v4583 = vmax.f32 %v4555, %v4551
        %v4584 = vmax.f32 %v4556, %v4552
        %v4585 = vmax.f32 %v4557, %v4553
        %v4586 = vmax.f32 %v4526, %v4528
        %v4587 = vmax.f32 %v4527, %v4529
        %v4588 = vmax.f32 %v4528, %v4558
        %v4589 = vmax.f32 %v4529, %v4559
        %v4590 = vmax.f32 %v4530, %v4560
        %v4591 = vmax.f32 %v4531, %v4561
        %v4592 = vmax.f32 %v4532, %v4562
        %v4593 = vmax.f32 %v4533, %v4563
        %v4594 = vmax.f32 %v4534, %v4564
        %v4595 = vmax.f32 %v4535, %v4565
        %v4596 = vmax.f32 %v4536, %v4566
        %v4597 = vmax.f32 %v4537, %v4567
        %v4598 = vmax.f32 %v4538, %v4568
        %v4599 = vmax.f32 %v4539, %v4569
        %v4600 = vmax.f32 %v4540, %v4570
        %v4601 = vmax.f32 %v4541, %v4571
        %v4602 = vmax.f32 %v4542, %v4572
        %v4603 = vmax.f32 %v4543, %v4573
        %v4604 = vmax.f32 %v4544, %v4574
        %v4605 = vmax.f32 %v4545, %v4575
        %v4606 = vmax.f32 %v4546, %v4576
        %v4607 = vmax.f32 %v4547, %v4577
        %v4608 = vmax.f32 %v4548, %v4578
        %v4609 = vmax.f32 %v4549, %v4579
        %v4610 = vmax.f32 %v4550, %v4580
        %v4611 = vmax.f32 %v4551, %v4581
        %v4612 = vmax.f32 %v4552, %v4582
        %v4613 = vmax.f32 %v4553, %v4583
        %v4614 = vmax.f32 %v4554, %v4584
        %v4615 = vmax.f32 %v4555, %v4585
        %v4616 = vmax.f32 %v4556, %v4554
        %v4617 = vmax.f32 %v4557, %v4555
        %v4650 = vrot.slane %v4586, 1
        %v4651 = vrot.slane %v4587, 1
        %v4652 = vsel %vm783, %v4650, %v4651
        %v4653 = vrot.slane %v4588, 1
        %v4654 = vrot.slane %v4589, 1
        %v4655 = vsel %vm783, %v4653, %v4654
        %v4656 = vrot.slane %v4590, 1
        %v4657 = vrot.slane %v4591, 1
        %v4658 = vsel %vm783, %v4656, %v4657
        %v4659 = vrot.slane %v4592, 1
        %v4660 = vrot.slane %v4593, 1
        %v4661 = vsel %vm783, %v4659, %v4660
        %v4662 = vrot.slane %v4594, 1
        %v4663 = vrot.slane %v4595, 1
        %v4664 = vsel %vm783, %v4662, %v4663
        %v4665 = vrot.slane %v4596, 1
        %v4666 = vrot.slane %v4597, 1
        %v4667 = vsel %vm783, %v4665, %v4666
        %v4668 = vrot.slane %v4598, 1
        %v4669 = vrot.slane %v4599, 1
        %v4670 = vsel %vm783, %v4668, %v4669
        %v4671 = vrot.slane %v4600, 1
        %v4672 = vrot.slane %v4601, 1
        %v4673 = vsel %vm783, %v4671, %v4672
        %v4674 = vrot.slane %v4602, 1
        %v4675 = vrot.slane %v4603, 1
        %v4676 = vsel %vm783, %v4674, %v4675
        %v4677 = vrot.slane %v4604, 1
        %v4678 = vrot.slane %v4605, 1
        %v4679 = vsel %vm783, %v4677, %v4678
        %v4680 = vrot.slane %v4606, 1
        %v4681 = vrot.slane %v4607, 1
        %v4682 = vsel %vm783, %v4680, %v4681
        %v4683 = vrot.slane %v4608, 1
        %v4684 = vrot.slane %v4609, 1
        %v4685 = vsel %vm783, %v4683, %v4684
        %v4686 = vrot.slane %v4610, 1
        %v4687 = vrot.slane %v4611, 1
        %v4688 = vsel %vm783, %v4686, %v4687
        %v4689 = vrot.slane %v4612, 1
        %v4690 = vrot.slane %v4613, 1
        %v4691 = vsel %vm783, %v4689, %v4690
        %v4692 = vrot.slane %v4614, 1
        %v4693 = vrot.slane %v4615, 1
        %v4694 = vsel %vm783, %v4692, %v4693
        %v4695 = vrot.slane %v4616, 1
        %v4696 = vrot.slane %v4617, 1
        %v4697 = vsel %vm783, %v4695, %v4696
        %v4730 = vsel %vm783, %v4651, -inf
        %v4731 = vsel %vm783, %v4654, -inf
        %v4732 = vsel %vm783, %v4657, -inf
        %v4733 = vsel %vm783, %v4660, -inf
        %v4734 = vsel %vm783, %v4663, -inf
        %v4735 = vsel %vm783, %v4666, -inf
        %v4736 = vsel %vm783, %v4669, -inf
        %v4737 = vsel %vm783, %v4672, -inf
        %v4738 = vsel %vm783, %v4675, -inf
        %v4739 = vsel %vm783, %v4678, -inf
        %v4740 = vsel %vm783, %v4681, -inf
        %v4741 = vsel %vm783, %v4684, -inf
        %v4742 = vsel %vm783, %v4687, -inf
        %v4743 = vsel %vm783, %v4690, -inf
        %v4744 = vsel %vm783, %v4693, -inf
        %v4745 = vsel %vm783, %v4696, -inf
        %v4746 = vrot.slane %v4586, 7
        %v4747 = vrot.slane %v4587, 7
        %v4748 = vsel %vm516, %v4746, %v4747
        %v4749 = vrot.slane %v4588, 7
        %v4750 = vrot.slane %v4589, 7
        %v4751 = vsel %vm516, %v4749, %v4750
        %v4752 = vrot.slane %v4590, 7
        %v4753 = vrot.slane %v4591, 7
        %v4754 = vsel %vm516, %v4752, %v4753
        %v4755 = vrot.slane %v4592, 7
        %v4756 = vrot.slane %v4593, 7
        %v4757 = vsel %vm516, %v4755, %v4756
        %v4758 = vrot.slane %v4594, 7
        %v4759 = vrot.slane %v4595, 7
        %v4760 = vsel %vm516, %v4758, %v4759
        %v4761 = vrot.slane %v4596, 7
        %v4762 = vrot.slane %v4597, 7
        %v4763 = vsel %vm516, %v4761, %v4762
        %v4764 = vrot.slane %v4598, 7
        %v4765 = vrot.slane %v4599, 7
        %v4766 = vsel %vm516, %v4764, %v4765
        %v4767 = vrot.slane %v4600, 7
        %v4768 = vrot.slane %v4601, 7
        %v4769 = vsel %vm516, %v4767, %v4768
        %v4770 = vrot.slane %v4602, 7
        %v4771 = vrot.slane %v4603, 7
        %v4772 = vsel %vm516, %v4770, %v4771
        %v4773 = vrot.slane %v4604, 7
        %v4774 = vrot.slane %v4605, 7
        %v4775 = vsel %vm516, %v4773, %v4774
        %v4776 = vrot.slane %v4606, 7
        %v4777 = vrot.slane %v4607, 7
        %v4778 = vsel %vm516, %v4776, %v4777
        %v4779 = vrot.slane %v4608, 7
        %v4780 = vrot.slane %v4609, 7
        %v4781 = vsel %vm516, %v4779, %v4780
        %v4782 = vrot.slane %v4610, 7
        %v4783 = vrot.slane %v4611, 7
        %v4784 = vsel %vm516, %v4782, %v4783
        %v4785 = vrot.slane %v4612, 7
        %v4786 = vrot.slane %v4613, 7
        %v4787 = vsel %vm516, %v4785, %v4786
        %v4788 = vrot.slane %v4614, 7
        %v4789 = vrot.slane %v4615, 7
        %v4790 = vsel %vm516, %v4788, %v4789
        %v4791 = vrot.slane %v4616, 7
        %v4792 = vrot.slane %v4617, 7
        %v4793 = vsel %vm516, %v4791, %v4792
        %v4826 = vsel %vm516, -inf, %v4746
        %v4827 = vsel %vm516, -inf, %v4749
        %v4828 = vsel %vm516, -inf, %v4752
        %v4829 = vsel %vm516, -inf, %v4755
        %v4830 = vsel %vm516, -inf, %v4758
        %v4831 = vsel %vm516, -inf, %v4761
        %v4832 = vsel %vm516, -inf, %v4764
        %v4833 = vsel %vm516, -inf, %v4767
        %v4834 = vsel %vm516, -inf, %v4770
        %v4835 = vsel %vm516, -inf, %v4773
        %v4836 = vsel %vm516, -inf, %v4776
        %v4837 = vsel %vm516, -inf, %v4779
        %v4838 = vsel %vm516, -inf, %v4782
        %v4839 = vsel %vm516, -inf, %v4785
        %v4840 = vsel %vm516, -inf, %v4788
        %v4841 = vsel %vm516, -inf, %v4791
        %v4842 = vmax.f32 %v4652, %v4826
        %v4843 = vmax.f32 %v4730, %v4748
        %v4844 = vmax.f32 %v4655, %v4827
        %v4845 = vmax.f32 %v4731, %v4751
        %v4846 = vmax.f32 %v4658, %v4828
        %v4847 = vmax.f32 %v4732, %v4754
        %v4848 = vmax.f32 %v4661, %v4829
        %v4849 = vmax.f32 %v4733, %v4757
        %v4850 = vmax.f32 %v4664, %v4830
        %v4851 = vmax.f32 %v4734, %v4760
        %v4852 = vmax.f32 %v4667, %v4831
        %v4853 = vmax.f32 %v4735, %v4763
        %v4854 = vmax.f32 %v4670, %v4832
        %v4855 = vmax.f32 %v4736, %v4766
        %v4856 = vmax.f32 %v4673, %v4833
        %v4857 = vmax.f32 %v4737, %v4769
        %v4858 = vmax.f32 %v4676, %v4834
        %v4859 = vmax.f32 %v4738, %v4772
        %v4860 = vmax.f32 %v4679, %v4835
        %v4861 = vmax.f32 %v4739, %v4775
        %v4862 = vmax.f32 %v4682, %v4836
        %v4863 = vmax.f32 %v4740, %v4778
        %v4864 = vmax.f32 %v4685, %v4837
        %v4865 = vmax.f32 %v4741, %v4781
        %v4866 = vmax.f32 %v4688, %v4838
        %v4867 = vmax.f32 %v4742, %v4784
        %v4868 = vmax.f32 %v4691, %v4839
        %v4869 = vmax.f32 %v4743, %v4787
        %v4870 = vmax.f32 %v4694, %v4840
        %v4871 = vmax.f32 %v4744, %v4790
        %v4872 = vmax.f32 %v4697, %v4841
        %v4873 = vmax.f32 %v4745, %v4793
        %v4874 = vmax.f32 %v4586, %v4842
        %v4875 = vmax.f32 %v4587, %v4843
        %v4876 = vmax.f32 %v4588, %v4844
        %v4877 = vmax.f32 %v4589, %v4845
        %v4878 = vmax.f32 %v4590, %v4846
        %v4879 = vmax.f32 %v4591, %v4847
        %v4880 = vmax.f32 %v4592, %v4848
        %v4881 = vmax.f32 %v4593, %v4849
        %v4882 = vmax.f32 %v4594, %v4850
        %v4883 = vmax.f32 %v4595, %v4851
        %v4884 = vmax.f32 %v4596, %v4852
        %v4885 = vmax.f32 %v4597, %v4853
        %v4886 = vmax.f32 %v4598, %v4854
        %v4887 = vmax.f32 %v4599, %v4855
        %v4888 = vmax.f32 %v4600, %v4856
        %v4889 = vmax.f32 %v4601, %v4857
        %v4890 = vmax.f32 %v4602, %v4858
        %v4891 = vmax.f32 %v4603, %v4859
        %v4892 = vmax.f32 %v4604, %v4860
        %v4893 = vmax.f32 %v4605, %v4861
        %v4894 = vmax.f32 %v4606, %v4862
        %v4895 = vmax.f32 %v4607, %v4863
        %v4896 = vmax.f32 %v4608, %v4864
        %v4897 = vmax.f32 %v4609, %v4865
        %v4898 = vmax.f32 %v4610, %v4866
        %v4899 = vmax.f32 %v4611, %v4867
        %v4900 = vmax.f32 %v4612, %v4868
        %v4901 = vmax.f32 %v4613, %v4869
        %v4902 = vmax.f32 %v4614, %v4870
        %v4903 = vmax.f32 %v4615, %v4871
        %v4904 = vmax.f32 %v4616, %v4872
        %v4905 = vmax.f32 %v4617, %v4873
        %4906 = vst [vmem:[%s418] sm:$0xff] %v4874
        %4907 = vst [vmem:[%s418 + $0x8] sm:$0xff] %v4875
        %4908 = vst [vmem:[%s418 + $0x10] sm:$0xff] %v4876
        %4909 = vst [vmem:[%s418 + $0x18] sm:$0xff] %v4877
        %4910 = vst [vmem:[%s418 + $0x20] sm:$0xff] %v4878
        %4911 = vst [vmem:[%s418 + $0x28] sm:$0xff] %v4879
        %4912 = vst [vmem:[%s418 + $0x30] sm:$0xff] %v4880
        %4913 = vst [vmem:[%s418 + $0x38] sm:$0xff] %v4881
        %4914 = vst [vmem:[%s418 + $0x40] sm:$0xff] %v4882
        %4915 = vst [vmem:[%s418 + $0x48] sm:$0xff] %v4883
        %4916 = vst [vmem:[%s418 + $0x50] sm:$0xff] %v4884
        %4917 = vst [vmem:[%s418 + $0x58] sm:$0xff] %v4885
        %4918 = vst [vmem:[%s418 + $0x60] sm:$0xff] %v4886
        %4919 = vst [vmem:[%s418 + $0x68] sm:$0xff] %v4887
        %4920 = vst [vmem:[%s418 + $0x70] sm:$0xff] %v4888
        %4921 = vst [vmem:[%s418 + $0x78] sm:$0xff] %v4889
        %4922 = vst [vmem:[%s418 + $0x80] sm:$0xff] %v4890
        %4923 = vst [vmem:[%s418 + $0x88] sm:$0xff] %v4891
        %4924 = vst [vmem:[%s418 + $0x90] sm:$0xff] %v4892
        %4925 = vst [vmem:[%s418 + $0x98] sm:$0xff] %v4893
        %4926 = vst [vmem:[%s418 + $0xa0] sm:$0xff] %v4894
        %4927 = vst [vmem:[%s418 + $0xa8] sm:$0xff] %v4895
        %4928 = vst [vmem:[%s418 + $0xb0] sm:$0xff] %v4896
        %4929 = vst [vmem:[%s418 + $0xb8] sm:$0xff] %v4897
        %4930 = vst [vmem:[%s418 + $0xc0] sm:$0xff] %v4898
        %4931 = vst [vmem:[%s418 + $0xc8] sm:$0xff] %v4899
        %4932 = vst [vmem:[%s418 + $0xd0] sm:$0xff] %v4900
        %4933 = vst [vmem:[%s418 + $0xd8] sm:$0xff] %v4901
        %4934 = vst [vmem:[%s418 + $0xe0] sm:$0xff] %v4902
        %4935 = vst [vmem:[%s418 + $0xe8] sm:$0xff] %v4903
        %4936 = vst [vmem:[%s418 + $0xf0] sm:$0xff] %v4904
        %4937 = vst [vmem:[%s418 + $0xf8] sm:$0xff] %v4905
        %s4938 = sand.u32 %s230, 1
        %s4939 = scalar_lea.sflag [#allocation4], %s4938
        %s4940 = sand.u32 %s230, 1
        %s4941 = smul.addr %s4940, 256
        %s4942 = scalar_lea.vmem [#allocation11], %s4941
        // Predicated region
        $region77: #{tpu_custom_call.1} parent=55 // pred_check
          %p4943 = pneg %p240
        $region78: #{tpu_custom_call.1} parent=55 // pred_check_branch
          %4945 = sbr.rel (%p4943) target = $region80
        $region79: #{tpu_custom_call.1} parent=55 // pred_region
          %4947 = vsyncadd %s4939, 0
          %s4948 = smul.addr %s28, 32
          %s4949 = smul.addr %s4948, 8
          %s4950 = scalar_lea.hbm %s9, %s4949
          %s4951 = sshll.u32 %s4942, 4
          %s4952 = int_to_ptr.vmem [resolvable:$true] %s4951
          %s4953 = sshll.u32 %s4950, 4
          %s4954 = int_to_ptr.hbm [resolvable:$true] %s4953
          %4959 = dma.vmem_to_hbm [thread:$0]  %s4952, 4096, %s4954, %s4939, 128, 128, 8
        $region80: #{tpu_custom_call.1} parent=55 // pred_fallthru
          _
      $region56: #{tpu_custom_call.1} parent=5 // pred_fallthru
        _
      %p4960 = scmp.le.s32.totalorder 2, %s23
      // Predicated region
      $region81: #{tpu_custom_call.1} parent=5 // pred_check
        %p4961 = pneg %p4960
      $region82: #{tpu_custom_call.1} parent=5 // pred_check_branch
        %4963 = sbr.rel (%p4961) target = $region84
      $region83: #{tpu_custom_call.1} parent=5 // pred_region
        %s4964 = ssub.s32 %s23, 2
        // Predicated region
        $region85: #{tpu_custom_call.1} parent=83 // pred_check
          %p4965 = pneg %p246
        $region86: #{tpu_custom_call.1} parent=83 // pred_check_branch
          %4967 = sbr.rel (%p4965) target = $region88
        $region87: #{tpu_custom_call.1} parent=83 // pred_region
          %s4968 = sand.u32 %s231, 1
          %s4969 = scalar_lea.sflag [#allocation4], %s4968
          %s4970 = sand.u32 %s231, 1
          %s4971 = smul.addr %s4970, 256
          %s4972 = scalar_lea.vmem [#allocation11], %s4971
          %4974 = dma.done %s4969, 4096
        $region88: #{tpu_custom_call.1} parent=83 // pred_fallthru
          _
      $region84: #{tpu_custom_call.1} parent=5 // pred_fallthru
        _
    $region6: #{tpu_custom_call.1} parent=1 // loop_footer
      %s27 = sadd.s32 1, %s23
    $region7: #{tpu_custom_call.1} parent=1 // loop_footer_branch
      %22 = sbr.rel target = $region3
    $region8: #{tpu_custom_call.1} parent=1 // loop_exit
      _
    %4975 = vsyncpa [#allocation3], 1
    %s4976 = scalar_lea.sflag [#allocation3], 1
    %4977 = vsyncpa %s4976, 1
    %4978 = vsyncpa [#allocation6], 1
    %4979 = vsyncpa [#allocation9], 1
    %4980 = vsyncpa [#allocation4], 1
    %s4981 = scalar_lea.sflag [#allocation4], 1
    %4982 = vsyncpa %s4981, 1

</llo_original>
